<compile_context>
chip_gen: v7x
topology: tpu7x:2x2x1
jax: 0.10.0
libtpu: 0.0.40
codegen_flags: <defaults>
</compile_context>

<pallas_src>
import jax
import jax.numpy as jnp
from jax.experimental import pallas as pl
from jax.experimental.pallas import tpu as pltpu

# ----- model dims (deterministic stand-ins for the graph-derived
#       input_num / output_num of the original module) -----
INPUT_NUM = 10
HIDDEN1 = 512
HIDDEN2 = 1024
OUTPUT_NUM = 6
OUT_PAD = 128        # lane-dense padded output width (sliced back to OUTPUT_NUM)

BATCH = 256
BATCH_TILE = 256     # grid=(1,): one step, full MXU M-tile on v6e/v7x


def mlp_kernel(x_ref, w1_ref, b1_ref, w2_ref, b2_ref, w3_ref, b3_ref, out_ref):
    # cast x to bf16 in-kernel (VPU slot has slack; avoids a wrapper convert op)
    x = x_ref[...].astype(jnp.bfloat16)
    # hidden1 + ReLU   (bf16 x bf16 -> f32 accumulate)
    h1 = jnp.dot(x, w1_ref[...], preferred_element_type=jnp.float32)
    h1 = jnp.maximum(h1 + b1_ref[...], 0.0).astype(jnp.bfloat16)
    # hidden2 + ReLU
    h2 = jnp.dot(h1, w2_ref[...], preferred_element_type=jnp.float32)
    h2 = jnp.maximum(h2 + b2_ref[...], 0.0).astype(jnp.bfloat16)
    # predict (no activation), lane-dense padded output
    out = jnp.dot(h2, w3_ref[...], preferred_element_type=jnp.float32)
    out_ref[...] = (out + b3_ref[...]).astype(out_ref.dtype)


@jax.jit
def mlp_forward(x, w1, b1, w2, b2, w3p, b3p):
    """w3p/b3p are pre-padded to OUT_PAD columns (done once in init_params)."""
    B, Din = x.shape
    grid = (pl.cdiv(B, BATCH_TILE),)

    out_padded = pl.pallas_call(
        mlp_kernel,
        out_shape=jax.ShapeDtypeStruct((B, OUT_PAD), jnp.float32),
        grid_spec=pltpu.PrefetchScalarGridSpec(
            num_scalar_prefetch=0,
            grid=grid,
            in_specs=[
                pl.BlockSpec((BATCH_TILE, Din), lambda i: (i, 0)),    # x tile (f32)
                pl.BlockSpec((Din, HIDDEN1), lambda i: (0, 0)),       # W1 (resident)
                pl.BlockSpec((1, HIDDEN1), lambda i: (0, 0)),         # b1
                pl.BlockSpec((HIDDEN1, HIDDEN2), lambda i: (0, 0)),   # W2 (resident)
                pl.BlockSpec((1, HIDDEN2), lambda i: (0, 0)),         # b2
                pl.BlockSpec((HIDDEN2, OUT_PAD), lambda i: (0, 0)),   # W3 padded (resident)
                pl.BlockSpec((1, OUT_PAD), lambda i: (0, 0)),         # b3 padded
            ],
            out_specs=pl.BlockSpec((BATCH_TILE, OUT_PAD), lambda i: (i, 0)),
        ),
        compiler_params=pltpu.CompilerParams(
            # single step at BATCH=256; stays correct/parallel if B ever grows
            dimension_semantics=("parallel",),
            vmem_limit_bytes=16 * 1024 * 1024,   # footprint ~4 MiB; safe everywhere
        ),
    )(x, w1, b1, w2, b2, w3p, b3p)

    return out_padded[:, :OUTPUT_NUM]


def init_params(key):
    """PyTorch-Linear-style init; weights stored (in, out) bf16; W3/b3 pre-padded."""
    ks = jax.random.split(key, 6)

    def lin(kw, kb, fan_in, fan_out):
        bound = 1.0 / jnp.sqrt(fan_in)
        w = jax.random.uniform(kw, (fan_in, fan_out), jnp.float32, -bound, bound)
        b = jax.random.uniform(kb, (1, fan_out), jnp.float32, -bound, bound)
        return w, b

    w1, b1 = lin(ks[0], ks[1], INPUT_NUM, HIDDEN1)
    w2, b2 = lin(ks[2], ks[3], HIDDEN1, HIDDEN2)
    w3, b3 = lin(ks[4], ks[5], HIDDEN2, OUTPUT_NUM)

    # Pre-pad the last layer ONCE to the lane-dense OUT_PAD slab.
    w3p = jnp.zeros((HIDDEN2, OUT_PAD), jnp.float32).at[:, :OUTPUT_NUM].set(w3)
    b3p = jnp.zeros((1, OUT_PAD), jnp.float32).at[:, :OUTPUT_NUM].set(b3)

    return (w1.astype(jnp.bfloat16), b1,
            w2.astype(jnp.bfloat16), b2,
            w3p.astype(jnp.bfloat16), b3p)


def mlp_reference(x, w1, b1, w2, b2, w3p, b3p):
    """Same dtype flow as the kernel (bf16 operands, f32 accumulation)."""
    xb = x.astype(jnp.bfloat16)
    h1 = jax.nn.relu(jnp.dot(xb, w1, preferred_element_type=jnp.float32) + b1)
    h1 = h1.astype(jnp.bfloat16)
    h2 = jax.nn.relu(jnp.dot(h1, w2, preferred_element_type=jnp.float32) + b2)
    h2 = h2.astype(jnp.bfloat16)
    out = jnp.dot(h2, w3p, preferred_element_type=jnp.float32) + b3p
    return out[:, :OUTPUT_NUM]


if __name__ == "__main__":
    key = jax.random.PRNGKey(0)
    k_x, k_p = jax.random.split(key)

    x = jax.random.normal(k_x, (BATCH, INPUT_NUM), jnp.float32)
    params = init_params(k_p)

    out = jax.block_until_ready(mlp_forward(x, *params))
    ref = mlp_reference(x, *params)

    assert out.shape == (BATCH, OUTPUT_NUM), out.shape
    assert jnp.allclose(out, ref, atol=1e-2, rtol=1e-2), "mismatch vs reference"

    print("KERNEL_OK")
</pallas_src>

<mosaic_0001>
module attributes {stable_mosaic.version = 11 : i64} {
  func.func @mlp_kernel(%arg0: i32, %arg1: memref<256x10xf32, #tpu.memory_space<vmem>>, %arg2: memref<10x512xbf16, #tpu.memory_space<vmem>>, %arg3: memref<1x512xf32, #tpu.memory_space<vmem>>, %arg4: memref<512x1024xbf16, #tpu.memory_space<vmem>>, %arg5: memref<1x1024xf32, #tpu.memory_space<vmem>>, %arg6: memref<1024x128xbf16, #tpu.memory_space<vmem>>, %arg7: memref<1x128xf32, #tpu.memory_space<vmem>>, %arg8: memref<256x128xf32, #tpu.memory_space<vmem>>) attributes {dimension_semantics = [#tpu.dimension_semantics<parallel>], iteration_bounds = array<i64: 1>, scalar_prefetch = 0 : i64, scratch_operands = 0 : i64, tpu.core_type = #tpu.core_type<tc>, window_params = [{transform_indices = @transform_0, window_bounds = array<i64: 256, 10>}, {pipeline_mode = #tpu.pipeline_mode<synchronous>, transform_indices = @transform_1, window_bounds = array<i64: 10, 512>}, {pipeline_mode = #tpu.pipeline_mode<synchronous>, transform_indices = @transform_2, window_bounds = array<i64: 1, 512>}, {pipeline_mode = #tpu.pipeline_mode<synchronous>, transform_indices = @transform_3, window_bounds = array<i64: 512, 1024>}, {pipeline_mode = #tpu.pipeline_mode<synchronous>, transform_indices = @transform_4, window_bounds = array<i64: 1, 1024>}, {pipeline_mode = #tpu.pipeline_mode<synchronous>, transform_indices = @transform_5, window_bounds = array<i64: 1024, 128>}, {pipeline_mode = #tpu.pipeline_mode<synchronous>, transform_indices = @transform_6, window_bounds = array<i64: 1, 128>}, {transform_indices = @transform_7, window_bounds = array<i64: 256, 128>}]} {
    %c0 = arith.constant 0 : index
    %c0_0 = arith.constant 0 : index
    %0 = vector.load %arg1[%c0, %c0_0] : memref<256x10xf32, #tpu.memory_space<vmem>>, vector<256x10xf32>
    %1 = arith.truncf %0 : vector<256x10xf32> to vector<256x10xbf16>
    %c0_1 = arith.constant 0 : index
    %c0_2 = arith.constant 0 : index
    %2 = vector.load %arg2[%c0_1, %c0_2] : memref<10x512xbf16, #tpu.memory_space<vmem>>, vector<10x512xbf16>
    %cst = arith.constant dense<0.000000e+00> : vector<256x512xf32>
    %3 = tpu.matmul %1, %2, %cst {dimension_numbers = #tpu.dot_dimension_numbers<[1], [0], [0], [1], [0, 0, 1, 1], [], []>} : vector<256x10xbf16>, vector<10x512xbf16>, vector<256x512xf32> -> vector<256x512xf32>
    %c0_3 = arith.constant 0 : index
    %c0_4 = arith.constant 0 : index
    %4 = vector.load %arg3[%c0_3, %c0_4] : memref<1x512xf32, #tpu.memory_space<vmem>>, vector<1x512xf32>
    %5 = vector.broadcast %4 : vector<1x512xf32> to vector<256x512xf32>
    %6 = arith.addf %3, %5 : vector<256x512xf32>
    %cst_5 = arith.constant 0.000000e+00 : f32
    %7 = vector.broadcast %cst_5 : f32 to vector<256x512xf32>
    %8 = arith.maximumf %6, %7 : vector<256x512xf32>
    %9 = arith.truncf %8 : vector<256x512xf32> to vector<256x512xbf16>
    %c0_6 = arith.constant 0 : index
    %c0_7 = arith.constant 0 : index
    %10 = vector.load %arg4[%c0_6, %c0_7] : memref<512x1024xbf16, #tpu.memory_space<vmem>>, vector<512x1024xbf16>
    %cst_8 = arith.constant dense<0.000000e+00> : vector<256x1024xf32>
    %11 = tpu.matmul %9, %10, %cst_8 {dimension_numbers = #tpu.dot_dimension_numbers<[1], [0], [0], [1], [0, 0, 1, 1], [], []>} : vector<256x512xbf16>, vector<512x1024xbf16>, vector<256x1024xf32> -> vector<256x1024xf32>
    %c0_9 = arith.constant 0 : index
    %c0_10 = arith.constant 0 : index
    %12 = vector.load %arg5[%c0_9, %c0_10] : memref<1x1024xf32, #tpu.memory_space<vmem>>, vector<1x1024xf32>
    %13 = vector.broadcast %12 : vector<1x1024xf32> to vector<256x1024xf32>
    %14 = arith.addf %11, %13 : vector<256x1024xf32>
    %cst_11 = arith.constant 0.000000e+00 : f32
    %15 = vector.broadcast %cst_11 : f32 to vector<256x1024xf32>
    %16 = arith.maximumf %14, %15 : vector<256x1024xf32>
    %17 = arith.truncf %16 : vector<256x1024xf32> to vector<256x1024xbf16>
    %c0_12 = arith.constant 0 : index
    %c0_13 = arith.constant 0 : index
    %18 = vector.load %arg6[%c0_12, %c0_13] : memref<1024x128xbf16, #tpu.memory_space<vmem>>, vector<1024x128xbf16>
    %cst_14 = arith.constant dense<0.000000e+00> : vector<256x128xf32>
    %19 = tpu.matmul %17, %18, %cst_14 {dimension_numbers = #tpu.dot_dimension_numbers<[1], [0], [0], [1], [0, 0, 1, 1], [], []>} : vector<256x1024xbf16>, vector<1024x128xbf16>, vector<256x128xf32> -> vector<256x128xf32>
    %c0_15 = arith.constant 0 : index
    %c0_16 = arith.constant 0 : index
    %20 = vector.load %arg7[%c0_15, %c0_16] : memref<1x128xf32, #tpu.memory_space<vmem>>, vector<1x128xf32>
    %21 = vector.broadcast %20 : vector<1x128xf32> to vector<256x128xf32>
    %22 = arith.addf %19, %21 : vector<256x128xf32>
    %c0_17 = arith.constant 0 : index
    %c0_18 = arith.constant 0 : index
    %23 = vector.load %arg8[%c0_17, %c0_18] : memref<256x128xf32, #tpu.memory_space<vmem>>, vector<256x128xf32>
    tpu.vector_store %arg8[%c0_17, %c0_18], %22 {strides = array<i32>} : memref<256x128xf32, #tpu.memory_space<vmem>>, vector<256x128xf32>,
    return
  }
  func.func @transform_0(%arg0: i32) -> (i32, i32) {
    %c0_i32 = arith.constant 0 : i32
    %c0_i32_0 = arith.constant 0 : i32
    return %arg0, %c0_i32 : i32, i32
  }
  func.func @transform_1(%arg0: i32) -> (i32, i32) {
    %c0_i32 = arith.constant 0 : i32
    %c0_i32_0 = arith.constant 0 : i32
    %c0_i32_1 = arith.constant 0 : i32
    return %c0_i32, %c0_i32_0 : i32, i32
  }
  func.func @transform_2(%arg0: i32) -> (i32, i32) {
    %c0_i32 = arith.constant 0 : i32
    %c0_i32_0 = arith.constant 0 : i32
    %c0_i32_1 = arith.constant 0 : i32
    return %c0_i32, %c0_i32_0 : i32, i32
  }
  func.func @transform_3(%arg0: i32) -> (i32, i32) {
    %c0_i32 = arith.constant 0 : i32
    %c0_i32_0 = arith.constant 0 : i32
    %c0_i32_1 = arith.constant 0 : i32
    return %c0_i32, %c0_i32_0 : i32, i32
  }
  func.func @transform_4(%arg0: i32) -> (i32, i32) {
    %c0_i32 = arith.constant 0 : i32
    %c0_i32_0 = arith.constant 0 : i32
    %c0_i32_1 = arith.constant 0 : i32
    return %c0_i32, %c0_i32_0 : i32, i32
  }
  func.func @transform_5(%arg0: i32) -> (i32, i32) {
    %c0_i32 = arith.constant 0 : i32
    %c0_i32_0 = arith.constant 0 : i32
    %c0_i32_1 = arith.constant 0 : i32
    return %c0_i32, %c0_i32_0 : i32, i32
  }
  func.func @transform_6(%arg0: i32) -> (i32, i32) {
    %c0_i32 = arith.constant 0 : i32
    %c0_i32_0 = arith.constant 0 : i32
    %c0_i32_1 = arith.constant 0 : i32
    return %c0_i32, %c0_i32_0 : i32, i32
  }
  func.func @transform_7(%arg0: i32) -> (i32, i32) {
    %c0_i32 = arith.constant 0 : i32
    %c0_i32_0 = arith.constant 0 : i32
    return %arg0, %c0_i32 : i32, i32
  }
}

</mosaic_0001>

<llo_original>
// kernel: mlp_forward.1
$region0: #{mlp_forward.1}
  #allocation0 [shape = 'u32[]', space=smem, size = 0x4, offset = 0x4, fixed_abs, tag = 'smem constant byte address 0x4 - core index']
  #allocation1 [shape = 'u32[144,128]{1,0:T(1,128)}', space=vmem, size = 0x12000, scoped, tag = 'internal scratch']
  %s0 = inlined_call_operand.vmem [shape: f32[256,10], index: 0, kind: input, shape index: {}]
  %s1 = inlined_call_operand.vmem [shape: bf16[10,512], index: 1, kind: input, shape index: {}]
  %s2 = inlined_call_operand.vmem [shape: f32[1,512], index: 2, kind: input, shape index: {}]
  %s3 = inlined_call_operand.hbm [shape: bf16[512,1024], index: 3, kind: input, shape index: {}]
  %s4 = inlined_call_operand.vmem [shape: f32[1,1024], index: 4, kind: input, shape index: {}]
  %s5 = inlined_call_operand.hbm [shape: bf16[1024,128], index: 5, kind: input, shape index: {}]
  %s6 = inlined_call_operand.vmem [shape: f32[1,128], index: 6, kind: input, shape index: {}]
  %s7 = inlined_call_operand.vmem [shape: f32[256,128], index: 7, kind: output, shape index: {}]
  %s8 = sld [smem:[#allocation0]]
  $region46: #{mlp_forward.1} parent=0
    _
  %s10 = ssub.s32 1, %s8
  %s11 = scalar_select 0, %s10, %s8
  $region1: #{mlp_forward.1} parent=0
    #allocation2 [shape = 'u8[1048576]{0}', space=vmem, size = 0x100000, scoped, tag = 'input window, operand 3, single buffered']
    #allocation3 [shape = 's32[1]{0}', space=sflag, size = 0x4, scoped, tag = 'scoped memory for mlp_forward.1']
    #allocation4 [shape = 'u8[262144]{0}', space=vmem, size = 0x40000, scoped, tag = 'input window, operand 5, single buffered']
    #allocation5 [shape = 's32[1]{0}', space=sflag, size = 0x4, scoped, tag = 'scoped memory for mlp_forward.1']
    %12 = vsyncpa [#allocation3], 0
    %13 = vsyncpa [#allocation5], 0
    // Predicated region
    $region2: #{mlp_forward.1} parent=1 // pred_check
      _
    $region3: #{mlp_forward.1} parent=1 // pred_check_branch
      %15 = sbr.rel (0) target = $region5
    $region4: #{mlp_forward.1} parent=1 // pred_region
      _
    $region5: #{mlp_forward.1} parent=1 // pred_fallthru
      _
    // Predicated region
    $region6: #{mlp_forward.1} parent=1 // pred_check
      _
    $region7: #{mlp_forward.1} parent=1 // pred_check_branch
      %17 = sbr.rel (0) target = $region9
    $region8: #{mlp_forward.1} parent=1 // pred_region
      _
    $region9: #{mlp_forward.1} parent=1 // pred_fallthru
      _
    // Predicated region
    $region10: #{mlp_forward.1} parent=1 // pred_check
      _
    $region11: #{mlp_forward.1} parent=1 // pred_check_branch
      %19 = sbr.rel (0) target = $region13
    $region12: #{mlp_forward.1} parent=1 // pred_region
      _
    $region13: #{mlp_forward.1} parent=1 // pred_fallthru
      _
    // Predicated region
    $region14: #{mlp_forward.1} parent=1 // pred_check
      _
    $region15: #{mlp_forward.1} parent=1 // pred_check_branch
      %21 = sbr.rel (0) target = $region17
    $region16: #{mlp_forward.1} parent=1 // pred_region
      %s23 = ssub.s32 32768, 32768
      %24 = vsyncadd [#allocation3], %s23
      %s25 = sshll.u32 [#allocation2], 4
      %s26 = int_to_ptr.vmem [resolvable:$true] %s25
      %31 = dma.hbm_to_vmem [thread:$0]  %s3, 32768, %s26, [#allocation3], 512, 512, 32
    $region17: #{mlp_forward.1} parent=1 // pred_fallthru
      _
    // Predicated region
    $region18: #{mlp_forward.1} parent=1 // pred_check
      _
    $region19: #{mlp_forward.1} parent=1 // pred_check_branch
      %33 = sbr.rel (0) target = $region21
    $region20: #{mlp_forward.1} parent=1 // pred_region
      _
    $region21: #{mlp_forward.1} parent=1 // pred_fallthru
      _
    // Predicated region
    $region22: #{mlp_forward.1} parent=1 // pred_check
      _
    $region23: #{mlp_forward.1} parent=1 // pred_check_branch
      %35 = sbr.rel (0) target = $region25
    $region24: #{mlp_forward.1} parent=1 // pred_region
      %s37 = ssub.s32 8192, 8192
      %38 = vsyncadd [#allocation5], %s37
      %s39 = sshll.u32 [#allocation4], 4
      %s40 = int_to_ptr.vmem [resolvable:$true] %s39
      %45 = dma.hbm_to_vmem [thread:$0]  %s5, 8192, %s40, [#allocation5], 64, 64, 4
    $region25: #{mlp_forward.1} parent=1 // pred_fallthru
      _
    // Predicated region
    $region26: #{mlp_forward.1} parent=1 // pred_check
      _
    $region27: #{mlp_forward.1} parent=1 // pred_check_branch
      %47 = sbr.rel (0) target = $region29
    $region28: #{mlp_forward.1} parent=1 // pred_region
      _
    $region29: #{mlp_forward.1} parent=1 // pred_fallthru
      _
    // Predicated region
    $region30: #{mlp_forward.1} parent=1 // pred_check
      _
    $region31: #{mlp_forward.1} parent=1 // pred_check_branch
      %49 = sbr.rel (0) target = $region33
    $region32: #{mlp_forward.1} parent=1 // pred_region
      %50 = dma.done [#allocation3], 32768
    $region33: #{mlp_forward.1} parent=1 // pred_fallthru
      _
    // Predicated region
    $region34: #{mlp_forward.1} parent=1 // pred_check
      _
    $region35: #{mlp_forward.1} parent=1 // pred_check_branch
      %52 = sbr.rel (0) target = $region37
    $region36: #{mlp_forward.1} parent=1 // pred_region
      %53 = dma.done [#allocation5], 8192
    $region37: #{mlp_forward.1} parent=1 // pred_fallthru
      _
    %v55 = vld [vmem:[%s0] sm:$0xff]
    %v56 = vld [vmem:[%s0 + $0x8] sm:$0xff]
    %v57 = vld [vmem:[%s0 + $0x10] sm:$0xff]
    %v58 = vld [vmem:[%s0 + $0x18] sm:$0xff]
    %v59 = vld [vmem:[%s0 + $0x20] sm:$0xff]
    %v60 = vld [vmem:[%s0 + $0x28] sm:$0xff]
    %v61 = vld [vmem:[%s0 + $0x30] sm:$0xff]
    %v62 = vld [vmem:[%s0 + $0x38] sm:$0xff]
    %v63 = vld [vmem:[%s0 + $0x40] sm:$0xff]
    %v64 = vld [vmem:[%s0 + $0x48] sm:$0xff]
    %v65 = vld [vmem:[%s0 + $0x50] sm:$0xff]
    %v66 = vld [vmem:[%s0 + $0x58] sm:$0xff]
    %v67 = vld [vmem:[%s0 + $0x60] sm:$0xff]
    %v68 = vld [vmem:[%s0 + $0x68] sm:$0xff]
    %v69 = vld [vmem:[%s0 + $0x70] sm:$0xff]
    %v70 = vld [vmem:[%s0 + $0x78] sm:$0xff]
    %v71 = vld [vmem:[%s0 + $0x80] sm:$0xff]
    %v72 = vld [vmem:[%s0 + $0x88] sm:$0xff]
    %v73 = vld [vmem:[%s0 + $0x90] sm:$0xff]
    %v74 = vld [vmem:[%s0 + $0x98] sm:$0xff]
    %v75 = vld [vmem:[%s0 + $0xa0] sm:$0xff]
    %v76 = vld [vmem:[%s0 + $0xa8] sm:$0xff]
    %v77 = vld [vmem:[%s0 + $0xb0] sm:$0xff]
    %v78 = vld [vmem:[%s0 + $0xb8] sm:$0xff]
    %v79 = vld [vmem:[%s0 + $0xc0] sm:$0xff]
    %v80 = vld [vmem:[%s0 + $0xc8] sm:$0xff]
    %v81 = vld [vmem:[%s0 + $0xd0] sm:$0xff]
    %v82 = vld [vmem:[%s0 + $0xd8] sm:$0xff]
    %v83 = vld [vmem:[%s0 + $0xe0] sm:$0xff]
    %v84 = vld [vmem:[%s0 + $0xe8] sm:$0xff]
    %v85 = vld [vmem:[%s0 + $0xf0] sm:$0xff]
    %v86 = vld [vmem:[%s0 + $0xf8] sm:$0xff]
    %v87 = vpack.c.bf16 %v56, %v55
    %v88 = vpack.c.bf16 %v58, %v57
    %v89 = vpack.c.bf16 %v60, %v59
    %v90 = vpack.c.bf16 %v62, %v61
    %v91 = vpack.c.bf16 %v64, %v63
    %v92 = vpack.c.bf16 %v66, %v65
    %v93 = vpack.c.bf16 %v68, %v67
    %v94 = vpack.c.bf16 %v70, %v69
    %v95 = vpack.c.bf16 %v72, %v71
    %v96 = vpack.c.bf16 %v74, %v73
    %v97 = vpack.c.bf16 %v76, %v75
    %v98 = vpack.c.bf16 %v78, %v77
    %v99 = vpack.c.bf16 %v80, %v79
    %v100 = vpack.c.bf16 %v82, %v81
    %v101 = vpack.c.bf16 %v84, %v83
    %v102 = vpack.c.bf16 %v86, %v85
    %v103 = vld [vmem:[%s1] sm:$0xff]
    %v104 = vld [vmem:[%s1 + $0x8] sm:$0xff]
    %v105 = vld [vmem:[%s1 + $0x10] sm:$0x11]
    %v106 = vld [vmem:[%s1 + $0x18] sm:$0x11]
    %v107 = vld [vmem:[%s2] sm:$0xf]
    %v109 = vlaneseq
    %v110 = vshrl.u32 %v109, 7
    %v111 = vsub.s32 0, %v110
    %v112 = vrot.slane %v107, %v111
    %v113 = vlaneseq
    %v114 = vshrl.u32 %v113, 7
    %v115 = vsub.s32 1, %v114
    %v116 = vrot.slane %v107, %v115
    %v117 = vlaneseq
    %v118 = vshrl.u32 %v117, 7
    %v119 = vsub.s32 2, %v118
    %v120 = vrot.slane %v107, %v119
    %v121 = vlaneseq
    %v122 = vshrl.u32 %v121, 7
    %v123 = vsub.s32 3, %v122
    %v124 = vrot.slane %v107, %v123
    %v133 = vunpack.c.l.b16 %v103
    %v134 = vunpack.c.h.b16 %v103
    %v135 = vunpack.c.l.b16 %v104
    %v136 = vunpack.c.h.b16 %v104
    %v137 = vunpack.c.l.b16 %v105
    %v138 = vunpack.c.h.b16 %v105
    %v139 = vunpack.c.l.b16 %v106
    %v140 = vunpack.c.h.b16 %v106
    %v141 = vpack.c.b16 %v137, %v133
    %v142 = vpack.c.b16 %v138, %v134
    %v143 = vpack.c.b16 %v139, %v135
    %v144 = vpack.c.b16 %v140, %v136
    %vm145 = vcmask 80896
    %v147 = vsel %vm145, %v87, 0
    %v150 = vsel %vm145, %v88, 0
    %v153 = vsel %vm145, %v89, 0
    %v156 = vsel %vm145, %v90, 0
    %v159 = vsel %vm145, %v91, 0
    %v162 = vsel %vm145, %v92, 0
    %v165 = vsel %vm145, %v93, 0
    %v168 = vsel %vm145, %v94, 0
    %v171 = vsel %vm145, %v95, 0
    %v174 = vsel %vm145, %v96, 0
    %v177 = vsel %vm145, %v97, 0
    %v180 = vsel %vm145, %v98, 0
    %v183 = vsel %vm145, %v99, 0
    %v186 = vsel %vm145, %v100, 0
    %v189 = vsel %vm145, %v101, 0
    %v192 = vsel %vm145, %v102, 0
    %vm194 = vcmask 1044480
    %v196 = vsel %vm194, %v141, 0
    %v199 = vsel %vm194, %v142, 0
    %v202 = vsel %vm194, %v143, 0
    %v205 = vsel %vm194, %v144, 0
    %207 = vmatprep.subr.bf16.mxu0 %v199
    %208 = vmatpush1.bf16.msra.mxu0 %v196
    %209 = vmatprep.subr.bf16.mxu0 0
    %210 = vmatpush1.bf16.msra.mxu0 0
    %211 = vmatprep.subr.bf16.mxu0 0
    %212 = vmatpush1.bf16.msra.mxu0 0
    %213 = vmatprep.subr.bf16.mxu0 0
    %214 = vmatpush1.bf16.msra.mxu0 0
    %215 = vmatprep.subr.bf16.mxu0 0
    %216 = vmatpush1.bf16.msra.mxu0 0
    %217 = vmatprep.subr.bf16.mxu0 0
    %218 = vmatpush1.bf16.msra.mxu0 0
    %219 = vmatprep.subr.bf16.mxu0 0
    %220 = vmatpush1.bf16.msra.mxu0 0
    %221 = vmatprep.subr.bf16.mxu0 0
    %222 = vmatpush1.bf16.msra.mxu0 0
    %223 = vmatprep.subr.bf16.mxu0 0
    %224 = vmatpush1.bf16.msra.mxu0 0
    %225 = vmatprep.subr.bf16.mxu0 0
    %226 = vmatpush1.bf16.msra.mxu0 0
    %227 = vmatprep.subr.bf16.mxu0 0
    %228 = vmatpush1.bf16.msra.mxu0 0
    %229 = vmatprep.subr.bf16.mxu0 0
    %230 = vmatpush1.bf16.msra.mxu0 0
    %231 = vmatprep.subr.bf16.mxu0 0
    %232 = vmatpush1.bf16.msra.mxu0 0
    %233 = vmatprep.subr.bf16.mxu0 0
    %234 = vmatpush1.bf16.msra.mxu0 0
    %235 = vmatprep.subr.bf16.mxu0 0
    %236 = vmatpush1.bf16.msra.mxu0 0
    %237 = vmatprep.subr.bf16.mxu0 0
    %238 = vmatpush1.bf16.msra.mxu0 0
    %239 = vmatprep.mubr.bf16.mxu0 0
    %240 = vmatmul.mubr.bf16.gmra.mrb[0].mxu0 %v147
    %v241 = vpop.f32.mrb[0].mxu0
    %v242 = vadd.f32 %v112, %v241
    %v243 = vpop.f32.mrb[0].mxu0
    %v244 = vadd.f32 %v116, %v243
    %v245 = vpop.f32.mrb[0].mxu0
    %v246 = vadd.f32 %v112, %v245
    %v247 = vpop.f32.mrb[0].mxu0
    %v248 = vadd.f32 %v116, %v247
    %249 = vmatprep.mubr.bf16.mxu0 0
    %250 = vmatmul.mubr.bf16.gmra.mrb[0].mxu0 %v150
    %v251 = vpop.f32.mrb[0].mxu0
    %v252 = vadd.f32 %v112, %v251
    %v253 = vpop.f32.mrb[0].mxu0
    %v254 = vadd.f32 %v116, %v253
    %v255 = vpop.f32.mrb[0].mxu0
    %v256 = vadd.f32 %v112, %v255
    %v257 = vpop.f32.mrb[0].mxu0
    %v258 = vadd.f32 %v116, %v257
    %259 = vmatprep.mubr.bf16.mxu0 0
    %260 = vmatmul.mubr.bf16.gmra.mrb[0].mxu0 %v153
    %v261 = vpop.f32.mrb[0].mxu0
    %v262 = vadd.f32 %v112, %v261
    %v263 = vpop.f32.mrb[0].mxu0
    %v264 = vadd.f32 %v116, %v263
    %v265 = vpop.f32.mrb[0].mxu0
    %v266 = vadd.f32 %v112, %v265
    %v267 = vpop.f32.mrb[0].mxu0
    %v268 = vadd.f32 %v116, %v267
    %269 = vmatprep.mubr.bf16.mxu0 0
    %270 = vmatmul.mubr.bf16.gmra.mrb[0].mxu0 %v156
    %v271 = vpop.f32.mrb[0].mxu0
    %v272 = vadd.f32 %v112, %v271
    %v273 = vpop.f32.mrb[0].mxu0
    %v274 = vadd.f32 %v116, %v273
    %v275 = vpop.f32.mrb[0].mxu0
    %v276 = vadd.f32 %v112, %v275
    %v277 = vpop.f32.mrb[0].mxu0
    %v278 = vadd.f32 %v116, %v277
    %279 = vmatprep.mubr.bf16.mxu0 0
    %280 = vmatmul.mubr.bf16.gmra.mrb[0].mxu0 %v159
    %v281 = vpop.f32.mrb[0].mxu0
    %v282 = vadd.f32 %v112, %v281
    %v283 = vpop.f32.mrb[0].mxu0
    %v284 = vadd.f32 %v116, %v283
    %v285 = vpop.f32.mrb[0].mxu0
    %v286 = vadd.f32 %v112, %v285
    %v287 = vpop.f32.mrb[0].mxu0
    %v288 = vadd.f32 %v116, %v287
    %289 = vmatprep.mubr.bf16.mxu0 0
    %290 = vmatmul.mubr.bf16.gmra.mrb[0].mxu0 %v162
    %v291 = vpop.f32.mrb[0].mxu0
    %v292 = vadd.f32 %v112, %v291
    %v293 = vpop.f32.mrb[0].mxu0
    %v294 = vadd.f32 %v116, %v293
    %v295 = vpop.f32.mrb[0].mxu0
    %v296 = vadd.f32 %v112, %v295
    %v297 = vpop.f32.mrb[0].mxu0
    %v298 = vadd.f32 %v116, %v297
    %299 = vmatprep.mubr.bf16.mxu0 0
    %300 = vmatmul.mubr.bf16.gmra.mrb[0].mxu0 %v165
    %v301 = vpop.f32.mrb[0].mxu0
    %v302 = vadd.f32 %v112, %v301
    %v303 = vpop.f32.mrb[0].mxu0
    %v304 = vadd.f32 %v116, %v303
    %v305 = vpop.f32.mrb[0].mxu0
    %v306 = vadd.f32 %v112, %v305
    %v307 = vpop.f32.mrb[0].mxu0
    %v308 = vadd.f32 %v116, %v307
    %309 = vmatprep.mubr.bf16.mxu0 0
    %310 = vmatmul.mubr.bf16.gmra.mrb[0].mxu0 %v168
    %v311 = vpop.f32.mrb[0].mxu0
    %v312 = vadd.f32 %v112, %v311
    %v313 = vpop.f32.mrb[0].mxu0
    %v314 = vadd.f32 %v116, %v313
    %v315 = vpop.f32.mrb[0].mxu0
    %v316 = vadd.f32 %v112, %v315
    %v317 = vpop.f32.mrb[0].mxu0
    %v318 = vadd.f32 %v116, %v317
    %319 = vmatprep.mubr.bf16.mxu0 0
    %320 = vmatmul.mubr.bf16.gmra.mrb[0].mxu0 %v171
    %v321 = vpop.f32.mrb[0].mxu0
    %v322 = vadd.f32 %v112, %v321
    %v323 = vpop.f32.mrb[0].mxu0
    %v324 = vadd.f32 %v116, %v323
    %v325 = vpop.f32.mrb[0].mxu0
    %v326 = vadd.f32 %v112, %v325
    %v327 = vpop.f32.mrb[0].mxu0
    %v328 = vadd.f32 %v116, %v327
    %329 = vmatprep.mubr.bf16.mxu0 0
    %330 = vmatmul.mubr.bf16.gmra.mrb[0].mxu0 %v174
    %v331 = vpop.f32.mrb[0].mxu0
    %v332 = vadd.f32 %v112, %v331
    %v333 = vpop.f32.mrb[0].mxu0
    %v334 = vadd.f32 %v116, %v333
    %v335 = vpop.f32.mrb[0].mxu0
    %v336 = vadd.f32 %v112, %v335
    %v337 = vpop.f32.mrb[0].mxu0
    %v338 = vadd.f32 %v116, %v337
    %339 = vmatprep.mubr.bf16.mxu0 0
    %340 = vmatmul.mubr.bf16.gmra.mrb[0].mxu0 %v177
    %v341 = vpop.f32.mrb[0].mxu0
    %v342 = vadd.f32 %v112, %v341
    %v343 = vpop.f32.mrb[0].mxu0
    %v344 = vadd.f32 %v116, %v343
    %v345 = vpop.f32.mrb[0].mxu0
    %v346 = vadd.f32 %v112, %v345
    %v347 = vpop.f32.mrb[0].mxu0
    %v348 = vadd.f32 %v116, %v347
    %349 = vmatprep.mubr.bf16.mxu0 0
    %350 = vmatmul.mubr.bf16.gmra.mrb[0].mxu0 %v180
    %v351 = vpop.f32.mrb[0].mxu0
    %v352 = vadd.f32 %v112, %v351
    %v353 = vpop.f32.mrb[0].mxu0
    %v354 = vadd.f32 %v116, %v353
    %v355 = vpop.f32.mrb[0].mxu0
    %v356 = vadd.f32 %v112, %v355
    %v357 = vpop.f32.mrb[0].mxu0
    %v358 = vadd.f32 %v116, %v357
    %359 = vmatprep.mubr.bf16.mxu0 0
    %360 = vmatmul.mubr.bf16.gmra.mrb[0].mxu0 %v183
    %v361 = vpop.f32.mrb[0].mxu0
    %v362 = vadd.f32 %v112, %v361
    %v363 = vpop.f32.mrb[0].mxu0
    %v364 = vadd.f32 %v116, %v363
    %v365 = vpop.f32.mrb[0].mxu0
    %v366 = vadd.f32 %v112, %v365
    %v367 = vpop.f32.mrb[0].mxu0
    %v368 = vadd.f32 %v116, %v367
    %369 = vmatprep.mubr.bf16.mxu0 0
    %370 = vmatmul.mubr.bf16.gmra.mrb[0].mxu0 %v186
    %v371 = vpop.f32.mrb[0].mxu0
    %v372 = vadd.f32 %v112, %v371
    %v373 = vpop.f32.mrb[0].mxu0
    %v374 = vadd.f32 %v116, %v373
    %v375 = vpop.f32.mrb[0].mxu0
    %v376 = vadd.f32 %v112, %v375
    %v377 = vpop.f32.mrb[0].mxu0
    %v378 = vadd.f32 %v116, %v377
    %379 = vmatprep.mubr.bf16.mxu0 0
    %380 = vmatmul.mubr.bf16.gmra.mrb[0].mxu0 %v189
    %v381 = vpop.f32.mrb[0].mxu0
    %v382 = vadd.f32 %v112, %v381
    %v383 = vpop.f32.mrb[0].mxu0
    %v384 = vadd.f32 %v116, %v383
    %v385 = vpop.f32.mrb[0].mxu0
    %v386 = vadd.f32 %v112, %v385
    %v387 = vpop.f32.mrb[0].mxu0
    %v388 = vadd.f32 %v116, %v387
    %389 = vmatprep.mubr.bf16.mxu0 0
    %390 = vmatmul.mubr.bf16.gmra.mrb[0].mxu0 %v192
    %v391 = vpop.f32.mrb[0].mxu0
    %v392 = vadd.f32 %v112, %v391
    %v393 = vpop.f32.mrb[0].mxu0
    %v394 = vadd.f32 %v116, %v393
    %v395 = vpop.f32.mrb[0].mxu0
    %v396 = vadd.f32 %v112, %v395
    %v397 = vpop.f32.mrb[0].mxu0
    %v398 = vadd.f32 %v116, %v397
    %399 = vdwg.mxu0
    %400 = vmatprep.subr.bf16.mxu0 %v205
    %401 = vmatpush1.bf16.msra.mxu0 %v202
    %402 = vmatprep.subr.bf16.mxu0 0
    %403 = vmatpush1.bf16.msra.mxu0 0
    %404 = vmatprep.subr.bf16.mxu0 0
    %405 = vmatpush1.bf16.msra.mxu0 0
    %406 = vmatprep.subr.bf16.mxu0 0
    %407 = vmatpush1.bf16.msra.mxu0 0
    %408 = vmatprep.subr.bf16.mxu0 0
    %409 = vmatpush1.bf16.msra.mxu0 0
    %410 = vmatprep.subr.bf16.mxu0 0
    %411 = vmatpush1.bf16.msra.mxu0 0
    %412 = vmatprep.subr.bf16.mxu0 0
    %413 = vmatpush1.bf16.msra.mxu0 0
    %414 = vmatprep.subr.bf16.mxu0 0
    %415 = vmatpush1.bf16.msra.mxu0 0
    %416 = vmatprep.subr.bf16.mxu0 0
    %417 = vmatpush1.bf16.msra.mxu0 0
    %418 = vmatprep.subr.bf16.mxu0 0
    %419 = vmatpush1.bf16.msra.mxu0 0
    %420 = vmatprep.subr.bf16.mxu0 0
    %421 = vmatpush1.bf16.msra.mxu0 0
    %422 = vmatprep.subr.bf16.mxu0 0
    %423 = vmatpush1.bf16.msra.mxu0 0
    %424 = vmatprep.subr.bf16.mxu0 0
    %425 = vmatpush1.bf16.msra.mxu0 0
    %426 = vmatprep.subr.bf16.mxu0 0
    %427 = vmatpush1.bf16.msra.mxu0 0
    %428 = vmatprep.subr.bf16.mxu0 0
    %429 = vmatpush1.bf16.msra.mxu0 0
    %430 = vmatprep.subr.bf16.mxu0 0
    %431 = vmatpush1.bf16.msra.mxu0 0
    %432 = vmatprep.mubr.bf16.mxu0 0
    %433 = vmatmul.mubr.bf16.gmra.mrb[0].mxu0 %v147
    %v434 = vpop.f32.mrb[0].mxu0
    %v435 = vadd.f32 %v120, %v434
    %v436 = vpop.f32.mrb[0].mxu0
    %v437 = vadd.f32 %v124, %v436
    %v438 = vpop.f32.mrb[0].mxu0
    %v439 = vadd.f32 %v120, %v438
    %v440 = vpop.f32.mrb[0].mxu0
    %v441 = vadd.f32 %v124, %v440
    %442 = vmatprep.mubr.bf16.mxu0 0
    %443 = vmatmul.mubr.bf16.gmra.mrb[0].mxu0 %v150
    %v444 = vpop.f32.mrb[0].mxu0
    %v445 = vadd.f32 %v120, %v444
    %v446 = vpop.f32.mrb[0].mxu0
    %v447 = vadd.f32 %v124, %v446
    %v448 = vpop.f32.mrb[0].mxu0
    %v449 = vadd.f32 %v120, %v448
    %v450 = vpop.f32.mrb[0].mxu0
    %v451 = vadd.f32 %v124, %v450
    %452 = vmatprep.mubr.bf16.mxu0 0
    %453 = vmatmul.mubr.bf16.gmra.mrb[0].mxu0 %v153
    %v454 = vpop.f32.mrb[0].mxu0
    %v455 = vadd.f32 %v120, %v454
    %v456 = vpop.f32.mrb[0].mxu0
    %v457 = vadd.f32 %v124, %v456
    %v458 = vpop.f32.mrb[0].mxu0
    %v459 = vadd.f32 %v120, %v458
    %v460 = vpop.f32.mrb[0].mxu0
    %v461 = vadd.f32 %v124, %v460
    %462 = vmatprep.mubr.bf16.mxu0 0
    %463 = vmatmul.mubr.bf16.gmra.mrb[0].mxu0 %v156
    %v464 = vpop.f32.mrb[0].mxu0
    %v465 = vadd.f32 %v120, %v464
    %v466 = vpop.f32.mrb[0].mxu0
    %v467 = vadd.f32 %v124, %v466
    %v468 = vpop.f32.mrb[0].mxu0
    %v469 = vadd.f32 %v120, %v468
    %v470 = vpop.f32.mrb[0].mxu0
    %v471 = vadd.f32 %v124, %v470
    %472 = vmatprep.mubr.bf16.mxu0 0
    %473 = vmatmul.mubr.bf16.gmra.mrb[0].mxu0 %v159
    %v474 = vpop.f32.mrb[0].mxu0
    %v475 = vadd.f32 %v120, %v474
    %v476 = vpop.f32.mrb[0].mxu0
    %v477 = vadd.f32 %v124, %v476
    %v478 = vpop.f32.mrb[0].mxu0
    %v479 = vadd.f32 %v120, %v478
    %v480 = vpop.f32.mrb[0].mxu0
    %v481 = vadd.f32 %v124, %v480
    %482 = vmatprep.mubr.bf16.mxu0 0
    %483 = vmatmul.mubr.bf16.gmra.mrb[0].mxu0 %v162
    %v484 = vpop.f32.mrb[0].mxu0
    %v485 = vadd.f32 %v120, %v484
    %v486 = vpop.f32.mrb[0].mxu0
    %v487 = vadd.f32 %v124, %v486
    %v488 = vpop.f32.mrb[0].mxu0
    %v489 = vadd.f32 %v120, %v488
    %v490 = vpop.f32.mrb[0].mxu0
    %v491 = vadd.f32 %v124, %v490
    %492 = vmatprep.mubr.bf16.mxu0 0
    %493 = vmatmul.mubr.bf16.gmra.mrb[0].mxu0 %v165
    %v494 = vpop.f32.mrb[0].mxu0
    %v495 = vadd.f32 %v120, %v494
    %v496 = vpop.f32.mrb[0].mxu0
    %v497 = vadd.f32 %v124, %v496
    %v498 = vpop.f32.mrb[0].mxu0
    %v499 = vadd.f32 %v120, %v498
    %v500 = vpop.f32.mrb[0].mxu0
    %v501 = vadd.f32 %v124, %v500
    %502 = vmatprep.mubr.bf16.mxu0 0
    %503 = vmatmul.mubr.bf16.gmra.mrb[0].mxu0 %v168
    %v504 = vpop.f32.mrb[0].mxu0
    %v505 = vadd.f32 %v120, %v504
    %v506 = vpop.f32.mrb[0].mxu0
    %v507 = vadd.f32 %v124, %v506
    %v508 = vpop.f32.mrb[0].mxu0
    %v509 = vadd.f32 %v120, %v508
    %v510 = vpop.f32.mrb[0].mxu0
    %v511 = vadd.f32 %v124, %v510
    %512 = vmatprep.mubr.bf16.mxu0 0
    %513 = vmatmul.mubr.bf16.gmra.mrb[0].mxu0 %v171
    %v514 = vpop.f32.mrb[0].mxu0
    %v515 = vadd.f32 %v120, %v514
    %v516 = vpop.f32.mrb[0].mxu0
    %v517 = vadd.f32 %v124, %v516
    %v518 = vpop.f32.mrb[0].mxu0
    %v519 = vadd.f32 %v120, %v518
    %v520 = vpop.f32.mrb[0].mxu0
    %v521 = vadd.f32 %v124, %v520
    %522 = vmatprep.mubr.bf16.mxu0 0
    %523 = vmatmul.mubr.bf16.gmra.mrb[0].mxu0 %v174
    %v524 = vpop.f32.mrb[0].mxu0
    %v525 = vadd.f32 %v120, %v524
    %v526 = vpop.f32.mrb[0].mxu0
    %v527 = vadd.f32 %v124, %v526
    %v528 = vpop.f32.mrb[0].mxu0
    %v529 = vadd.f32 %v120, %v528
    %v530 = vpop.f32.mrb[0].mxu0
    %v531 = vadd.f32 %v124, %v530
    %532 = vmatprep.mubr.bf16.mxu0 0
    %533 = vmatmul.mubr.bf16.gmra.mrb[0].mxu0 %v177
    %v534 = vpop.f32.mrb[0].mxu0
    %v535 = vadd.f32 %v120, %v534
    %v536 = vpop.f32.mrb[0].mxu0
    %v537 = vadd.f32 %v124, %v536
    %v538 = vpop.f32.mrb[0].mxu0
    %v539 = vadd.f32 %v120, %v538
    %v540 = vpop.f32.mrb[0].mxu0
    %v541 = vadd.f32 %v124, %v540
    %542 = vmatprep.mubr.bf16.mxu0 0
    %543 = vmatmul.mubr.bf16.gmra.mrb[0].mxu0 %v180
    %v544 = vpop.f32.mrb[0].mxu0
    %v545 = vadd.f32 %v120, %v544
    %v546 = vpop.f32.mrb[0].mxu0
    %v547 = vadd.f32 %v124, %v546
    %v548 = vpop.f32.mrb[0].mxu0
    %v549 = vadd.f32 %v120, %v548
    %v550 = vpop.f32.mrb[0].mxu0
    %v551 = vadd.f32 %v124, %v550
    %552 = vmatprep.mubr.bf16.mxu0 0
    %553 = vmatmul.mubr.bf16.gmra.mrb[0].mxu0 %v183
    %v554 = vpop.f32.mrb[0].mxu0
    %v555 = vadd.f32 %v120, %v554
    %v556 = vpop.f32.mrb[0].mxu0
    %v557 = vadd.f32 %v124, %v556
    %v558 = vpop.f32.mrb[0].mxu0
    %v559 = vadd.f32 %v120, %v558
    %v560 = vpop.f32.mrb[0].mxu0
    %v561 = vadd.f32 %v124, %v560
    %562 = vmatprep.mubr.bf16.mxu0 0
    %563 = vmatmul.mubr.bf16.gmra.mrb[0].mxu0 %v186
    %v564 = vpop.f32.mrb[0].mxu0
    %v565 = vadd.f32 %v120, %v564
    %v566 = vpop.f32.mrb[0].mxu0
    %v567 = vadd.f32 %v124, %v566
    %v568 = vpop.f32.mrb[0].mxu0
    %v569 = vadd.f32 %v120, %v568
    %v570 = vpop.f32.mrb[0].mxu0
    %v571 = vadd.f32 %v124, %v570
    %572 = vmatprep.mubr.bf16.mxu0 0
    %573 = vmatmul.mubr.bf16.gmra.mrb[0].mxu0 %v189
    %v574 = vpop.f32.mrb[0].mxu0
    %v575 = vadd.f32 %v120, %v574
    %v576 = vpop.f32.mrb[0].mxu0
    %v577 = vadd.f32 %v124, %v576
    %v578 = vpop.f32.mrb[0].mxu0
    %v579 = vadd.f32 %v120, %v578
    %v580 = vpop.f32.mrb[0].mxu0
    %v581 = vadd.f32 %v124, %v580
    %582 = vmatprep.mubr.bf16.mxu0 0
    %583 = vmatmul.mubr.bf16.gmra.mrb[0].mxu0 %v192
    %v584 = vpop.f32.mrb[0].mxu0
    %v585 = vadd.f32 %v120, %v584
    %v586 = vpop.f32.mrb[0].mxu0
    %v587 = vadd.f32 %v124, %v586
    %v588 = vpop.f32.mrb[0].mxu0
    %v589 = vadd.f32 %v120, %v588
    %v590 = vpop.f32.mrb[0].mxu0
    %v591 = vadd.f32 %v124, %v590
    %592 = vdwg.mxu0
    %v593 = vmax.f32 %v242, 0.0
    %v594 = vmax.f32 %v244, 0.0
    %v595 = vmax.f32 %v435, 0.0
    %v596 = vmax.f32 %v437, 0.0
    %v597 = vmax.f32 %v246, 0.0
    %v598 = vmax.f32 %v248, 0.0
    %v599 = vmax.f32 %v439, 0.0
    %v600 = vmax.f32 %v441, 0.0
    %v601 = vmax.f32 %v252, 0.0
    %v602 = vmax.f32 %v254, 0.0
    %v603 = vmax.f32 %v445, 0.0
    %v604 = vmax.f32 %v447, 0.0
    %v605 = vmax.f32 %v256, 0.0
    %v606 = vmax.f32 %v258, 0.0
    %v607 = vmax.f32 %v449, 0.0
    %v608 = vmax.f32 %v451, 0.0
    %v609 = vmax.f32 %v262, 0.0
    %v610 = vmax.f32 %v264, 0.0
    %v611 = vmax.f32 %v455, 0.0
    %v612 = vmax.f32 %v457, 0.0
    %v613 = vmax.f32 %v266, 0.0
    %v614 = vmax.f32 %v268, 0.0
    %v615 = vmax.f32 %v459, 0.0
    %v616 = vmax.f32 %v461, 0.0
    %v617 = vmax.f32 %v272, 0.0
    %v618 = vmax.f32 %v274, 0.0
    %v619 = vmax.f32 %v465, 0.0
    %v620 = vmax.f32 %v467, 0.0
    %v621 = vmax.f32 %v276, 0.0
    %v622 = vmax.f32 %v278, 0.0
    %v623 = vmax.f32 %v469, 0.0
    %v624 = vmax.f32 %v471, 0.0
    %v625 = vmax.f32 %v282, 0.0
    %v626 = vmax.f32 %v284, 0.0
    %v627 = vmax.f32 %v475, 0.0
    %v628 = vmax.f32 %v477, 0.0
    %v629 = vmax.f32 %v286, 0.0
    %v630 = vmax.f32 %v288, 0.0
    %v631 = vmax.f32 %v479, 0.0
    %v632 = vmax.f32 %v481, 0.0
    %v633 = vmax.f32 %v292, 0.0
    %v634 = vmax.f32 %v294, 0.0
    %v635 = vmax.f32 %v485, 0.0
    %v636 = vmax.f32 %v487, 0.0
    %v637 = vmax.f32 %v296, 0.0
    %v638 = vmax.f32 %v298, 0.0
    %v639 = vmax.f32 %v489, 0.0
    %v640 = vmax.f32 %v491, 0.0
    %v641 = vmax.f32 %v302, 0.0
    %v642 = vmax.f32 %v304, 0.0
    %v643 = vmax.f32 %v495, 0.0
    %v644 = vmax.f32 %v497, 0.0
    %v645 = vmax.f32 %v306, 0.0
    %v646 = vmax.f32 %v308, 0.0
    %v647 = vmax.f32 %v499, 0.0
    %v648 = vmax.f32 %v501, 0.0
    %v649 = vmax.f32 %v312, 0.0
    %v650 = vmax.f32 %v314, 0.0
    %v651 = vmax.f32 %v505, 0.0
    %v652 = vmax.f32 %v507, 0.0
    %v653 = vmax.f32 %v316, 0.0
    %v654 = vmax.f32 %v318, 0.0
    %v655 = vmax.f32 %v509, 0.0
    %v656 = vmax.f32 %v511, 0.0
    %v657 = vmax.f32 %v322, 0.0
    %v658 = vmax.f32 %v324, 0.0
    %v659 = vmax.f32 %v515, 0.0
    %v660 = vmax.f32 %v517, 0.0
    %v661 = vmax.f32 %v326, 0.0
    %v662 = vmax.f32 %v328, 0.0
    %v663 = vmax.f32 %v519, 0.0
    %v664 = vmax.f32 %v521, 0.0
    %v665 = vmax.f32 %v332, 0.0
    %v666 = vmax.f32 %v334, 0.0
    %v667 = vmax.f32 %v525, 0.0
    %v668 = vmax.f32 %v527, 0.0
    %v669 = vmax.f32 %v336, 0.0
    %v670 = vmax.f32 %v338, 0.0
    %v671 = vmax.f32 %v529, 0.0
    %v672 = vmax.f32 %v531, 0.0
    %v673 = vmax.f32 %v342, 0.0
    %v674 = vmax.f32 %v344, 0.0
    %v675 = vmax.f32 %v535, 0.0
    %v676 = vmax.f32 %v537, 0.0
    %v677 = vmax.f32 %v346, 0.0
    %v678 = vmax.f32 %v348, 0.0
    %v679 = vmax.f32 %v539, 0.0
    %v680 = vmax.f32 %v541, 0.0
    %v681 = vmax.f32 %v352, 0.0
    %v682 = vmax.f32 %v354, 0.0
    %v683 = vmax.f32 %v545, 0.0
    %v684 = vmax.f32 %v547, 0.0
    %v685 = vmax.f32 %v356, 0.0
    %v686 = vmax.f32 %v358, 0.0
    %v687 = vmax.f32 %v549, 0.0
    %v688 = vmax.f32 %v551, 0.0
    %v689 = vmax.f32 %v362, 0.0
    %v690 = vmax.f32 %v364, 0.0
    %v691 = vmax.f32 %v555, 0.0
    %v692 = vmax.f32 %v557, 0.0
    %v693 = vmax.f32 %v366, 0.0
    %v694 = vmax.f32 %v368, 0.0
    %v695 = vmax.f32 %v559, 0.0
    %v696 = vmax.f32 %v561, 0.0
    %v697 = vmax.f32 %v372, 0.0
    %v698 = vmax.f32 %v374, 0.0
    %v699 = vmax.f32 %v565, 0.0
    %v700 = vmax.f32 %v567, 0.0
    %v701 = vmax.f32 %v376, 0.0
    %v702 = vmax.f32 %v378, 0.0
    %v703 = vmax.f32 %v569, 0.0
    %v704 = vmax.f32 %v571, 0.0
    %v705 = vmax.f32 %v382, 0.0
    %v706 = vmax.f32 %v384, 0.0
    %v707 = vmax.f32 %v575, 0.0
    %v708 = vmax.f32 %v577, 0.0
    %v709 = vmax.f32 %v386, 0.0
    %v710 = vmax.f32 %v388, 0.0
    %v711 = vmax.f32 %v579, 0.0
    %v712 = vmax.f32 %v581, 0.0
    %v713 = vmax.f32 %v392, 0.0
    %v714 = vmax.f32 %v394, 0.0
    %v715 = vmax.f32 %v585, 0.0
    %v716 = vmax.f32 %v587, 0.0
    %v717 = vmax.f32 %v396, 0.0
    %v718 = vmax.f32 %v398, 0.0
    %v719 = vmax.f32 %v589, 0.0
    %v720 = vmax.f32 %v591, 0.0
    %v721 = vpack.c.bf16 %v597, %v593
    %v722 = vpack.c.bf16 %v598, %v594
    %v723 = vpack.c.bf16 %v599, %v595
    %v724 = vpack.c.bf16 %v600, %v596
    %v725 = vpack.c.bf16 %v605, %v601
    %v726 = vpack.c.bf16 %v606, %v602
    %v727 = vpack.c.bf16 %v607, %v603
    %v728 = vpack.c.bf16 %v608, %v604
    %v729 = vpack.c.bf16 %v613, %v609
    %v730 = vpack.c.bf16 %v614, %v610
    %v731 = vpack.c.bf16 %v615, %v611
    %v732 = vpack.c.bf16 %v616, %v612
    %v733 = vpack.c.bf16 %v621, %v617
    %v734 = vpack.c.bf16 %v622, %v618
    %v735 = vpack.c.bf16 %v623, %v619
    %v736 = vpack.c.bf16 %v624, %v620
    %v737 = vpack.c.bf16 %v629, %v625
    %v738 = vpack.c.bf16 %v630, %v626
    %v739 = vpack.c.bf16 %v631, %v627
    %v740 = vpack.c.bf16 %v632, %v628
    %v741 = vpack.c.bf16 %v637, %v633
    %v742 = vpack.c.bf16 %v638, %v634
    %v743 = vpack.c.bf16 %v639, %v635
    %v744 = vpack.c.bf16 %v640, %v636
    %v745 = vpack.c.bf16 %v645, %v641
    %v746 = vpack.c.bf16 %v646, %v642
    %v747 = vpack.c.bf16 %v647, %v643
    %v748 = vpack.c.bf16 %v648, %v644
    %v749 = vpack.c.bf16 %v653, %v649
    %v750 = vpack.c.bf16 %v654, %v650
    %v751 = vpack.c.bf16 %v655, %v651
    %v752 = vpack.c.bf16 %v656, %v652
    %v753 = vpack.c.bf16 %v661, %v657
    %v754 = vpack.c.bf16 %v662, %v658
    %v755 = vpack.c.bf16 %v663, %v659
    %v756 = vpack.c.bf16 %v664, %v660
    %v757 = vpack.c.bf16 %v669, %v665
    %v758 = vpack.c.bf16 %v670, %v666
    %v759 = vpack.c.bf16 %v671, %v667
    %v760 = vpack.c.bf16 %v672, %v668
    %v761 = vpack.c.bf16 %v677, %v673
    %v762 = vpack.c.bf16 %v678, %v674
    %v763 = vpack.c.bf16 %v679, %v675
    %v764 = vpack.c.bf16 %v680, %v676
    %v765 = vpack.c.bf16 %v685, %v681
    %v766 = vpack.c.bf16 %v686, %v682
    %v767 = vpack.c.bf16 %v687, %v683
    %v768 = vpack.c.bf16 %v688, %v684
    %v769 = vpack.c.bf16 %v693, %v689
    %v770 = vpack.c.bf16 %v694, %v690
    %v771 = vpack.c.bf16 %v695, %v691
    %v772 = vpack.c.bf16 %v696, %v692
    %v773 = vpack.c.bf16 %v701, %v697
    %v774 = vpack.c.bf16 %v702, %v698
    %v775 = vpack.c.bf16 %v703, %v699
    %v776 = vpack.c.bf16 %v704, %v700
    %v777 = vpack.c.bf16 %v709, %v705
    %v778 = vpack.c.bf16 %v710, %v706
    %v779 = vpack.c.bf16 %v711, %v707
    %v780 = vpack.c.bf16 %v712, %v708
    %v781 = vpack.c.bf16 %v717, %v713
    %v782 = vpack.c.bf16 %v718, %v714
    %v783 = vpack.c.bf16 %v719, %v715
    %v784 = vpack.c.bf16 %v720, %v716
    %v785 = vld [vmem:[#allocation2] sm:$0xff]
    %v786 = vld [vmem:[#allocation2 + $0x8] sm:$0xff]
    %v787 = vld [vmem:[#allocation2 + $0x10] sm:$0xff]
    %v788 = vld [vmem:[#allocation2 + $0x18] sm:$0xff]
    %v789 = vld [vmem:[#allocation2 + $0x20] sm:$0xff]
    %v790 = vld [vmem:[#allocation2 + $0x28] sm:$0xff]
    %v791 = vld [vmem:[#allocation2 + $0x30] sm:$0xff]
    %v792 = vld [vmem:[#allocation2 + $0x38] sm:$0xff]
    %v793 = vld [vmem:[#allocation2 + $0x40] sm:$0xff]
    %v794 = vld [vmem:[#allocation2 + $0x48] sm:$0xff]
    %v795 = vld [vmem:[#allocation2 + $0x50] sm:$0xff]
    %v796 = vld [vmem:[#allocation2 + $0x58] sm:$0xff]
    %v797 = vld [vmem:[#allocation2 + $0x60] sm:$0xff]
    %v798 = vld [vmem:[#allocation2 + $0x68] sm:$0xff]
    %v799 = vld [vmem:[#allocation2 + $0x70] sm:$0xff]
    %v800 = vld [vmem:[#allocation2 + $0x78] sm:$0xff]
    %v801 = vld [vmem:[#allocation2 + $0x80] sm:$0xff]
    %v802 = vld [vmem:[#allocation2 + $0x88] sm:$0xff]
    %v803 = vld [vmem:[#allocation2 + $0x90] sm:$0xff]
    %v804 = vld [vmem:[#allocation2 + $0x98] sm:$0xff]
    %v805 = vld [vmem:[#allocation2 + $0xa0] sm:$0xff]
    %v806 = vld [vmem:[#allocation2 + $0xa8] sm:$0xff]
    %v807 = vld [vmem:[#allocation2 + $0xb0] sm:$0xff]
    %v808 = vld [vmem:[#allocation2 + $0xb8] sm:$0xff]
    %v809 = vld [vmem:[#allocation2 + $0xc0] sm:$0xff]
    %v810 = vld [vmem:[#allocation2 + $0xc8] sm:$0xff]
    %v811 = vld [vmem:[#allocation2 + $0xd0] sm:$0xff]
    %v812 = vld [vmem:[#allocation2 + $0xd8] sm:$0xff]
    %v813 = vld [vmem:[#allocation2 + $0xe0] sm:$0xff]
    %v814 = vld [vmem:[#allocation2 + $0xe8] sm:$0xff]
    %v815 = vld [vmem:[#allocation2 + $0xf0] sm:$0xff]
    %v816 = vld [vmem:[#allocation2 + $0xf8] sm:$0xff]
    %v817 = vld [vmem:[#allocation2 + $0x100] sm:$0xff]
    %v818 = vld [vmem:[#allocation2 + $0x108] sm:$0xff]
    %v819 = vld [vmem:[#allocation2 + $0x110] sm:$0xff]
    %v820 = vld [vmem:[#allocation2 + $0x118] sm:$0xff]
    %v821 = vld [vmem:[#allocation2 + $0x120] sm:$0xff]
    %v822 = vld [vmem:[#allocation2 + $0x128] sm:$0xff]
    %v823 = vld [vmem:[#allocation2 + $0x130] sm:$0xff]
    %v824 = vld [vmem:[#allocation2 + $0x138] sm:$0xff]
    %v825 = vld [vmem:[#allocation2 + $0x140] sm:$0xff]
    %v826 = vld [vmem:[#allocation2 + $0x148] sm:$0xff]
    %v827 = vld [vmem:[#allocation2 + $0x150] sm:$0xff]
    %v828 = vld [vmem:[#allocation2 + $0x158] sm:$0xff]
    %v829 = vld [vmem:[#allocation2 + $0x160] sm:$0xff]
    %v830 = vld [vmem:[#allocation2 + $0x168] sm:$0xff]
    %v831 = vld [vmem:[#allocation2 + $0x170] sm:$0xff]
    %v832 = vld [vmem:[#allocation2 + $0x178] sm:$0xff]
    %v833 = vld [vmem:[#allocation2 + $0x180] sm:$0xff]
    %v834 = vld [vmem:[#allocation2 + $0x188] sm:$0xff]
    %v835 = vld [vmem:[#allocation2 + $0x190] sm:$0xff]
    %v836 = vld [vmem:[#allocation2 + $0x198] sm:$0xff]
    %v837 = vld [vmem:[#allocation2 + $0x1a0] sm:$0xff]
    %v838 = vld [vmem:[#allocation2 + $0x1a8] sm:$0xff]
    %v839 = vld [vmem:[#allocation2 + $0x1b0] sm:$0xff]
    %v840 = vld [vmem:[#allocation2 + $0x1b8] sm:$0xff]
    %v841 = vld [vmem:[#allocation2 + $0x1c0] sm:$0xff]
    %v842 = vld [vmem:[#allocation2 + $0x1c8] sm:$0xff]
    %v843 = vld [vmem:[#allocation2 + $0x1d0] sm:$0xff]
    %v844 = vld [vmem:[#allocation2 + $0x1d8] sm:$0xff]
    %v845 = vld [vmem:[#allocation2 + $0x1e0] sm:$0xff]
    %v846 = vld [vmem:[#allocation2 + $0x1e8] sm:$0xff]
    %v847 = vld [vmem:[#allocation2 + $0x1f0] sm:$0xff]
    %v848 = vld [vmem:[#allocation2 + $0x1f8] sm:$0xff]
    %v849 = vld [vmem:[#allocation2 + $0x200] sm:$0xff]
    %v850 = vld [vmem:[#allocation2 + $0x208] sm:$0xff]
    %v851 = vld [vmem:[#allocation2 + $0x210] sm:$0xff]
    %v852 = vld [vmem:[#allocation2 + $0x218] sm:$0xff]
    %v853 = vld [vmem:[#allocation2 + $0x220] sm:$0xff]
    %v854 = vld [vmem:[#allocation2 + $0x228] sm:$0xff]
    %v855 = vld [vmem:[#allocation2 + $0x230] sm:$0xff]
    %v856 = vld [vmem:[#allocation2 + $0x238] sm:$0xff]
    %v857 = vld [vmem:[#allocation2 + $0x240] sm:$0xff]
    %v858 = vld [vmem:[#allocation2 + $0x248] sm:$0xff]
    %v859 = vld [vmem:[#allocation2 + $0x250] sm:$0xff]
    %v860 = vld [vmem:[#allocation2 + $0x258] sm:$0xff]
    %v861 = vld [vmem:[#allocation2 + $0x260] sm:$0xff]
    %v862 = vld [vmem:[#allocation2 + $0x268] sm:$0xff]
    %v863 = vld [vmem:[#allocation2 + $0x270] sm:$0xff]
    %v864 = vld [vmem:[#allocation2 + $0x278] sm:$0xff]
    %v865 = vld [vmem:[#allocation2 + $0x280] sm:$0xff]
    %v866 = vld [vmem:[#allocation2 + $0x288] sm:$0xff]
    %v867 = vld [vmem:[#allocation2 + $0x290] sm:$0xff]
    %v868 = vld [vmem:[#allocation2 + $0x298] sm:$0xff]
    %v869 = vld [vmem:[#allocation2 + $0x2a0] sm:$0xff]
    %v870 = vld [vmem:[#allocation2 + $0x2a8] sm:$0xff]
    %v871 = vld [vmem:[#allocation2 + $0x2b0] sm:$0xff]
    %v872 = vld [vmem:[#allocation2 + $0x2b8] sm:$0xff]
    %v873 = vld [vmem:[#allocation2 + $0x2c0] sm:$0xff]
    %v874 = vld [vmem:[#allocation2 + $0x2c8] sm:$0xff]
    %v875 = vld [vmem:[#allocation2 + $0x2d0] sm:$0xff]
    %v876 = vld [vmem:[#allocation2 + $0x2d8] sm:$0xff]
    %v877 = vld [vmem:[#allocation2 + $0x2e0] sm:$0xff]
    %v878 = vld [vmem:[#allocation2 + $0x2e8] sm:$0xff]
    %v879 = vld [vmem:[#allocation2 + $0x2f0] sm:$0xff]
    %v880 = vld [vmem:[#allocation2 + $0x2f8] sm:$0xff]
    %v881 = vld [vmem:[#allocation2 + $0x300] sm:$0xff]
    %v882 = vld [vmem:[#allocation2 + $0x308] sm:$0xff]
    %v883 = vld [vmem:[#allocation2 + $0x310] sm:$0xff]
    %v884 = vld [vmem:[#allocation2 + $0x318] sm:$0xff]
    %v885 = vld [vmem:[#allocation2 + $0x320] sm:$0xff]
    %v886 = vld [vmem:[#allocation2 + $0x328] sm:$0xff]
    %v887 = vld [vmem:[#allocation2 + $0x330] sm:$0xff]
    %v888 = vld [vmem:[#allocation2 + $0x338] sm:$0xff]
    %v889 = vld [vmem:[#allocation2 + $0x340] sm:$0xff]
    %v890 = vld [vmem:[#allocation2 + $0x348] sm:$0xff]
    %v891 = vld [vmem:[#allocation2 + $0x350] sm:$0xff]
    %v892 = vld [vmem:[#allocation2 + $0x358] sm:$0xff]
    %v893 = vld [vmem:[#allocation2 + $0x360] sm:$0xff]
    %v894 = vld [vmem:[#allocation2 + $0x368] sm:$0xff]
    %v895 = vld [vmem:[#allocation2 + $0x370] sm:$0xff]
    %v896 = vld [vmem:[#allocation2 + $0x378] sm:$0xff]
    %v897 = vld [vmem:[#allocation2 + $0x380] sm:$0xff]
    %v898 = vld [vmem:[#allocation2 + $0x388] sm:$0xff]
    %v899 = vld [vmem:[#allocation2 + $0x390] sm:$0xff]
    %v900 = vld [vmem:[#allocation2 + $0x398] sm:$0xff]
    %v901 = vld [vmem:[#allocation2 + $0x3a0] sm:$0xff]
    %v902 = vld [vmem:[#allocation2 + $0x3a8] sm:$0xff]
    %v903 = vld [vmem:[#allocation2 + $0x3b0] sm:$0xff]
    %v904 = vld [vmem:[#allocation2 + $0x3b8] sm:$0xff]
    %v905 = vld [vmem:[#allocation2 + $0x3c0] sm:$0xff]
    %v906 = vld [vmem:[#allocation2 + $0x3c8] sm:$0xff]
    %v907 = vld [vmem:[#allocation2 + $0x3d0] sm:$0xff]
    %v908 = vld [vmem:[#allocation2 + $0x3d8] sm:$0xff]
    %v909 = vld [vmem:[#allocation2 + $0x3e0] sm:$0xff]
    %v910 = vld [vmem:[#allocation2 + $0x3e8] sm:$0xff]
    %v911 = vld [vmem:[#allocation2 + $0x3f0] sm:$0xff]
    %v912 = vld [vmem:[#allocation2 + $0x3f8] sm:$0xff]
    %v913 = vld [vmem:[#allocation2 + $0x400] sm:$0xff]
    %v914 = vld [vmem:[#allocation2 + $0x408] sm:$0xff]
    %v915 = vld [vmem:[#allocation2 + $0x410] sm:$0xff]
    %v916 = vld [vmem:[#allocation2 + $0x418] sm:$0xff]
    %v917 = vld [vmem:[#allocation2 + $0x420] sm:$0xff]
    %v918 = vld [vmem:[#allocation2 + $0x428] sm:$0xff]
    %v919 = vld [vmem:[#allocation2 + $0x430] sm:$0xff]
    %v920 = vld [vmem:[#allocation2 + $0x438] sm:$0xff]
    %v921 = vld [vmem:[#allocation2 + $0x440] sm:$0xff]
    %v922 = vld [vmem:[#allocation2 + $0x448] sm:$0xff]
    %v923 = vld [vmem:[#allocation2 + $0x450] sm:$0xff]
    %v924 = vld [vmem:[#allocation2 + $0x458] sm:$0xff]
    %v925 = vld [vmem:[#allocation2 + $0x460] sm:$0xff]
    %v926 = vld [vmem:[#allocation2 + $0x468] sm:$0xff]
    %v927 = vld [vmem:[#allocation2 + $0x470] sm:$0xff]
    %v928 = vld [vmem:[#allocation2 + $0x478] sm:$0xff]
    %v929 = vld [vmem:[#allocation2 + $0x480] sm:$0xff]
    %v930 = vld [vmem:[#allocation2 + $0x488] sm:$0xff]
    %v931 = vld [vmem:[#allocation2 + $0x490] sm:$0xff]
    %v932 = vld [vmem:[#allocation2 + $0x498] sm:$0xff]
    %v933 = vld [vmem:[#allocation2 + $0x4a0] sm:$0xff]
    %v934 = vld [vmem:[#allocation2 + $0x4a8] sm:$0xff]
    %v935 = vld [vmem:[#allocation2 + $0x4b0] sm:$0xff]
    %v936 = vld [vmem:[#allocation2 + $0x4b8] sm:$0xff]
    %v937 = vld [vmem:[#allocation2 + $0x4c0] sm:$0xff]
    %v938 = vld [vmem:[#allocation2 + $0x4c8] sm:$0xff]
    %v939 = vld [vmem:[#allocation2 + $0x4d0] sm:$0xff]
    %v940 = vld [vmem:[#allocation2 + $0x4d8] sm:$0xff]
    %v941 = vld [vmem:[#allocation2 + $0x4e0] sm:$0xff]
    %v942 = vld [vmem:[#allocation2 + $0x4e8] sm:$0xff]
    %v943 = vld [vmem:[#allocation2 + $0x4f0] sm:$0xff]
    %v944 = vld [vmem:[#allocation2 + $0x4f8] sm:$0xff]
    %v945 = vld [vmem:[#allocation2 + $0x500] sm:$0xff]
    %v946 = vld [vmem:[#allocation2 + $0x508] sm:$0xff]
    %v947 = vld [vmem:[#allocation2 + $0x510] sm:$0xff]
    %v948 = vld [vmem:[#allocation2 + $0x518] sm:$0xff]
    %v949 = vld [vmem:[#allocation2 + $0x520] sm:$0xff]
    %v950 = vld [vmem:[#allocation2 + $0x528] sm:$0xff]
    %v951 = vld [vmem:[#allocation2 + $0x530] sm:$0xff]
    %v952 = vld [vmem:[#allocation2 + $0x538] sm:$0xff]
    %v953 = vld [vmem:[#allocation2 + $0x540] sm:$0xff]
    %v954 = vld [vmem:[#allocation2 + $0x548] sm:$0xff]
    %v955 = vld [vmem:[#allocation2 + $0x550] sm:$0xff]
    %v956 = vld [vmem:[#allocation2 + $0x558] sm:$0xff]
    %v957 = vld [vmem:[#allocation2 + $0x560] sm:$0xff]
    %v958 = vld [vmem:[#allocation2 + $0x568] sm:$0xff]
    %v959 = vld [vmem:[#allocation2 + $0x570] sm:$0xff]
    %v960 = vld [vmem:[#allocation2 + $0x578] sm:$0xff]
    %v961 = vld [vmem:[#allocation2 + $0x580] sm:$0xff]
    %v962 = vld [vmem:[#allocation2 + $0x588] sm:$0xff]
    %v963 = vld [vmem:[#allocation2 + $0x590] sm:$0xff]
    %v964 = vld [vmem:[#allocation2 + $0x598] sm:$0xff]
    %v965 = vld [vmem:[#allocation2 + $0x5a0] sm:$0xff]
    %v966 = vld [vmem:[#allocation2 + $0x5a8] sm:$0xff]
    %v967 = vld [vmem:[#allocation2 + $0x5b0] sm:$0xff]
    %v968 = vld [vmem:[#allocation2 + $0x5b8] sm:$0xff]
    %v969 = vld [vmem:[#allocation2 + $0x5c0] sm:$0xff]
    %v970 = vld [vmem:[#allocation2 + $0x5c8] sm:$0xff]
    %v971 = vld [vmem:[#allocation2 + $0x5d0] sm:$0xff]
    %v972 = vld [vmem:[#allocation2 + $0x5d8] sm:$0xff]
    %v973 = vld [vmem:[#allocation2 + $0x5e0] sm:$0xff]
    %v974 = vld [vmem:[#allocation2 + $0x5e8] sm:$0xff]
    %v975 = vld [vmem:[#allocation2 + $0x5f0] sm:$0xff]
    %v976 = vld [vmem:[#allocation2 + $0x5f8] sm:$0xff]
    %v977 = vld [vmem:[#allocation2 + $0x600] sm:$0xff]
    %v978 = vld [vmem:[#allocation2 + $0x608] sm:$0xff]
    %v979 = vld [vmem:[#allocation2 + $0x610] sm:$0xff]
    %v980 = vld [vmem:[#allocation2 + $0x618] sm:$0xff]
    %v981 = vld [vmem:[#allocation2 + $0x620] sm:$0xff]
    %v982 = vld [vmem:[#allocation2 + $0x628] sm:$0xff]
    %v983 = vld [vmem:[#allocation2 + $0x630] sm:$0xff]
    %v984 = vld [vmem:[#allocation2 + $0x638] sm:$0xff]
    %v985 = vld [vmem:[#allocation2 + $0x640] sm:$0xff]
    %v986 = vld [vmem:[#allocation2 + $0x648] sm:$0xff]
    %v987 = vld [vmem:[#allocation2 + $0x650] sm:$0xff]
    %v988 = vld [vmem:[#allocation2 + $0x658] sm:$0xff]
    %v989 = vld [vmem:[#allocation2 + $0x660] sm:$0xff]
    %v990 = vld [vmem:[#allocation2 + $0x668] sm:$0xff]
    %v991 = vld [vmem:[#allocation2 + $0x670] sm:$0xff]
    %v992 = vld [vmem:[#allocation2 + $0x678] sm:$0xff]
    %v993 = vld [vmem:[#allocation2 + $0x680] sm:$0xff]
    %v994 = vld [vmem:[#allocation2 + $0x688] sm:$0xff]
    %v995 = vld [vmem:[#allocation2 + $0x690] sm:$0xff]
    %v996 = vld [vmem:[#allocation2 + $0x698] sm:$0xff]
    %v997 = vld [vmem:[#allocation2 + $0x6a0] sm:$0xff]
    %v998 = vld [vmem:[#allocation2 + $0x6a8] sm:$0xff]
    %v999 = vld [vmem:[#allocation2 + $0x6b0] sm:$0xff]
    %v1000 = vld [vmem:[#allocation2 + $0x6b8] sm:$0xff]
    %v1001 = vld [vmem:[#allocation2 + $0x6c0] sm:$0xff]
    %v1002 = vld [vmem:[#allocation2 + $0x6c8] sm:$0xff]
    %v1003 = vld [vmem:[#allocation2 + $0x6d0] sm:$0xff]
    %v1004 = vld [vmem:[#allocation2 + $0x6d8] sm:$0xff]
    %v1005 = vld [vmem:[#allocation2 + $0x6e0] sm:$0xff]
    %v1006 = vld [vmem:[#allocation2 + $0x6e8] sm:$0xff]
    %v1007 = vld [vmem:[#allocation2 + $0x6f0] sm:$0xff]
    %v1008 = vld [vmem:[#allocation2 + $0x6f8] sm:$0xff]
    %v1009 = vld [vmem:[#allocation2 + $0x700] sm:$0xff]
    %v1010 = vld [vmem:[#allocation2 + $0x708] sm:$0xff]
    %v1011 = vld [vmem:[#allocation2 + $0x710] sm:$0xff]
    %v1012 = vld [vmem:[#allocation2 + $0x718] sm:$0xff]
    %v1013 = vld [vmem:[#allocation2 + $0x720] sm:$0xff]
    %v1014 = vld [vmem:[#allocation2 + $0x728] sm:$0xff]
    %v1015 = vld [vmem:[#allocation2 + $0x730] sm:$0xff]
    %v1016 = vld [vmem:[#allocation2 + $0x738] sm:$0xff]
    %v1017 = vld [vmem:[#allocation2 + $0x740] sm:$0xff]
    %v1018 = vld [vmem:[#allocation2 + $0x748] sm:$0xff]
    %v1019 = vld [vmem:[#allocation2 + $0x750] sm:$0xff]
    %v1020 = vld [vmem:[#allocation2 + $0x758] sm:$0xff]
    %v1021 = vld [vmem:[#allocation2 + $0x760] sm:$0xff]
    %v1022 = vld [vmem:[#allocation2 + $0x768] sm:$0xff]
    %v1023 = vld [vmem:[#allocation2 + $0x770] sm:$0xff]
    %v1024 = vld [vmem:[#allocation2 + $0x778] sm:$0xff]
    %v1025 = vld [vmem:[#allocation2 + $0x780] sm:$0xff]
    %v1026 = vld [vmem:[#allocation2 + $0x788] sm:$0xff]
    %v1027 = vld [vmem:[#allocation2 + $0x790] sm:$0xff]
    %v1028 = vld [vmem:[#allocation2 + $0x798] sm:$0xff]
    %v1029 = vld [vmem:[#allocation2 + $0x7a0] sm:$0xff]
    %v1030 = vld [vmem:[#allocation2 + $0x7a8] sm:$0xff]
    %v1031 = vld [vmem:[#allocation2 + $0x7b0] sm:$0xff]
    %v1032 = vld [vmem:[#allocation2 + $0x7b8] sm:$0xff]
    %v1033 = vld [vmem:[#allocation2 + $0x7c0] sm:$0xff]
    %v1034 = vld [vmem:[#allocation2 + $0x7c8] sm:$0xff]
    %v1035 = vld [vmem:[#allocation2 + $0x7d0] sm:$0xff]
    %v1036 = vld [vmem:[#allocation2 + $0x7d8] sm:$0xff]
    %v1037 = vld [vmem:[#allocation2 + $0x7e0] sm:$0xff]
    %v1038 = vld [vmem:[#allocation2 + $0x7e8] sm:$0xff]
    %v1039 = vld [vmem:[#allocation2 + $0x7f0] sm:$0xff]
    %v1040 = vld [vmem:[#allocation2 + $0x7f8] sm:$0xff]
    %v1041 = vld [vmem:[%s4] sm:$0xff]
    %v1043 = vlaneseq
    %v1044 = vshrl.u32 %v1043, 7
    %v1045 = vsub.s32 0, %v1044
    %v1046 = vrot.slane %v1041, %v1045
    %v1047 = vlaneseq
    %v1048 = vshrl.u32 %v1047, 7
    %v1049 = vsub.s32 1, %v1048
    %v1050 = vrot.slane %v1041, %v1049
    %v1051 = vlaneseq
    %v1052 = vshrl.u32 %v1051, 7
    %v1053 = vsub.s32 2, %v1052
    %v1054 = vrot.slane %v1041, %v1053
    %v1055 = vlaneseq
    %v1056 = vshrl.u32 %v1055, 7
    %v1057 = vsub.s32 3, %v1056
    %v1058 = vrot.slane %v1041, %v1057
    %v1059 = vlaneseq
    %v1060 = vshrl.u32 %v1059, 7
    %v1061 = vsub.s32 4, %v1060
    %v1062 = vrot.slane %v1041, %v1061
    %v1063 = vlaneseq
    %v1064 = vshrl.u32 %v1063, 7
    %v1065 = vsub.s32 5, %v1064
    %v1066 = vrot.slane %v1041, %v1065
    %v1067 = vlaneseq
    %v1068 = vshrl.u32 %v1067, 7
    %v1069 = vsub.s32 6, %v1068
    %v1070 = vrot.slane %v1041, %v1069
    %v1071 = vlaneseq
    %v1072 = vshrl.u32 %v1071, 7
    %v1073 = vsub.s32 7, %v1072
    %v1074 = vrot.slane %v1041, %v1073
    %v1339 = vunpack.c.l.b16 %v785
    %v1340 = vunpack.c.h.b16 %v785
    %v1341 = vunpack.c.l.b16 %v786
    %v1342 = vunpack.c.h.b16 %v786
    %v1343 = vunpack.c.l.b16 %v787
    %v1344 = vunpack.c.h.b16 %v787
    %v1345 = vunpack.c.l.b16 %v788
    %v1346 = vunpack.c.h.b16 %v788
    %v1347 = vunpack.c.l.b16 %v789
    %v1348 = vunpack.c.h.b16 %v789
    %v1349 = vunpack.c.l.b16 %v790
    %v1350 = vunpack.c.h.b16 %v790
    %v1351 = vunpack.c.l.b16 %v791
    %v1352 = vunpack.c.h.b16 %v791
    %v1353 = vunpack.c.l.b16 %v792
    %v1354 = vunpack.c.h.b16 %v792
    %v1355 = vunpack.c.l.b16 %v793
    %v1356 = vunpack.c.h.b16 %v793
    %v1357 = vunpack.c.l.b16 %v794
    %v1358 = vunpack.c.h.b16 %v794
    %v1359 = vunpack.c.l.b16 %v795
    %v1360 = vunpack.c.h.b16 %v795
    %v1361 = vunpack.c.l.b16 %v796
    %v1362 = vunpack.c.h.b16 %v796
    %v1363 = vunpack.c.l.b16 %v797
    %v1364 = vunpack.c.h.b16 %v797
    %v1365 = vunpack.c.l.b16 %v798
    %v1366 = vunpack.c.h.b16 %v798
    %v1367 = vunpack.c.l.b16 %v799
    %v1368 = vunpack.c.h.b16 %v799
    %v1369 = vunpack.c.l.b16 %v800
    %v1370 = vunpack.c.h.b16 %v800
    %v1371 = vunpack.c.l.b16 %v801
    %v1372 = vunpack.c.h.b16 %v801
    %v1373 = vunpack.c.l.b16 %v802
    %v1374 = vunpack.c.h.b16 %v802
    %v1375 = vunpack.c.l.b16 %v803
    %v1376 = vunpack.c.h.b16 %v803
    %v1377 = vunpack.c.l.b16 %v804
    %v1378 = vunpack.c.h.b16 %v804
    %v1379 = vunpack.c.l.b16 %v805
    %v1380 = vunpack.c.h.b16 %v805
    %v1381 = vunpack.c.l.b16 %v806
    %v1382 = vunpack.c.h.b16 %v806
    %v1383 = vunpack.c.l.b16 %v807
    %v1384 = vunpack.c.h.b16 %v807
    %v1385 = vunpack.c.l.b16 %v808
    %v1386 = vunpack.c.h.b16 %v808
    %v1387 = vunpack.c.l.b16 %v809
    %v1388 = vunpack.c.h.b16 %v809
    %v1389 = vunpack.c.l.b16 %v810
    %v1390 = vunpack.c.h.b16 %v810
    %v1391 = vunpack.c.l.b16 %v811
    %v1392 = vunpack.c.h.b16 %v811
    %v1393 = vunpack.c.l.b16 %v812
    %v1394 = vunpack.c.h.b16 %v812
    %v1395 = vunpack.c.l.b16 %v813
    %v1396 = vunpack.c.h.b16 %v813
    %v1397 = vunpack.c.l.b16 %v814
    %v1398 = vunpack.c.h.b16 %v814
    %v1399 = vunpack.c.l.b16 %v815
    %v1400 = vunpack.c.h.b16 %v815
    %v1401 = vunpack.c.l.b16 %v816
    %v1402 = vunpack.c.h.b16 %v816
    %v1403 = vunpack.c.l.b16 %v817
    %v1404 = vunpack.c.h.b16 %v817
    %v1405 = vunpack.c.l.b16 %v818
    %v1406 = vunpack.c.h.b16 %v818
    %v1407 = vunpack.c.l.b16 %v819
    %v1408 = vunpack.c.h.b16 %v819
    %v1409 = vunpack.c.l.b16 %v820
    %v1410 = vunpack.c.h.b16 %v820
    %v1411 = vunpack.c.l.b16 %v821
    %v1412 = vunpack.c.h.b16 %v821
    %v1413 = vunpack.c.l.b16 %v822
    %v1414 = vunpack.c.h.b16 %v822
    %v1415 = vunpack.c.l.b16 %v823
    %v1416 = vunpack.c.h.b16 %v823
    %v1417 = vunpack.c.l.b16 %v824
    %v1418 = vunpack.c.h.b16 %v824
    %v1419 = vunpack.c.l.b16 %v825
    %v1420 = vunpack.c.h.b16 %v825
    %v1421 = vunpack.c.l.b16 %v826
    %v1422 = vunpack.c.h.b16 %v826
    %v1423 = vunpack.c.l.b16 %v827
    %v1424 = vunpack.c.h.b16 %v827
    %v1425 = vunpack.c.l.b16 %v828
    %v1426 = vunpack.c.h.b16 %v828
    %v1427 = vunpack.c.l.b16 %v829
    %v1428 = vunpack.c.h.b16 %v829
    %v1429 = vunpack.c.l.b16 %v830
    %v1430 = vunpack.c.h.b16 %v830
    %v1431 = vunpack.c.l.b16 %v831
    %v1432 = vunpack.c.h.b16 %v831
    %v1433 = vunpack.c.l.b16 %v832
    %v1434 = vunpack.c.h.b16 %v832
    %v1435 = vunpack.c.l.b16 %v833
    %v1436 = vunpack.c.h.b16 %v833
    %v1437 = vunpack.c.l.b16 %v834
    %v1438 = vunpack.c.h.b16 %v834
    %v1439 = vunpack.c.l.b16 %v835
    %v1440 = vunpack.c.h.b16 %v835
    %v1441 = vunpack.c.l.b16 %v836
    %v1442 = vunpack.c.h.b16 %v836
    %v1443 = vunpack.c.l.b16 %v837
    %v1444 = vunpack.c.h.b16 %v837
    %v1445 = vunpack.c.l.b16 %v838
    %v1446 = vunpack.c.h.b16 %v838
    %v1447 = vunpack.c.l.b16 %v839
    %v1448 = vunpack.c.h.b16 %v839
    %v1449 = vunpack.c.l.b16 %v840
    %v1450 = vunpack.c.h.b16 %v840
    %v1451 = vunpack.c.l.b16 %v841
    %v1452 = vunpack.c.h.b16 %v841
    %v1453 = vunpack.c.l.b16 %v842
    %v1454 = vunpack.c.h.b16 %v842
    %v1455 = vunpack.c.l.b16 %v843
    %v1456 = vunpack.c.h.b16 %v843
    %v1457 = vunpack.c.l.b16 %v844
    %v1458 = vunpack.c.h.b16 %v844
    %v1459 = vunpack.c.l.b16 %v845
    %v1460 = vunpack.c.h.b16 %v845
    %v1461 = vunpack.c.l.b16 %v846
    %v1462 = vunpack.c.h.b16 %v846
    %v1463 = vunpack.c.l.b16 %v847
    %v1464 = vunpack.c.h.b16 %v847
    %v1465 = vunpack.c.l.b16 %v848
    %v1466 = vunpack.c.h.b16 %v848
    %v1467 = vunpack.c.l.b16 %v849
    %v1468 = vunpack.c.h.b16 %v849
    %v1469 = vunpack.c.l.b16 %v850
    %v1470 = vunpack.c.h.b16 %v850
    %v1471 = vunpack.c.l.b16 %v851
    %v1472 = vunpack.c.h.b16 %v851
    %v1473 = vunpack.c.l.b16 %v852
    %v1474 = vunpack.c.h.b16 %v852
    %v1475 = vunpack.c.l.b16 %v853
    %v1476 = vunpack.c.h.b16 %v853
    %v1477 = vunpack.c.l.b16 %v854
    %v1478 = vunpack.c.h.b16 %v854
    %v1479 = vunpack.c.l.b16 %v855
    %v1480 = vunpack.c.h.b16 %v855
    %v1481 = vunpack.c.l.b16 %v856
    %v1482 = vunpack.c.h.b16 %v856
    %v1483 = vunpack.c.l.b16 %v857
    %v1484 = vunpack.c.h.b16 %v857
    %v1485 = vunpack.c.l.b16 %v858
    %v1486 = vunpack.c.h.b16 %v858
    %v1487 = vunpack.c.l.b16 %v859
    %v1488 = vunpack.c.h.b16 %v859
    %v1489 = vunpack.c.l.b16 %v860
    %v1490 = vunpack.c.h.b16 %v860
    %v1491 = vunpack.c.l.b16 %v861
    %v1492 = vunpack.c.h.b16 %v861
    %v1493 = vunpack.c.l.b16 %v862
    %v1494 = vunpack.c.h.b16 %v862
    %v1495 = vunpack.c.l.b16 %v863
    %v1496 = vunpack.c.h.b16 %v863
    %v1497 = vunpack.c.l.b16 %v864
    %v1498 = vunpack.c.h.b16 %v864
    %v1499 = vunpack.c.l.b16 %v865
    %v1500 = vunpack.c.h.b16 %v865
    %v1501 = vunpack.c.l.b16 %v866
    %v1502 = vunpack.c.h.b16 %v866
    %v1503 = vunpack.c.l.b16 %v867
    %v1504 = vunpack.c.h.b16 %v867
    %v1505 = vunpack.c.l.b16 %v868
    %v1506 = vunpack.c.h.b16 %v868
    %v1507 = vunpack.c.l.b16 %v869
    %v1508 = vunpack.c.h.b16 %v869
    %v1509 = vunpack.c.l.b16 %v870
    %v1510 = vunpack.c.h.b16 %v870
    %v1511 = vunpack.c.l.b16 %v871
    %v1512 = vunpack.c.h.b16 %v871
    %v1513 = vunpack.c.l.b16 %v872
    %v1514 = vunpack.c.h.b16 %v872
    %v1515 = vunpack.c.l.b16 %v873
    %v1516 = vunpack.c.h.b16 %v873
    %v1517 = vunpack.c.l.b16 %v874
    %v1518 = vunpack.c.h.b16 %v874
    %v1519 = vunpack.c.l.b16 %v875
    %v1520 = vunpack.c.h.b16 %v875
    %v1521 = vunpack.c.l.b16 %v876
    %v1522 = vunpack.c.h.b16 %v876
    %v1523 = vunpack.c.l.b16 %v877
    %v1524 = vunpack.c.h.b16 %v877
    %v1525 = vunpack.c.l.b16 %v878
    %v1526 = vunpack.c.h.b16 %v878
    %v1527 = vunpack.c.l.b16 %v879
    %v1528 = vunpack.c.h.b16 %v879
    %v1529 = vunpack.c.l.b16 %v880
    %v1530 = vunpack.c.h.b16 %v880
    %v1531 = vunpack.c.l.b16 %v881
    %v1532 = vunpack.c.h.b16 %v881
    %v1533 = vunpack.c.l.b16 %v882
    %v1534 = vunpack.c.h.b16 %v882
    %v1535 = vunpack.c.l.b16 %v883
    %v1536 = vunpack.c.h.b16 %v883
    %v1537 = vunpack.c.l.b16 %v884
    %v1538 = vunpack.c.h.b16 %v884
    %v1539 = vunpack.c.l.b16 %v885
    %v1540 = vunpack.c.h.b16 %v885
    %v1541 = vunpack.c.l.b16 %v886
    %v1542 = vunpack.c.h.b16 %v886
    %v1543 = vunpack.c.l.b16 %v887
    %v1544 = vunpack.c.h.b16 %v887
    %v1545 = vunpack.c.l.b16 %v888
    %v1546 = vunpack.c.h.b16 %v888
    %v1547 = vunpack.c.l.b16 %v889
    %v1548 = vunpack.c.h.b16 %v889
    %v1549 = vunpack.c.l.b16 %v890
    %v1550 = vunpack.c.h.b16 %v890
    %v1551 = vunpack.c.l.b16 %v891
    %v1552 = vunpack.c.h.b16 %v891
    %v1553 = vunpack.c.l.b16 %v892
    %v1554 = vunpack.c.h.b16 %v892
    %v1555 = vunpack.c.l.b16 %v893
    %v1556 = vunpack.c.h.b16 %v893
    %v1557 = vunpack.c.l.b16 %v894
    %v1558 = vunpack.c.h.b16 %v894
    %v1559 = vunpack.c.l.b16 %v895
    %v1560 = vunpack.c.h.b16 %v895
    %v1561 = vunpack.c.l.b16 %v896
    %v1562 = vunpack.c.h.b16 %v896
    %v1563 = vunpack.c.l.b16 %v897
    %v1564 = vunpack.c.h.b16 %v897
    %v1565 = vunpack.c.l.b16 %v898
    %v1566 = vunpack.c.h.b16 %v898
    %v1567 = vunpack.c.l.b16 %v899
    %v1568 = vunpack.c.h.b16 %v899
    %v1569 = vunpack.c.l.b16 %v900
    %v1570 = vunpack.c.h.b16 %v900
    %v1571 = vunpack.c.l.b16 %v901
    %v1572 = vunpack.c.h.b16 %v901
    %v1573 = vunpack.c.l.b16 %v902
    %v1574 = vunpack.c.h.b16 %v902
    %v1575 = vunpack.c.l.b16 %v903
    %v1576 = vunpack.c.h.b16 %v903
    %v1577 = vunpack.c.l.b16 %v904
    %v1578 = vunpack.c.h.b16 %v904
    %v1579 = vunpack.c.l.b16 %v905
    %v1580 = vunpack.c.h.b16 %v905
    %v1581 = vunpack.c.l.b16 %v906
    %v1582 = vunpack.c.h.b16 %v906
    %v1583 = vunpack.c.l.b16 %v907
    %v1584 = vunpack.c.h.b16 %v907
    %v1585 = vunpack.c.l.b16 %v908
    %v1586 = vunpack.c.h.b16 %v908
    %v1587 = vunpack.c.l.b16 %v909
    %v1588 = vunpack.c.h.b16 %v909
    %v1589 = vunpack.c.l.b16 %v910
    %v1590 = vunpack.c.h.b16 %v910
    %v1591 = vunpack.c.l.b16 %v911
    %v1592 = vunpack.c.h.b16 %v911
    %v1593 = vunpack.c.l.b16 %v912
    %v1594 = vunpack.c.h.b16 %v912
    %v1595 = vunpack.c.l.b16 %v913
    %v1596 = vunpack.c.h.b16 %v913
    %v1597 = vunpack.c.l.b16 %v914
    %v1598 = vunpack.c.h.b16 %v914
    %v1599 = vunpack.c.l.b16 %v915
    %v1600 = vunpack.c.h.b16 %v915
    %v1601 = vunpack.c.l.b16 %v916
    %v1602 = vunpack.c.h.b16 %v916
    %v1603 = vunpack.c.l.b16 %v917
    %v1604 = vunpack.c.h.b16 %v917
    %v1605 = vunpack.c.l.b16 %v918
    %v1606 = vunpack.c.h.b16 %v918
    %v1607 = vunpack.c.l.b16 %v919
    %v1608 = vunpack.c.h.b16 %v919
    %v1609 = vunpack.c.l.b16 %v920
    %v1610 = vunpack.c.h.b16 %v920
    %v1611 = vunpack.c.l.b16 %v921
    %v1612 = vunpack.c.h.b16 %v921
    %v1613 = vunpack.c.l.b16 %v922
    %v1614 = vunpack.c.h.b16 %v922
    %v1615 = vunpack.c.l.b16 %v923
    %v1616 = vunpack.c.h.b16 %v923
    %v1617 = vunpack.c.l.b16 %v924
    %v1618 = vunpack.c.h.b16 %v924
    %v1619 = vunpack.c.l.b16 %v925
    %v1620 = vunpack.c.h.b16 %v925
    %v1621 = vunpack.c.l.b16 %v926
    %v1622 = vunpack.c.h.b16 %v926
    %v1623 = vunpack.c.l.b16 %v927
    %v1624 = vunpack.c.h.b16 %v927
    %v1625 = vunpack.c.l.b16 %v928
    %v1626 = vunpack.c.h.b16 %v928
    %v1627 = vunpack.c.l.b16 %v929
    %v1628 = vunpack.c.h.b16 %v929
    %v1629 = vunpack.c.l.b16 %v930
    %v1630 = vunpack.c.h.b16 %v930
    %v1631 = vunpack.c.l.b16 %v931
    %v1632 = vunpack.c.h.b16 %v931
    %v1633 = vunpack.c.l.b16 %v932
    %v1634 = vunpack.c.h.b16 %v932
    %v1635 = vunpack.c.l.b16 %v933
    %v1636 = vunpack.c.h.b16 %v933
    %v1637 = vunpack.c.l.b16 %v934
    %v1638 = vunpack.c.h.b16 %v934
    %v1639 = vunpack.c.l.b16 %v935
    %v1640 = vunpack.c.h.b16 %v935
    %v1641 = vunpack.c.l.b16 %v936
    %v1642 = vunpack.c.h.b16 %v936
    %v1643 = vunpack.c.l.b16 %v937
    %v1644 = vunpack.c.h.b16 %v937
    %v1645 = vunpack.c.l.b16 %v938
    %v1646 = vunpack.c.h.b16 %v938
    %v1647 = vunpack.c.l.b16 %v939
    %v1648 = vunpack.c.h.b16 %v939
    %v1649 = vunpack.c.l.b16 %v940
    %v1650 = vunpack.c.h.b16 %v940
    %v1651 = vunpack.c.l.b16 %v941
    %v1652 = vunpack.c.h.b16 %v941
    %v1653 = vunpack.c.l.b16 %v942
    %v1654 = vunpack.c.h.b16 %v942
    %v1655 = vunpack.c.l.b16 %v943
    %v1656 = vunpack.c.h.b16 %v943
    %v1657 = vunpack.c.l.b16 %v944
    %v1658 = vunpack.c.h.b16 %v944
    %v1659 = vunpack.c.l.b16 %v945
    %v1660 = vunpack.c.h.b16 %v945
    %v1661 = vunpack.c.l.b16 %v946
    %v1662 = vunpack.c.h.b16 %v946
    %v1663 = vunpack.c.l.b16 %v947
    %v1664 = vunpack.c.h.b16 %v947
    %v1665 = vunpack.c.l.b16 %v948
    %v1666 = vunpack.c.h.b16 %v948
    %v1667 = vunpack.c.l.b16 %v949
    %v1668 = vunpack.c.h.b16 %v949
    %v1669 = vunpack.c.l.b16 %v950
    %v1670 = vunpack.c.h.b16 %v950
    %v1671 = vunpack.c.l.b16 %v951
    %v1672 = vunpack.c.h.b16 %v951
    %v1673 = vunpack.c.l.b16 %v952
    %v1674 = vunpack.c.h.b16 %v952
    %v1675 = vunpack.c.l.b16 %v953
    %v1676 = vunpack.c.h.b16 %v953
    %v1677 = vunpack.c.l.b16 %v954
    %v1678 = vunpack.c.h.b16 %v954
    %v1679 = vunpack.c.l.b16 %v955
    %v1680 = vunpack.c.h.b16 %v955
    %v1681 = vunpack.c.l.b16 %v956
    %v1682 = vunpack.c.h.b16 %v956
    %v1683 = vunpack.c.l.b16 %v957
    %v1684 = vunpack.c.h.b16 %v957
    %v1685 = vunpack.c.l.b16 %v958
    %v1686 = vunpack.c.h.b16 %v958
    %v1687 = vunpack.c.l.b16 %v959
    %v1688 = vunpack.c.h.b16 %v959
    %v1689 = vunpack.c.l.b16 %v960
    %v1690 = vunpack.c.h.b16 %v960
    %v1691 = vunpack.c.l.b16 %v961
    %v1692 = vunpack.c.h.b16 %v961
    %v1693 = vunpack.c.l.b16 %v962
    %v1694 = vunpack.c.h.b16 %v962
    %v1695 = vunpack.c.l.b16 %v963
    %v1696 = vunpack.c.h.b16 %v963
    %v1697 = vunpack.c.l.b16 %v964
    %v1698 = vunpack.c.h.b16 %v964
    %v1699 = vunpack.c.l.b16 %v965
    %v1700 = vunpack.c.h.b16 %v965
    %v1701 = vunpack.c.l.b16 %v966
    %v1702 = vunpack.c.h.b16 %v966
    %v1703 = vunpack.c.l.b16 %v967
    %v1704 = vunpack.c.h.b16 %v967
    %v1705 = vunpack.c.l.b16 %v968
    %v1706 = vunpack.c.h.b16 %v968
    %v1707 = vunpack.c.l.b16 %v969
    %v1708 = vunpack.c.h.b16 %v969
    %v1709 = vunpack.c.l.b16 %v970
    %v1710 = vunpack.c.h.b16 %v970
    %v1711 = vunpack.c.l.b16 %v971
    %v1712 = vunpack.c.h.b16 %v971
    %v1713 = vunpack.c.l.b16 %v972
    %v1714 = vunpack.c.h.b16 %v972
    %v1715 = vunpack.c.l.b16 %v973
    %v1716 = vunpack.c.h.b16 %v973
    %v1717 = vunpack.c.l.b16 %v974
    %v1718 = vunpack.c.h.b16 %v974
    %v1719 = vunpack.c.l.b16 %v975
    %v1720 = vunpack.c.h.b16 %v975
    %v1721 = vunpack.c.l.b16 %v976
    %v1722 = vunpack.c.h.b16 %v976
    %v1723 = vunpack.c.l.b16 %v977
    %v1724 = vunpack.c.h.b16 %v977
    %v1725 = vunpack.c.l.b16 %v978
    %v1726 = vunpack.c.h.b16 %v978
    %v1727 = vunpack.c.l.b16 %v979
    %v1728 = vunpack.c.h.b16 %v979
    %v1729 = vunpack.c.l.b16 %v980
    %v1730 = vunpack.c.h.b16 %v980
    %v1731 = vunpack.c.l.b16 %v981
    %v1732 = vunpack.c.h.b16 %v981
    %v1733 = vunpack.c.l.b16 %v982
    %v1734 = vunpack.c.h.b16 %v982
    %v1735 = vunpack.c.l.b16 %v983
    %v1736 = vunpack.c.h.b16 %v983
    %v1737 = vunpack.c.l.b16 %v984
    %v1738 = vunpack.c.h.b16 %v984
    %v1739 = vunpack.c.l.b16 %v985
    %v1740 = vunpack.c.h.b16 %v985
    %v1741 = vunpack.c.l.b16 %v986
    %v1742 = vunpack.c.h.b16 %v986
    %v1743 = vunpack.c.l.b16 %v987
    %v1744 = vunpack.c.h.b16 %v987
    %v1745 = vunpack.c.l.b16 %v988
    %v1746 = vunpack.c.h.b16 %v988
    %v1747 = vunpack.c.l.b16 %v989
    %v1748 = vunpack.c.h.b16 %v989
    %v1749 = vunpack.c.l.b16 %v990
    %v1750 = vunpack.c.h.b16 %v990
    %v1751 = vunpack.c.l.b16 %v991
    %v1752 = vunpack.c.h.b16 %v991
    %v1753 = vunpack.c.l.b16 %v992
    %v1754 = vunpack.c.h.b16 %v992
    %v1755 = vunpack.c.l.b16 %v993
    %v1756 = vunpack.c.h.b16 %v993
    %v1757 = vunpack.c.l.b16 %v994
    %v1758 = vunpack.c.h.b16 %v994
    %v1759 = vunpack.c.l.b16 %v995
    %v1760 = vunpack.c.h.b16 %v995
    %v1761 = vunpack.c.l.b16 %v996
    %v1762 = vunpack.c.h.b16 %v996
    %v1763 = vunpack.c.l.b16 %v997
    %v1764 = vunpack.c.h.b16 %v997
    %v1765 = vunpack.c.l.b16 %v998
    %v1766 = vunpack.c.h.b16 %v998
    %v1767 = vunpack.c.l.b16 %v999
    %v1768 = vunpack.c.h.b16 %v999
    %v1769 = vunpack.c.l.b16 %v1000
    %v1770 = vunpack.c.h.b16 %v1000
    %v1771 = vunpack.c.l.b16 %v1001
    %v1772 = vunpack.c.h.b16 %v1001
    %v1773 = vunpack.c.l.b16 %v1002
    %v1774 = vunpack.c.h.b16 %v1002
    %v1775 = vunpack.c.l.b16 %v1003
    %v1776 = vunpack.c.h.b16 %v1003
    %v1777 = vunpack.c.l.b16 %v1004
    %v1778 = vunpack.c.h.b16 %v1004
    %v1779 = vunpack.c.l.b16 %v1005
    %v1780 = vunpack.c.h.b16 %v1005
    %v1781 = vunpack.c.l.b16 %v1006
    %v1782 = vunpack.c.h.b16 %v1006
    %v1783 = vunpack.c.l.b16 %v1007
    %v1784 = vunpack.c.h.b16 %v1007
    %v1785 = vunpack.c.l.b16 %v1008
    %v1786 = vunpack.c.h.b16 %v1008
    %v1787 = vunpack.c.l.b16 %v1009
    %v1788 = vunpack.c.h.b16 %v1009
    %v1789 = vunpack.c.l.b16 %v1010
    %v1790 = vunpack.c.h.b16 %v1010
    %v1791 = vunpack.c.l.b16 %v1011
    %v1792 = vunpack.c.h.b16 %v1011
    %v1793 = vunpack.c.l.b16 %v1012
    %v1794 = vunpack.c.h.b16 %v1012
    %v1795 = vunpack.c.l.b16 %v1013
    %v1796 = vunpack.c.h.b16 %v1013
    %v1797 = vunpack.c.l.b16 %v1014
    %v1798 = vunpack.c.h.b16 %v1014
    %v1799 = vunpack.c.l.b16 %v1015
    %v1800 = vunpack.c.h.b16 %v1015
    %v1801 = vunpack.c.l.b16 %v1016
    %v1802 = vunpack.c.h.b16 %v1016
    %v1803 = vunpack.c.l.b16 %v1017
    %v1804 = vunpack.c.h.b16 %v1017
    %v1805 = vunpack.c.l.b16 %v1018
    %v1806 = vunpack.c.h.b16 %v1018
    %v1807 = vunpack.c.l.b16 %v1019
    %v1808 = vunpack.c.h.b16 %v1019
    %v1809 = vunpack.c.l.b16 %v1020
    %v1810 = vunpack.c.h.b16 %v1020
    %v1811 = vunpack.c.l.b16 %v1021
    %v1812 = vunpack.c.h.b16 %v1021
    %v1813 = vunpack.c.l.b16 %v1022
    %v1814 = vunpack.c.h.b16 %v1022
    %v1815 = vunpack.c.l.b16 %v1023
    %v1816 = vunpack.c.h.b16 %v1023
    %v1817 = vunpack.c.l.b16 %v1024
    %v1818 = vunpack.c.h.b16 %v1024
    %v1819 = vunpack.c.l.b16 %v1025
    %v1820 = vunpack.c.h.b16 %v1025
    %v1821 = vunpack.c.l.b16 %v1026
    %v1822 = vunpack.c.h.b16 %v1026
    %v1823 = vunpack.c.l.b16 %v1027
    %v1824 = vunpack.c.h.b16 %v1027
    %v1825 = vunpack.c.l.b16 %v1028
    %v1826 = vunpack.c.h.b16 %v1028
    %v1827 = vunpack.c.l.b16 %v1029
    %v1828 = vunpack.c.h.b16 %v1029
    %v1829 = vunpack.c.l.b16 %v1030
    %v1830 = vunpack.c.h.b16 %v1030
    %v1831 = vunpack.c.l.b16 %v1031
    %v1832 = vunpack.c.h.b16 %v1031
    %v1833 = vunpack.c.l.b16 %v1032
    %v1834 = vunpack.c.h.b16 %v1032
    %v1835 = vunpack.c.l.b16 %v1033
    %v1836 = vunpack.c.h.b16 %v1033
    %v1837 = vunpack.c.l.b16 %v1034
    %v1838 = vunpack.c.h.b16 %v1034
    %v1839 = vunpack.c.l.b16 %v1035
    %v1840 = vunpack.c.h.b16 %v1035
    %v1841 = vunpack.c.l.b16 %v1036
    %v1842 = vunpack.c.h.b16 %v1036
    %v1843 = vunpack.c.l.b16 %v1037
    %v1844 = vunpack.c.h.b16 %v1037
    %v1845 = vunpack.c.l.b16 %v1038
    %v1846 = vunpack.c.h.b16 %v1038
    %v1847 = vunpack.c.l.b16 %v1039
    %v1848 = vunpack.c.h.b16 %v1039
    %v1849 = vunpack.c.l.b16 %v1040
    %v1850 = vunpack.c.h.b16 %v1040
    %v1851 = vpack.c.b16 %v1347, %v1339
    %v1852 = vpack.c.b16 %v1348, %v1340
    %v1853 = vpack.c.b16 %v1349, %v1341
    %v1854 = vpack.c.b16 %v1350, %v1342
    %v1855 = vpack.c.b16 %v1351, %v1343
    %v1856 = vpack.c.b16 %v1352, %v1344
    %v1857 = vpack.c.b16 %v1353, %v1345
    %v1858 = vpack.c.b16 %v1354, %v1346
    %v1859 = vpack.c.b16 %v1363, %v1355
    %v1860 = vpack.c.b16 %v1364, %v1356
    %v1861 = vpack.c.b16 %v1365, %v1357
    %v1862 = vpack.c.b16 %v1366, %v1358
    %v1863 = vpack.c.b16 %v1367, %v1359
    %v1864 = vpack.c.b16 %v1368, %v1360
    %v1865 = vpack.c.b16 %v1369, %v1361
    %v1866 = vpack.c.b16 %v1370, %v1362
    %v1867 = vpack.c.b16 %v1379, %v1371
    %v1868 = vpack.c.b16 %v1380, %v1372
    %v1869 = vpack.c.b16 %v1381, %v1373
    %v1870 = vpack.c.b16 %v1382, %v1374
    %v1871 = vpack.c.b16 %v1383, %v1375
    %v1872 = vpack.c.b16 %v1384, %v1376
    %v1873 = vpack.c.b16 %v1385, %v1377
    %v1874 = vpack.c.b16 %v1386, %v1378
    %v1875 = vpack.c.b16 %v1395, %v1387
    %v1876 = vpack.c.b16 %v1396, %v1388
    %v1877 = vpack.c.b16 %v1397, %v1389
    %v1878 = vpack.c.b16 %v1398, %v1390
    %v1879 = vpack.c.b16 %v1399, %v1391
    %v1880 = vpack.c.b16 %v1400, %v1392
    %v1881 = vpack.c.b16 %v1401, %v1393
    %v1882 = vpack.c.b16 %v1402, %v1394
    %v1883 = vpack.c.b16 %v1411, %v1403
    %v1884 = vpack.c.b16 %v1412, %v1404
    %v1885 = vpack.c.b16 %v1413, %v1405
    %v1886 = vpack.c.b16 %v1414, %v1406
    %v1887 = vpack.c.b16 %v1415, %v1407
    %v1888 = vpack.c.b16 %v1416, %v1408
    %v1889 = vpack.c.b16 %v1417, %v1409
    %v1890 = vpack.c.b16 %v1418, %v1410
    %v1891 = vpack.c.b16 %v1427, %v1419
    %v1892 = vpack.c.b16 %v1428, %v1420
    %v1893 = vpack.c.b16 %v1429, %v1421
    %v1894 = vpack.c.b16 %v1430, %v1422
    %v1895 = vpack.c.b16 %v1431, %v1423
    %v1896 = vpack.c.b16 %v1432, %v1424
    %v1897 = vpack.c.b16 %v1433, %v1425
    %v1898 = vpack.c.b16 %v1434, %v1426
    %v1899 = vpack.c.b16 %v1443, %v1435
    %v1900 = vpack.c.b16 %v1444, %v1436
    %v1901 = vpack.c.b16 %v1445, %v1437
    %v1902 = vpack.c.b16 %v1446, %v1438
    %v1903 = vpack.c.b16 %v1447, %v1439
    %v1904 = vpack.c.b16 %v1448, %v1440
    %v1905 = vpack.c.b16 %v1449, %v1441
    %v1906 = vpack.c.b16 %v1450, %v1442
    %v1907 = vpack.c.b16 %v1459, %v1451
    %v1908 = vpack.c.b16 %v1460, %v1452
    %v1909 = vpack.c.b16 %v1461, %v1453
    %v1910 = vpack.c.b16 %v1462, %v1454
    %v1911 = vpack.c.b16 %v1463, %v1455
    %v1912 = vpack.c.b16 %v1464, %v1456
    %v1913 = vpack.c.b16 %v1465, %v1457
    %v1914 = vpack.c.b16 %v1466, %v1458
    %v1915 = vpack.c.b16 %v1475, %v1467
    %v1916 = vpack.c.b16 %v1476, %v1468
    %v1917 = vpack.c.b16 %v1477, %v1469
    %v1918 = vpack.c.b16 %v1478, %v1470
    %v1919 = vpack.c.b16 %v1479, %v1471
    %v1920 = vpack.c.b16 %v1480, %v1472
    %v1921 = vpack.c.b16 %v1481, %v1473
    %v1922 = vpack.c.b16 %v1482, %v1474
    %v1923 = vpack.c.b16 %v1491, %v1483
    %v1924 = vpack.c.b16 %v1492, %v1484
    %v1925 = vpack.c.b16 %v1493, %v1485
    %v1926 = vpack.c.b16 %v1494, %v1486
    %v1927 = vpack.c.b16 %v1495, %v1487
    %v1928 = vpack.c.b16 %v1496, %v1488
    %v1929 = vpack.c.b16 %v1497, %v1489
    %v1930 = vpack.c.b16 %v1498, %v1490
    %v1931 = vpack.c.b16 %v1507, %v1499
    %v1932 = vpack.c.b16 %v1508, %v1500
    %v1933 = vpack.c.b16 %v1509, %v1501
    %v1934 = vpack.c.b16 %v1510, %v1502
    %v1935 = vpack.c.b16 %v1511, %v1503
    %v1936 = vpack.c.b16 %v1512, %v1504
    %v1937 = vpack.c.b16 %v1513, %v1505
    %v1938 = vpack.c.b16 %v1514, %v1506
    %v1939 = vpack.c.b16 %v1523, %v1515
    %v1940 = vpack.c.b16 %v1524, %v1516
    %v1941 = vpack.c.b16 %v1525, %v1517
    %v1942 = vpack.c.b16 %v1526, %v1518
    %v1943 = vpack.c.b16 %v1527, %v1519
    %v1944 = vpack.c.b16 %v1528, %v1520
    %v1945 = vpack.c.b16 %v1529, %v1521
    %v1946 = vpack.c.b16 %v1530, %v1522
    %v1947 = vpack.c.b16 %v1539, %v1531
    %v1948 = vpack.c.b16 %v1540, %v1532
    %v1949 = vpack.c.b16 %v1541, %v1533
    %v1950 = vpack.c.b16 %v1542, %v1534
    %v1951 = vpack.c.b16 %v1543, %v1535
    %v1952 = vpack.c.b16 %v1544, %v1536
    %v1953 = vpack.c.b16 %v1545, %v1537
    %v1954 = vpack.c.b16 %v1546, %v1538
    %v1955 = vpack.c.b16 %v1555, %v1547
    %v1956 = vpack.c.b16 %v1556, %v1548
    %v1957 = vpack.c.b16 %v1557, %v1549
    %v1958 = vpack.c.b16 %v1558, %v1550
    %v1959 = vpack.c.b16 %v1559, %v1551
    %v1960 = vpack.c.b16 %v1560, %v1552
    %v1961 = vpack.c.b16 %v1561, %v1553
    %v1962 = vpack.c.b16 %v1562, %v1554
    %v1963 = vpack.c.b16 %v1571, %v1563
    %v1964 = vpack.c.b16 %v1572, %v1564
    %v1965 = vpack.c.b16 %v1573, %v1565
    %v1966 = vpack.c.b16 %v1574, %v1566
    %v1967 = vpack.c.b16 %v1575, %v1567
    %v1968 = vpack.c.b16 %v1576, %v1568
    %v1969 = vpack.c.b16 %v1577, %v1569
    %v1970 = vpack.c.b16 %v1578, %v1570
    %v1971 = vpack.c.b16 %v1587, %v1579
    %v1972 = vpack.c.b16 %v1588, %v1580
    %v1973 = vpack.c.b16 %v1589, %v1581
    %v1974 = vpack.c.b16 %v1590, %v1582
    %v1975 = vpack.c.b16 %v1591, %v1583
    %v1976 = vpack.c.b16 %v1592, %v1584
    %v1977 = vpack.c.b16 %v1593, %v1585
    %v1978 = vpack.c.b16 %v1594, %v1586
    %v1979 = vpack.c.b16 %v1603, %v1595
    %v1980 = vpack.c.b16 %v1604, %v1596
    %v1981 = vpack.c.b16 %v1605, %v1597
    %v1982 = vpack.c.b16 %v1606, %v1598
    %v1983 = vpack.c.b16 %v1607, %v1599
    %v1984 = vpack.c.b16 %v1608, %v1600
    %v1985 = vpack.c.b16 %v1609, %v1601
    %v1986 = vpack.c.b16 %v1610, %v1602
    %v1987 = vpack.c.b16 %v1619, %v1611
    %v1988 = vpack.c.b16 %v1620, %v1612
    %v1989 = vpack.c.b16 %v1621, %v1613
    %v1990 = vpack.c.b16 %v1622, %v1614
    %v1991 = vpack.c.b16 %v1623, %v1615
    %v1992 = vpack.c.b16 %v1624, %v1616
    %v1993 = vpack.c.b16 %v1625, %v1617
    %v1994 = vpack.c.b16 %v1626, %v1618
    %v1995 = vpack.c.b16 %v1635, %v1627
    %v1996 = vpack.c.b16 %v1636, %v1628
    %v1997 = vpack.c.b16 %v1637, %v1629
    %v1998 = vpack.c.b16 %v1638, %v1630
    %v1999 = vpack.c.b16 %v1639, %v1631
    %v2000 = vpack.c.b16 %v1640, %v1632
    %v2001 = vpack.c.b16 %v1641, %v1633
    %v2002 = vpack.c.b16 %v1642, %v1634
    %v2003 = vpack.c.b16 %v1651, %v1643
    %v2004 = vpack.c.b16 %v1652, %v1644
    %v2005 = vpack.c.b16 %v1653, %v1645
    %v2006 = vpack.c.b16 %v1654, %v1646
    %v2007 = vpack.c.b16 %v1655, %v1647
    %v2008 = vpack.c.b16 %v1656, %v1648
    %v2009 = vpack.c.b16 %v1657, %v1649
    %v2010 = vpack.c.b16 %v1658, %v1650
    %v2011 = vpack.c.b16 %v1667, %v1659
    %v2012 = vpack.c.b16 %v1668, %v1660
    %v2013 = vpack.c.b16 %v1669, %v1661
    %v2014 = vpack.c.b16 %v1670, %v1662
    %v2015 = vpack.c.b16 %v1671, %v1663
    %v2016 = vpack.c.b16 %v1672, %v1664
    %v2017 = vpack.c.b16 %v1673, %v1665
    %v2018 = vpack.c.b16 %v1674, %v1666
    %v2019 = vpack.c.b16 %v1683, %v1675
    %v2020 = vpack.c.b16 %v1684, %v1676
    %v2021 = vpack.c.b16 %v1685, %v1677
    %v2022 = vpack.c.b16 %v1686, %v1678
    %v2023 = vpack.c.b16 %v1687, %v1679
    %v2024 = vpack.c.b16 %v1688, %v1680
    %v2025 = vpack.c.b16 %v1689, %v1681
    %v2026 = vpack.c.b16 %v1690, %v1682
    %v2027 = vpack.c.b16 %v1699, %v1691
    %v2028 = vpack.c.b16 %v1700, %v1692
    %v2029 = vpack.c.b16 %v1701, %v1693
    %v2030 = vpack.c.b16 %v1702, %v1694
    %v2031 = vpack.c.b16 %v1703, %v1695
    %v2032 = vpack.c.b16 %v1704, %v1696
    %v2033 = vpack.c.b16 %v1705, %v1697
    %v2034 = vpack.c.b16 %v1706, %v1698
    %v2035 = vpack.c.b16 %v1715, %v1707
    %v2036 = vpack.c.b16 %v1716, %v1708
    %v2037 = vpack.c.b16 %v1717, %v1709
    %v2038 = vpack.c.b16 %v1718, %v1710
    %v2039 = vpack.c.b16 %v1719, %v1711
    %v2040 = vpack.c.b16 %v1720, %v1712
    %v2041 = vpack.c.b16 %v1721, %v1713
    %v2042 = vpack.c.b16 %v1722, %v1714
    %v2043 = vpack.c.b16 %v1731, %v1723
    %v2044 = vpack.c.b16 %v1732, %v1724
    %v2045 = vpack.c.b16 %v1733, %v1725
    %v2046 = vpack.c.b16 %v1734, %v1726
    %v2047 = vpack.c.b16 %v1735, %v1727
    %v2048 = vpack.c.b16 %v1736, %v1728
    %v2049 = vpack.c.b16 %v1737, %v1729
    %v2050 = vpack.c.b16 %v1738, %v1730
    %v2051 = vpack.c.b16 %v1747, %v1739
    %v2052 = vpack.c.b16 %v1748, %v1740
    %v2053 = vpack.c.b16 %v1749, %v1741
    %v2054 = vpack.c.b16 %v1750, %v1742
    %v2055 = vpack.c.b16 %v1751, %v1743
    %v2056 = vpack.c.b16 %v1752, %v1744
    %v2057 = vpack.c.b16 %v1753, %v1745
    %v2058 = vpack.c.b16 %v1754, %v1746
    %v2059 = vpack.c.b16 %v1763, %v1755
    %v2060 = vpack.c.b16 %v1764, %v1756
    %v2061 = vpack.c.b16 %v1765, %v1757
    %v2062 = vpack.c.b16 %v1766, %v1758
    %v2063 = vpack.c.b16 %v1767, %v1759
    %v2064 = vpack.c.b16 %v1768, %v1760
    %v2065 = vpack.c.b16 %v1769, %v1761
    %v2066 = vpack.c.b16 %v1770, %v1762
    %v2067 = vpack.c.b16 %v1779, %v1771
    %v2068 = vpack.c.b16 %v1780, %v1772
    %v2069 = vpack.c.b16 %v1781, %v1773
    %v2070 = vpack.c.b16 %v1782, %v1774
    %v2071 = vpack.c.b16 %v1783, %v1775
    %v2072 = vpack.c.b16 %v1784, %v1776
    %v2073 = vpack.c.b16 %v1785, %v1777
    %v2074 = vpack.c.b16 %v1786, %v1778
    %v2075 = vpack.c.b16 %v1795, %v1787
    %v2076 = vpack.c.b16 %v1796, %v1788
    %v2077 = vpack.c.b16 %v1797, %v1789
    %v2078 = vpack.c.b16 %v1798, %v1790
    %v2079 = vpack.c.b16 %v1799, %v1791
    %v2080 = vpack.c.b16 %v1800, %v1792
    %v2081 = vpack.c.b16 %v1801, %v1793
    %v2082 = vpack.c.b16 %v1802, %v1794
    %v2083 = vpack.c.b16 %v1811, %v1803
    %v2084 = vpack.c.b16 %v1812, %v1804
    %v2085 = vpack.c.b16 %v1813, %v1805
    %v2086 = vpack.c.b16 %v1814, %v1806
    %v2087 = vpack.c.b16 %v1815, %v1807
    %v2088 = vpack.c.b16 %v1816, %v1808
    %v2089 = vpack.c.b16 %v1817, %v1809
    %v2090 = vpack.c.b16 %v1818, %v1810
    %v2091 = vpack.c.b16 %v1827, %v1819
    %v2092 = vpack.c.b16 %v1828, %v1820
    %v2093 = vpack.c.b16 %v1829, %v1821
    %v2094 = vpack.c.b16 %v1830, %v1822
    %v2095 = vpack.c.b16 %v1831, %v1823
    %v2096 = vpack.c.b16 %v1832, %v1824
    %v2097 = vpack.c.b16 %v1833, %v1825
    %v2098 = vpack.c.b16 %v1834, %v1826
    %v2099 = vpack.c.b16 %v1843, %v1835
    %v2100 = vpack.c.b16 %v1844, %v1836
    %v2101 = vpack.c.b16 %v1845, %v1837
    %v2102 = vpack.c.b16 %v1846, %v1838
    %v2103 = vpack.c.b16 %v1847, %v1839
    %v2104 = vpack.c.b16 %v1848, %v1840
    %v2105 = vpack.c.b16 %v1849, %v1841
    %v2106 = vpack.c.b16 %v1850, %v1842
    %2363 = vmatprep.subr.bf16.mxu0 %v1852
    %2364 = vmatpush1.bf16.msra.mxu0 %v1851
    %2365 = vmatprep.subr.bf16.mxu0 %v1860
    %2366 = vmatpush1.bf16.msra.mxu0 %v1859
    %2367 = vmatprep.subr.bf16.mxu0 %v1868
    %2368 = vmatpush1.bf16.msra.mxu0 %v1867
    %2369 = vmatprep.subr.bf16.mxu0 %v1876
    %2370 = vmatpush1.bf16.msra.mxu0 %v1875
    %2371 = vmatprep.subr.bf16.mxu0 %v1884
    %2372 = vmatpush1.bf16.msra.mxu0 %v1883
    %2373 = vmatprep.subr.bf16.mxu0 %v1892
    %2374 = vmatpush1.bf16.msra.mxu0 %v1891
    %2375 = vmatprep.subr.bf16.mxu0 %v1900
    %2376 = vmatpush1.bf16.msra.mxu0 %v1899
    %2377 = vmatprep.subr.bf16.mxu0 %v1908
    %2378 = vmatpush1.bf16.msra.mxu0 %v1907
    %2379 = vmatprep.subr.bf16.mxu0 %v1916
    %2380 = vmatpush1.bf16.msra.mxu0 %v1915
    %2381 = vmatprep.subr.bf16.mxu0 %v1924
    %2382 = vmatpush1.bf16.msra.mxu0 %v1923
    %2383 = vmatprep.subr.bf16.mxu0 %v1932
    %2384 = vmatpush1.bf16.msra.mxu0 %v1931
    %2385 = vmatprep.subr.bf16.mxu0 %v1940
    %2386 = vmatpush1.bf16.msra.mxu0 %v1939
    %2387 = vmatprep.subr.bf16.mxu0 %v1948
    %2388 = vmatpush1.bf16.msra.mxu0 %v1947
    %2389 = vmatprep.subr.bf16.mxu0 %v1956
    %2390 = vmatpush1.bf16.msra.mxu0 %v1955
    %2391 = vmatprep.subr.bf16.mxu0 %v1964
    %2392 = vmatpush1.bf16.msra.mxu0 %v1963
    %2393 = vmatprep.subr.bf16.mxu0 %v1972
    %2394 = vmatpush1.bf16.msra.mxu0 %v1971
    %2395 = vmatprep.mubr.bf16.mxu0 %v722
    %2396 = vmatmul.mubr.bf16.gmra.mrb[0].mxu0 %v721
    %v2397 = vpop.f32.mrb[0].mxu0
    %v2398 = vadd.f32 %v1046, %v2397
    %v2399 = vpop.f32.mrb[0].mxu0
    %v2400 = vadd.f32 %v1050, %v2399
    %v2401 = vpop.f32.mrb[0].mxu0
    %v2402 = vadd.f32 %v1046, %v2401
    %v2403 = vpop.f32.mrb[0].mxu0
    %v2404 = vadd.f32 %v1050, %v2403
    %2405 = vmatprep.mubr.bf16.mxu0 %v726
    %2406 = vmatmul.mubr.bf16.gmra.mrb[0].mxu0 %v725
    %v2407 = vpop.f32.mrb[0].mxu0
    %v2408 = vadd.f32 %v1046, %v2407
    %v2409 = vpop.f32.mrb[0].mxu0
    %v2410 = vadd.f32 %v1050, %v2409
    %v2411 = vpop.f32.mrb[0].mxu0
    %v2412 = vadd.f32 %v1046, %v2411
    %v2413 = vpop.f32.mrb[0].mxu0
    %v2414 = vadd.f32 %v1050, %v2413
    %2415 = vmatprep.mubr.bf16.mxu0 %v730
    %2416 = vmatmul.mubr.bf16.gmra.mrb[0].mxu0 %v729
    %v2417 = vpop.f32.mrb[0].mxu0
    %v2418 = vadd.f32 %v1046, %v2417
    %v2419 = vpop.f32.mrb[0].mxu0
    %v2420 = vadd.f32 %v1050, %v2419
    %v2421 = vpop.f32.mrb[0].mxu0
    %v2422 = vadd.f32 %v1046, %v2421
    %v2423 = vpop.f32.mrb[0].mxu0
    %v2424 = vadd.f32 %v1050, %v2423
    %2425 = vmatprep.mubr.bf16.mxu0 %v734
    %2426 = vmatmul.mubr.bf16.gmra.mrb[0].mxu0 %v733
    %v2427 = vpop.f32.mrb[0].mxu0
    %v2428 = vadd.f32 %v1046, %v2427
    %v2429 = vpop.f32.mrb[0].mxu0
    %v2430 = vadd.f32 %v1050, %v2429
    %v2431 = vpop.f32.mrb[0].mxu0
    %v2432 = vadd.f32 %v1046, %v2431
    %v2433 = vpop.f32.mrb[0].mxu0
    %v2434 = vadd.f32 %v1050, %v2433
    %2435 = vmatprep.mubr.bf16.mxu0 %v738
    %2436 = vmatmul.mubr.bf16.gmra.mrb[0].mxu0 %v737
    %v2437 = vpop.f32.mrb[0].mxu0
    %v2438 = vadd.f32 %v1046, %v2437
    %v2439 = vpop.f32.mrb[0].mxu0
    %v2440 = vadd.f32 %v1050, %v2439
    %v2441 = vpop.f32.mrb[0].mxu0
    %v2442 = vadd.f32 %v1046, %v2441
    %v2443 = vpop.f32.mrb[0].mxu0
    %v2444 = vadd.f32 %v1050, %v2443
    %2445 = vmatprep.mubr.bf16.mxu0 %v742
    %2446 = vmatmul.mubr.bf16.gmra.mrb[0].mxu0 %v741
    %v2447 = vpop.f32.mrb[0].mxu0
    %v2448 = vadd.f32 %v1046, %v2447
    %v2449 = vpop.f32.mrb[0].mxu0
    %v2450 = vadd.f32 %v1050, %v2449
    %v2451 = vpop.f32.mrb[0].mxu0
    %v2452 = vadd.f32 %v1046, %v2451
    %v2453 = vpop.f32.mrb[0].mxu0
    %v2454 = vadd.f32 %v1050, %v2453
    %2455 = vmatprep.mubr.bf16.mxu0 %v746
    %2456 = vmatmul.mubr.bf16.gmra.mrb[0].mxu0 %v745
    %v2457 = vpop.f32.mrb[0].mxu0
    %v2458 = vadd.f32 %v1046, %v2457
    %v2459 = vpop.f32.mrb[0].mxu0
    %v2460 = vadd.f32 %v1050, %v2459
    %v2461 = vpop.f32.mrb[0].mxu0
    %v2462 = vadd.f32 %v1046, %v2461
    %v2463 = vpop.f32.mrb[0].mxu0
    %v2464 = vadd.f32 %v1050, %v2463
    %2465 = vmatprep.mubr.bf16.mxu0 %v750
    %2466 = vmatmul.mubr.bf16.gmra.mrb[0].mxu0 %v749
    %v2467 = vpop.f32.mrb[0].mxu0
    %v2468 = vadd.f32 %v1046, %v2467
    %v2469 = vpop.f32.mrb[0].mxu0
    %v2470 = vadd.f32 %v1050, %v2469
    %v2471 = vpop.f32.mrb[0].mxu0
    %v2472 = vadd.f32 %v1046, %v2471
    %v2473 = vpop.f32.mrb[0].mxu0
    %v2474 = vadd.f32 %v1050, %v2473
    %2475 = vmatprep.mubr.bf16.mxu0 %v754
    %2476 = vmatmul.mubr.bf16.gmra.mrb[0].mxu0 %v753
    %v2477 = vpop.f32.mrb[0].mxu0
    %v2478 = vadd.f32 %v1046, %v2477
    %v2479 = vpop.f32.mrb[0].mxu0
    %v2480 = vadd.f32 %v1050, %v2479
    %v2481 = vpop.f32.mrb[0].mxu0
    %v2482 = vadd.f32 %v1046, %v2481
    %v2483 = vpop.f32.mrb[0].mxu0
    %v2484 = vadd.f32 %v1050, %v2483
    %2485 = vmatprep.mubr.bf16.mxu0 %v758
    %2486 = vmatmul.mubr.bf16.gmra.mrb[0].mxu0 %v757
    %v2487 = vpop.f32.mrb[0].mxu0
    %v2488 = vadd.f32 %v1046, %v2487
    %v2489 = vpop.f32.mrb[0].mxu0
    %v2490 = vadd.f32 %v1050, %v2489
    %v2491 = vpop.f32.mrb[0].mxu0
    %v2492 = vadd.f32 %v1046, %v2491
    %v2493 = vpop.f32.mrb[0].mxu0
    %v2494 = vadd.f32 %v1050, %v2493
    %2495 = vmatprep.mubr.bf16.mxu0 %v762
    %2496 = vmatmul.mubr.bf16.gmra.mrb[0].mxu0 %v761
    %v2497 = vpop.f32.mrb[0].mxu0
    %v2498 = vadd.f32 %v1046, %v2497
    %v2499 = vpop.f32.mrb[0].mxu0
    %v2500 = vadd.f32 %v1050, %v2499
    %v2501 = vpop.f32.mrb[0].mxu0
    %v2502 = vadd.f32 %v1046, %v2501
    %v2503 = vpop.f32.mrb[0].mxu0
    %v2504 = vadd.f32 %v1050, %v2503
    %2505 = vmatprep.mubr.bf16.mxu0 %v766
    %2506 = vmatmul.mubr.bf16.gmra.mrb[0].mxu0 %v765
    %v2507 = vpop.f32.mrb[0].mxu0
    %v2508 = vadd.f32 %v1046, %v2507
    %v2509 = vpop.f32.mrb[0].mxu0
    %v2510 = vadd.f32 %v1050, %v2509
    %v2511 = vpop.f32.mrb[0].mxu0
    %v2512 = vadd.f32 %v1046, %v2511
    %v2513 = vpop.f32.mrb[0].mxu0
    %v2514 = vadd.f32 %v1050, %v2513
    %2515 = vmatprep.mubr.bf16.mxu0 %v770
    %2516 = vmatmul.mubr.bf16.gmra.mrb[0].mxu0 %v769
    %v2517 = vpop.f32.mrb[0].mxu0
    %v2518 = vadd.f32 %v1046, %v2517
    %v2519 = vpop.f32.mrb[0].mxu0
    %v2520 = vadd.f32 %v1050, %v2519
    %v2521 = vpop.f32.mrb[0].mxu0
    %v2522 = vadd.f32 %v1046, %v2521
    %v2523 = vpop.f32.mrb[0].mxu0
    %v2524 = vadd.f32 %v1050, %v2523
    %2525 = vmatprep.mubr.bf16.mxu0 %v774
    %2526 = vmatmul.mubr.bf16.gmra.mrb[0].mxu0 %v773
    %v2527 = vpop.f32.mrb[0].mxu0
    %v2528 = vadd.f32 %v1046, %v2527
    %v2529 = vpop.f32.mrb[0].mxu0
    %v2530 = vadd.f32 %v1050, %v2529
    %v2531 = vpop.f32.mrb[0].mxu0
    %v2532 = vadd.f32 %v1046, %v2531
    %v2533 = vpop.f32.mrb[0].mxu0
    %v2534 = vadd.f32 %v1050, %v2533
    %2535 = vmatprep.mubr.bf16.mxu0 %v778
    %2536 = vmatmul.mubr.bf16.gmra.mrb[0].mxu0 %v777
    %v2537 = vpop.f32.mrb[0].mxu0
    %v2538 = vadd.f32 %v1046, %v2537
    %v2539 = vpop.f32.mrb[0].mxu0
    %v2540 = vadd.f32 %v1050, %v2539
    %v2541 = vpop.f32.mrb[0].mxu0
    %v2542 = vadd.f32 %v1046, %v2541
    %v2543 = vpop.f32.mrb[0].mxu0
    %v2544 = vadd.f32 %v1050, %v2543
    %2545 = vmatprep.mubr.bf16.mxu0 %v782
    %2546 = vmatmul.mubr.bf16.gmra.mrb[0].mxu0 %v781
    %v2547 = vpop.f32.mrb[0].mxu0
    %v2548 = vadd.f32 %v1046, %v2547
    %v2549 = vpop.f32.mrb[0].mxu0
    %v2550 = vadd.f32 %v1050, %v2549
    %v2551 = vpop.f32.mrb[0].mxu0
    %v2552 = vadd.f32 %v1046, %v2551
    %v2553 = vpop.f32.mrb[0].mxu0
    %v2554 = vadd.f32 %v1050, %v2553
    %2555 = vdwg.mxu0
    %2556 = vmatprep.subr.bf16.mxu0 %v1980
    %2557 = vmatpush1.bf16.msra.mxu0 %v1979
    %2558 = vmatprep.subr.bf16.mxu0 %v1988
    %2559 = vmatpush1.bf16.msra.mxu0 %v1987
    %2560 = vmatprep.subr.bf16.mxu0 %v1996
    %2561 = vmatpush1.bf16.msra.mxu0 %v1995
    %2562 = vmatprep.subr.bf16.mxu0 %v2004
    %2563 = vmatpush1.bf16.msra.mxu0 %v2003
    %2564 = vmatprep.subr.bf16.mxu0 %v2012
    %2565 = vmatpush1.bf16.msra.mxu0 %v2011
    %2566 = vmatprep.subr.bf16.mxu0 %v2020
    %2567 = vmatpush1.bf16.msra.mxu0 %v2019
    %2568 = vmatprep.subr.bf16.mxu0 %v2028
    %2569 = vmatpush1.bf16.msra.mxu0 %v2027
    %2570 = vmatprep.subr.bf16.mxu0 %v2036
    %2571 = vmatpush1.bf16.msra.mxu0 %v2035
    %2572 = vmatprep.subr.bf16.mxu0 %v2044
    %2573 = vmatpush1.bf16.msra.mxu0 %v2043
    %2574 = vmatprep.subr.bf16.mxu0 %v2052
    %2575 = vmatpush1.bf16.msra.mxu0 %v2051
    %2576 = vmatprep.subr.bf16.mxu0 %v2060
    %2577 = vmatpush1.bf16.msra.mxu0 %v2059
    %2578 = vmatprep.subr.bf16.mxu0 %v2068
    %2579 = vmatpush1.bf16.msra.mxu0 %v2067
    %2580 = vmatprep.subr.bf16.mxu0 %v2076
    %2581 = vmatpush1.bf16.msra.mxu0 %v2075
    %2582 = vmatprep.subr.bf16.mxu0 %v2084
    %2583 = vmatpush1.bf16.msra.mxu0 %v2083
    %2584 = vmatprep.subr.bf16.mxu0 %v2092
    %2585 = vmatpush1.bf16.msra.mxu0 %v2091
    %2586 = vmatprep.subr.bf16.mxu0 %v2100
    %2587 = vmatpush1.bf16.msra.mxu0 %v2099
    %2588 = vmatprep.mubr.bf16.mxu0 %v724
    %2589 = vmatmul.mubr.bf16.gmra.mrb[0].mxu0 %v723
    %v2590 = vpop.f32.mrb[0].mxu0
    %v2591 = vadd.f32 %v2398, %v2590
    %v2592 = vpop.f32.mrb[0].mxu0
    %v2593 = vadd.f32 %v2400, %v2592
    %v2594 = vpop.f32.mrb[0].mxu0
    %v2595 = vadd.f32 %v2402, %v2594
    %v2596 = vpop.f32.mrb[0].mxu0
    %v2597 = vadd.f32 %v2404, %v2596
    %2598 = vmatprep.mubr.bf16.mxu0 %v728
    %2599 = vmatmul.mubr.bf16.gmra.mrb[0].mxu0 %v727
    %v2600 = vpop.f32.mrb[0].mxu0
    %v2601 = vadd.f32 %v2408, %v2600
    %v2602 = vpop.f32.mrb[0].mxu0
    %v2603 = vadd.f32 %v2410, %v2602
    %v2604 = vpop.f32.mrb[0].mxu0
    %v2605 = vadd.f32 %v2412, %v2604
    %v2606 = vpop.f32.mrb[0].mxu0
    %v2607 = vadd.f32 %v2414, %v2606
    %2608 = vmatprep.mubr.bf16.mxu0 %v732
    %2609 = vmatmul.mubr.bf16.gmra.mrb[0].mxu0 %v731
    %v2610 = vpop.f32.mrb[0].mxu0
    %v2611 = vadd.f32 %v2418, %v2610
    %v2612 = vpop.f32.mrb[0].mxu0
    %v2613 = vadd.f32 %v2420, %v2612
    %v2614 = vpop.f32.mrb[0].mxu0
    %v2615 = vadd.f32 %v2422, %v2614
    %v2616 = vpop.f32.mrb[0].mxu0
    %v2617 = vadd.f32 %v2424, %v2616
    %2618 = vmatprep.mubr.bf16.mxu0 %v736
    %2619 = vmatmul.mubr.bf16.gmra.mrb[0].mxu0 %v735
    %v2620 = vpop.f32.mrb[0].mxu0
    %v2621 = vadd.f32 %v2428, %v2620
    %v2622 = vpop.f32.mrb[0].mxu0
    %v2623 = vadd.f32 %v2430, %v2622
    %v2624 = vpop.f32.mrb[0].mxu0
    %v2625 = vadd.f32 %v2432, %v2624
    %v2626 = vpop.f32.mrb[0].mxu0
    %v2627 = vadd.f32 %v2434, %v2626
    %2628 = vmatprep.mubr.bf16.mxu0 %v740
    %2629 = vmatmul.mubr.bf16.gmra.mrb[0].mxu0 %v739
    %v2630 = vpop.f32.mrb[0].mxu0
    %v2631 = vadd.f32 %v2438, %v2630
    %v2632 = vpop.f32.mrb[0].mxu0
    %v2633 = vadd.f32 %v2440, %v2632
    %v2634 = vpop.f32.mrb[0].mxu0
    %v2635 = vadd.f32 %v2442, %v2634
    %v2636 = vpop.f32.mrb[0].mxu0
    %v2637 = vadd.f32 %v2444, %v2636
    %2638 = vmatprep.mubr.bf16.mxu0 %v744
    %2639 = vmatmul.mubr.bf16.gmra.mrb[0].mxu0 %v743
    %v2640 = vpop.f32.mrb[0].mxu0
    %v2641 = vadd.f32 %v2448, %v2640
    %v2642 = vpop.f32.mrb[0].mxu0
    %v2643 = vadd.f32 %v2450, %v2642
    %v2644 = vpop.f32.mrb[0].mxu0
    %v2645 = vadd.f32 %v2452, %v2644
    %v2646 = vpop.f32.mrb[0].mxu0
    %v2647 = vadd.f32 %v2454, %v2646
    %2648 = vmatprep.mubr.bf16.mxu0 %v748
    %2649 = vmatmul.mubr.bf16.gmra.mrb[0].mxu0 %v747
    %v2650 = vpop.f32.mrb[0].mxu0
    %v2651 = vadd.f32 %v2458, %v2650
    %v2652 = vpop.f32.mrb[0].mxu0
    %v2653 = vadd.f32 %v2460, %v2652
    %v2654 = vpop.f32.mrb[0].mxu0
    %v2655 = vadd.f32 %v2462, %v2654
    %v2656 = vpop.f32.mrb[0].mxu0
    %v2657 = vadd.f32 %v2464, %v2656
    %2658 = vmatprep.mubr.bf16.mxu0 %v752
    %2659 = vmatmul.mubr.bf16.gmra.mrb[0].mxu0 %v751
    %v2660 = vpop.f32.mrb[0].mxu0
    %v2661 = vadd.f32 %v2468, %v2660
    %v2662 = vpop.f32.mrb[0].mxu0
    %v2663 = vadd.f32 %v2470, %v2662
    %v2664 = vpop.f32.mrb[0].mxu0
    %v2665 = vadd.f32 %v2472, %v2664
    %v2666 = vpop.f32.mrb[0].mxu0
    %v2667 = vadd.f32 %v2474, %v2666
    %2668 = vmatprep.mubr.bf16.mxu0 %v756
    %2669 = vmatmul.mubr.bf16.gmra.mrb[0].mxu0 %v755
    %v2670 = vpop.f32.mrb[0].mxu0
    %v2671 = vadd.f32 %v2478, %v2670
    %v2672 = vpop.f32.mrb[0].mxu0
    %v2673 = vadd.f32 %v2480, %v2672
    %v2674 = vpop.f32.mrb[0].mxu0
    %v2675 = vadd.f32 %v2482, %v2674
    %v2676 = vpop.f32.mrb[0].mxu0
    %v2677 = vadd.f32 %v2484, %v2676
    %2678 = vmatprep.mubr.bf16.mxu0 %v760
    %2679 = vmatmul.mubr.bf16.gmra.mrb[0].mxu0 %v759
    %v2680 = vpop.f32.mrb[0].mxu0
    %v2681 = vadd.f32 %v2488, %v2680
    %v2682 = vpop.f32.mrb[0].mxu0
    %v2683 = vadd.f32 %v2490, %v2682
    %v2684 = vpop.f32.mrb[0].mxu0
    %v2685 = vadd.f32 %v2492, %v2684
    %v2686 = vpop.f32.mrb[0].mxu0
    %v2687 = vadd.f32 %v2494, %v2686
    %2688 = vmatprep.mubr.bf16.mxu0 %v764
    %2689 = vmatmul.mubr.bf16.gmra.mrb[0].mxu0 %v763
    %v2690 = vpop.f32.mrb[0].mxu0
    %v2691 = vadd.f32 %v2498, %v2690
    %v2692 = vpop.f32.mrb[0].mxu0
    %v2693 = vadd.f32 %v2500, %v2692
    %v2694 = vpop.f32.mrb[0].mxu0
    %v2695 = vadd.f32 %v2502, %v2694
    %v2696 = vpop.f32.mrb[0].mxu0
    %v2697 = vadd.f32 %v2504, %v2696
    %2698 = vmatprep.mubr.bf16.mxu0 %v768
    %2699 = vmatmul.mubr.bf16.gmra.mrb[0].mxu0 %v767
    %v2700 = vpop.f32.mrb[0].mxu0
    %v2701 = vadd.f32 %v2508, %v2700
    %v2702 = vpop.f32.mrb[0].mxu0
    %v2703 = vadd.f32 %v2510, %v2702
    %v2704 = vpop.f32.mrb[0].mxu0
    %v2705 = vadd.f32 %v2512, %v2704
    %v2706 = vpop.f32.mrb[0].mxu0
    %v2707 = vadd.f32 %v2514, %v2706
    %2708 = vmatprep.mubr.bf16.mxu0 %v772
    %2709 = vmatmul.mubr.bf16.gmra.mrb[0].mxu0 %v771
    %v2710 = vpop.f32.mrb[0].mxu0
    %v2711 = vadd.f32 %v2518, %v2710
    %v2712 = vpop.f32.mrb[0].mxu0
    %v2713 = vadd.f32 %v2520, %v2712
    %v2714 = vpop.f32.mrb[0].mxu0
    %v2715 = vadd.f32 %v2522, %v2714
    %v2716 = vpop.f32.mrb[0].mxu0
    %v2717 = vadd.f32 %v2524, %v2716
    %2718 = vmatprep.mubr.bf16.mxu0 %v776
    %2719 = vmatmul.mubr.bf16.gmra.mrb[0].mxu0 %v775
    %v2720 = vpop.f32.mrb[0].mxu0
    %v2721 = vadd.f32 %v2528, %v2720
    %v2722 = vpop.f32.mrb[0].mxu0
    %v2723 = vadd.f32 %v2530, %v2722
    %v2724 = vpop.f32.mrb[0].mxu0
    %v2725 = vadd.f32 %v2532, %v2724
    %v2726 = vpop.f32.mrb[0].mxu0
    %v2727 = vadd.f32 %v2534, %v2726
    %2728 = vmatprep.mubr.bf16.mxu0 %v780
    %2729 = vmatmul.mubr.bf16.gmra.mrb[0].mxu0 %v779
    %v2730 = vpop.f32.mrb[0].mxu0
    %v2731 = vadd.f32 %v2538, %v2730
    %v2732 = vpop.f32.mrb[0].mxu0
    %v2733 = vadd.f32 %v2540, %v2732
    %v2734 = vpop.f32.mrb[0].mxu0
    %v2735 = vadd.f32 %v2542, %v2734
    %v2736 = vpop.f32.mrb[0].mxu0
    %v2737 = vadd.f32 %v2544, %v2736
    %2738 = vmatprep.mubr.bf16.mxu0 %v784
    %2739 = vmatmul.mubr.bf16.gmra.mrb[0].mxu0 %v783
    %v2740 = vpop.f32.mrb[0].mxu0
    %v2741 = vadd.f32 %v2548, %v2740
    %v2742 = vpop.f32.mrb[0].mxu0
    %v2743 = vadd.f32 %v2550, %v2742
    %v2744 = vpop.f32.mrb[0].mxu0
    %v2745 = vadd.f32 %v2552, %v2744
    %v2746 = vpop.f32.mrb[0].mxu0
    %v2747 = vadd.f32 %v2554, %v2746
    %2748 = vdwg.mxu0
    %2749 = vmatprep.subr.bf16.mxu0 %v1854
    %2750 = vmatpush1.bf16.msra.mxu0 %v1853
    %2751 = vmatprep.subr.bf16.mxu0 %v1862
    %2752 = vmatpush1.bf16.msra.mxu0 %v1861
    %2753 = vmatprep.subr.bf16.mxu0 %v1870
    %2754 = vmatpush1.bf16.msra.mxu0 %v1869
    %2755 = vmatprep.subr.bf16.mxu0 %v1878
    %2756 = vmatpush1.bf16.msra.mxu0 %v1877
    %2757 = vmatprep.subr.bf16.mxu0 %v1886
    %2758 = vmatpush1.bf16.msra.mxu0 %v1885
    %2759 = vmatprep.subr.bf16.mxu0 %v1894
    %2760 = vmatpush1.bf16.msra.mxu0 %v1893
    %2761 = vmatprep.subr.bf16.mxu0 %v1902
    %2762 = vmatpush1.bf16.msra.mxu0 %v1901
    %2763 = vmatprep.subr.bf16.mxu0 %v1910
    %2764 = vmatpush1.bf16.msra.mxu0 %v1909
    %2765 = vmatprep.subr.bf16.mxu0 %v1918
    %2766 = vmatpush1.bf16.msra.mxu0 %v1917
    %2767 = vmatprep.subr.bf16.mxu0 %v1926
    %2768 = vmatpush1.bf16.msra.mxu0 %v1925
    %2769 = vmatprep.subr.bf16.mxu0 %v1934
    %2770 = vmatpush1.bf16.msra.mxu0 %v1933
    %2771 = vmatprep.subr.bf16.mxu0 %v1942
    %2772 = vmatpush1.bf16.msra.mxu0 %v1941
    %2773 = vmatprep.subr.bf16.mxu0 %v1950
    %2774 = vmatpush1.bf16.msra.mxu0 %v1949
    %2775 = vmatprep.subr.bf16.mxu0 %v1958
    %2776 = vmatpush1.bf16.msra.mxu0 %v1957
    %2777 = vmatprep.subr.bf16.mxu0 %v1966
    %2778 = vmatpush1.bf16.msra.mxu0 %v1965
    %2779 = vmatprep.subr.bf16.mxu0 %v1974
    %2780 = vmatpush1.bf16.msra.mxu0 %v1973
    %2781 = vmatprep.mubr.bf16.mxu0 %v722
    %2782 = vmatmul.mubr.bf16.gmra.mrb[0].mxu0 %v721
    %v2783 = vpop.f32.mrb[0].mxu0
    %v2784 = vadd.f32 %v1054, %v2783
    %v2785 = vpop.f32.mrb[0].mxu0
    %v2786 = vadd.f32 %v1058, %v2785
    %v2787 = vpop.f32.mrb[0].mxu0
    %v2788 = vadd.f32 %v1054, %v2787
    %v2789 = vpop.f32.mrb[0].mxu0
    %v2790 = vadd.f32 %v1058, %v2789
    %2791 = vmatprep.mubr.bf16.mxu0 %v726
    %2792 = vmatmul.mubr.bf16.gmra.mrb[0].mxu0 %v725
    %v2793 = vpop.f32.mrb[0].mxu0
    %v2794 = vadd.f32 %v1054, %v2793
    %v2795 = vpop.f32.mrb[0].mxu0
    %v2796 = vadd.f32 %v1058, %v2795
    %v2797 = vpop.f32.mrb[0].mxu0
    %v2798 = vadd.f32 %v1054, %v2797
    %v2799 = vpop.f32.mrb[0].mxu0
    %v2800 = vadd.f32 %v1058, %v2799
    %2801 = vmatprep.mubr.bf16.mxu0 %v730
    %2802 = vmatmul.mubr.bf16.gmra.mrb[0].mxu0 %v729
    %v2803 = vpop.f32.mrb[0].mxu0
    %v2804 = vadd.f32 %v1054, %v2803
    %v2805 = vpop.f32.mrb[0].mxu0
    %v2806 = vadd.f32 %v1058, %v2805
    %v2807 = vpop.f32.mrb[0].mxu0
    %v2808 = vadd.f32 %v1054, %v2807
    %v2809 = vpop.f32.mrb[0].mxu0
    %v2810 = vadd.f32 %v1058, %v2809
    %2811 = vmatprep.mubr.bf16.mxu0 %v734
    %2812 = vmatmul.mubr.bf16.gmra.mrb[0].mxu0 %v733
    %v2813 = vpop.f32.mrb[0].mxu0
    %v2814 = vadd.f32 %v1054, %v2813
    %v2815 = vpop.f32.mrb[0].mxu0
    %v2816 = vadd.f32 %v1058, %v2815
    %v2817 = vpop.f32.mrb[0].mxu0
    %v2818 = vadd.f32 %v1054, %v2817
    %v2819 = vpop.f32.mrb[0].mxu0
    %v2820 = vadd.f32 %v1058, %v2819
    %2821 = vmatprep.mubr.bf16.mxu0 %v738
    %2822 = vmatmul.mubr.bf16.gmra.mrb[0].mxu0 %v737
    %v2823 = vpop.f32.mrb[0].mxu0
    %v2824 = vadd.f32 %v1054, %v2823
    %v2825 = vpop.f32.mrb[0].mxu0
    %v2826 = vadd.f32 %v1058, %v2825
    %v2827 = vpop.f32.mrb[0].mxu0
    %v2828 = vadd.f32 %v1054, %v2827
    %v2829 = vpop.f32.mrb[0].mxu0
    %v2830 = vadd.f32 %v1058, %v2829
    %2831 = vmatprep.mubr.bf16.mxu0 %v742
    %2832 = vmatmul.mubr.bf16.gmra.mrb[0].mxu0 %v741
    %v2833 = vpop.f32.mrb[0].mxu0
    %v2834 = vadd.f32 %v1054, %v2833
    %v2835 = vpop.f32.mrb[0].mxu0
    %v2836 = vadd.f32 %v1058, %v2835
    %v2837 = vpop.f32.mrb[0].mxu0
    %v2838 = vadd.f32 %v1054, %v2837
    %v2839 = vpop.f32.mrb[0].mxu0
    %v2840 = vadd.f32 %v1058, %v2839
    %2841 = vmatprep.mubr.bf16.mxu0 %v746
    %2842 = vmatmul.mubr.bf16.gmra.mrb[0].mxu0 %v745
    %v2843 = vpop.f32.mrb[0].mxu0
    %v2844 = vadd.f32 %v1054, %v2843
    %v2845 = vpop.f32.mrb[0].mxu0
    %v2846 = vadd.f32 %v1058, %v2845
    %v2847 = vpop.f32.mrb[0].mxu0
    %v2848 = vadd.f32 %v1054, %v2847
    %v2849 = vpop.f32.mrb[0].mxu0
    %v2850 = vadd.f32 %v1058, %v2849
    %2851 = vmatprep.mubr.bf16.mxu0 %v750
    %2852 = vmatmul.mubr.bf16.gmra.mrb[0].mxu0 %v749
    %v2853 = vpop.f32.mrb[0].mxu0
    %v2854 = vadd.f32 %v1054, %v2853
    %v2855 = vpop.f32.mrb[0].mxu0
    %v2856 = vadd.f32 %v1058, %v2855
    %v2857 = vpop.f32.mrb[0].mxu0
    %v2858 = vadd.f32 %v1054, %v2857
    %v2859 = vpop.f32.mrb[0].mxu0
    %v2860 = vadd.f32 %v1058, %v2859
    %2861 = vmatprep.mubr.bf16.mxu0 %v754
    %2862 = vmatmul.mubr.bf16.gmra.mrb[0].mxu0 %v753
    %v2863 = vpop.f32.mrb[0].mxu0
    %v2864 = vadd.f32 %v1054, %v2863
    %v2865 = vpop.f32.mrb[0].mxu0
    %v2866 = vadd.f32 %v1058, %v2865
    %v2867 = vpop.f32.mrb[0].mxu0
    %v2868 = vadd.f32 %v1054, %v2867
    %v2869 = vpop.f32.mrb[0].mxu0
    %v2870 = vadd.f32 %v1058, %v2869
    %2871 = vmatprep.mubr.bf16.mxu0 %v758
    %2872 = vmatmul.mubr.bf16.gmra.mrb[0].mxu0 %v757
    %v2873 = vpop.f32.mrb[0].mxu0
    %v2874 = vadd.f32 %v1054, %v2873
    %v2875 = vpop.f32.mrb[0].mxu0
    %v2876 = vadd.f32 %v1058, %v2875
    %v2877 = vpop.f32.mrb[0].mxu0
    %v2878 = vadd.f32 %v1054, %v2877
    %v2879 = vpop.f32.mrb[0].mxu0
    %v2880 = vadd.f32 %v1058, %v2879
    %2881 = vmatprep.mubr.bf16.mxu0 %v762
    %2882 = vmatmul.mubr.bf16.gmra.mrb[0].mxu0 %v761
    %v2883 = vpop.f32.mrb[0].mxu0
    %v2884 = vadd.f32 %v1054, %v2883
    %v2885 = vpop.f32.mrb[0].mxu0
    %v2886 = vadd.f32 %v1058, %v2885
    %v2887 = vpop.f32.mrb[0].mxu0
    %v2888 = vadd.f32 %v1054, %v2887
    %v2889 = vpop.f32.mrb[0].mxu0
    %v2890 = vadd.f32 %v1058, %v2889
    %2891 = vmatprep.mubr.bf16.mxu0 %v766
    %2892 = vmatmul.mubr.bf16.gmra.mrb[0].mxu0 %v765
    %v2893 = vpop.f32.mrb[0].mxu0
    %v2894 = vadd.f32 %v1054, %v2893
    %v2895 = vpop.f32.mrb[0].mxu0
    %v2896 = vadd.f32 %v1058, %v2895
    %v2897 = vpop.f32.mrb[0].mxu0
    %v2898 = vadd.f32 %v1054, %v2897
    %v2899 = vpop.f32.mrb[0].mxu0
    %v2900 = vadd.f32 %v1058, %v2899
    %2901 = vmatprep.mubr.bf16.mxu0 %v770
    %2902 = vmatmul.mubr.bf16.gmra.mrb[0].mxu0 %v769
    %v2903 = vpop.f32.mrb[0].mxu0
    %v2904 = vadd.f32 %v1054, %v2903
    %v2905 = vpop.f32.mrb[0].mxu0
    %v2906 = vadd.f32 %v1058, %v2905
    %v2907 = vpop.f32.mrb[0].mxu0
    %v2908 = vadd.f32 %v1054, %v2907
    %v2909 = vpop.f32.mrb[0].mxu0
    %v2910 = vadd.f32 %v1058, %v2909
    %2911 = vmatprep.mubr.bf16.mxu0 %v774
    %2912 = vmatmul.mubr.bf16.gmra.mrb[0].mxu0 %v773
    %v2913 = vpop.f32.mrb[0].mxu0
    %v2914 = vadd.f32 %v1054, %v2913
    %v2915 = vpop.f32.mrb[0].mxu0
    %v2916 = vadd.f32 %v1058, %v2915
    %v2917 = vpop.f32.mrb[0].mxu0
    %v2918 = vadd.f32 %v1054, %v2917
    %v2919 = vpop.f32.mrb[0].mxu0
    %v2920 = vadd.f32 %v1058, %v2919
    %2921 = vmatprep.mubr.bf16.mxu0 %v778
    %2922 = vmatmul.mubr.bf16.gmra.mrb[0].mxu0 %v777
    %v2923 = vpop.f32.mrb[0].mxu0
    %v2924 = vadd.f32 %v1054, %v2923
    %v2925 = vpop.f32.mrb[0].mxu0
    %v2926 = vadd.f32 %v1058, %v2925
    %v2927 = vpop.f32.mrb[0].mxu0
    %v2928 = vadd.f32 %v1054, %v2927
    %v2929 = vpop.f32.mrb[0].mxu0
    %v2930 = vadd.f32 %v1058, %v2929
    %2931 = vmatprep.mubr.bf16.mxu0 %v782
    %2932 = vmatmul.mubr.bf16.gmra.mrb[0].mxu0 %v781
    %v2933 = vpop.f32.mrb[0].mxu0
    %v2934 = vadd.f32 %v1054, %v2933
    %v2935 = vpop.f32.mrb[0].mxu0
    %v2936 = vadd.f32 %v1058, %v2935
    %v2937 = vpop.f32.mrb[0].mxu0
    %v2938 = vadd.f32 %v1054, %v2937
    %v2939 = vpop.f32.mrb[0].mxu0
    %v2940 = vadd.f32 %v1058, %v2939
    %2941 = vdwg.mxu0
    %2942 = vmatprep.subr.bf16.mxu0 %v1982
    %2943 = vmatpush1.bf16.msra.mxu0 %v1981
    %2944 = vmatprep.subr.bf16.mxu0 %v1990
    %2945 = vmatpush1.bf16.msra.mxu0 %v1989
    %2946 = vmatprep.subr.bf16.mxu0 %v1998
    %2947 = vmatpush1.bf16.msra.mxu0 %v1997
    %2948 = vmatprep.subr.bf16.mxu0 %v2006
    %2949 = vmatpush1.bf16.msra.mxu0 %v2005
    %2950 = vmatprep.subr.bf16.mxu0 %v2014
    %2951 = vmatpush1.bf16.msra.mxu0 %v2013
    %2952 = vmatprep.subr.bf16.mxu0 %v2022
    %2953 = vmatpush1.bf16.msra.mxu0 %v2021
    %2954 = vmatprep.subr.bf16.mxu0 %v2030
    %2955 = vmatpush1.bf16.msra.mxu0 %v2029
    %2956 = vmatprep.subr.bf16.mxu0 %v2038
    %2957 = vmatpush1.bf16.msra.mxu0 %v2037
    %2958 = vmatprep.subr.bf16.mxu0 %v2046
    %2959 = vmatpush1.bf16.msra.mxu0 %v2045
    %2960 = vmatprep.subr.bf16.mxu0 %v2054
    %2961 = vmatpush1.bf16.msra.mxu0 %v2053
    %2962 = vmatprep.subr.bf16.mxu0 %v2062
    %2963 = vmatpush1.bf16.msra.mxu0 %v2061
    %2964 = vmatprep.subr.bf16.mxu0 %v2070
    %2965 = vmatpush1.bf16.msra.mxu0 %v2069
    %2966 = vmatprep.subr.bf16.mxu0 %v2078
    %2967 = vmatpush1.bf16.msra.mxu0 %v2077
    %2968 = vmatprep.subr.bf16.mxu0 %v2086
    %2969 = vmatpush1.bf16.msra.mxu0 %v2085
    %2970 = vmatprep.subr.bf16.mxu0 %v2094
    %2971 = vmatpush1.bf16.msra.mxu0 %v2093
    %2972 = vmatprep.subr.bf16.mxu0 %v2102
    %2973 = vmatpush1.bf16.msra.mxu0 %v2101
    %2974 = vmatprep.mubr.bf16.mxu0 %v724
    %2975 = vmatmul.mubr.bf16.gmra.mrb[0].mxu0 %v723
    %v2976 = vpop.f32.mrb[0].mxu0
    %v2977 = vadd.f32 %v2784, %v2976
    %v2978 = vpop.f32.mrb[0].mxu0
    %v2979 = vadd.f32 %v2786, %v2978
    %v2980 = vpop.f32.mrb[0].mxu0
    %v2981 = vadd.f32 %v2788, %v2980
    %v2982 = vpop.f32.mrb[0].mxu0
    %v2983 = vadd.f32 %v2790, %v2982
    %2984 = vmatprep.mubr.bf16.mxu0 %v728
    %2985 = vmatmul.mubr.bf16.gmra.mrb[0].mxu0 %v727
    %v2986 = vpop.f32.mrb[0].mxu0
    %v2987 = vadd.f32 %v2794, %v2986
    %v2988 = vpop.f32.mrb[0].mxu0
    %v2989 = vadd.f32 %v2796, %v2988
    %v2990 = vpop.f32.mrb[0].mxu0
    %v2991 = vadd.f32 %v2798, %v2990
    %v2992 = vpop.f32.mrb[0].mxu0
    %v2993 = vadd.f32 %v2800, %v2992
    %2994 = vmatprep.mubr.bf16.mxu0 %v732
    %2995 = vmatmul.mubr.bf16.gmra.mrb[0].mxu0 %v731
    %v2996 = vpop.f32.mrb[0].mxu0
    %v2997 = vadd.f32 %v2804, %v2996
    %v2998 = vpop.f32.mrb[0].mxu0
    %v2999 = vadd.f32 %v2806, %v2998
    %v3000 = vpop.f32.mrb[0].mxu0
    %v3001 = vadd.f32 %v2808, %v3000
    %v3002 = vpop.f32.mrb[0].mxu0
    %v3003 = vadd.f32 %v2810, %v3002
    %3004 = vmatprep.mubr.bf16.mxu0 %v736
    %3005 = vmatmul.mubr.bf16.gmra.mrb[0].mxu0 %v735
    %v3006 = vpop.f32.mrb[0].mxu0
    %v3007 = vadd.f32 %v2814, %v3006
    %v3008 = vpop.f32.mrb[0].mxu0
    %v3009 = vadd.f32 %v2816, %v3008
    %v3010 = vpop.f32.mrb[0].mxu0
    %v3011 = vadd.f32 %v2818, %v3010
    %v3012 = vpop.f32.mrb[0].mxu0
    %v3013 = vadd.f32 %v2820, %v3012
    %3014 = vmatprep.mubr.bf16.mxu0 %v740
    %3015 = vmatmul.mubr.bf16.gmra.mrb[0].mxu0 %v739
    %v3016 = vpop.f32.mrb[0].mxu0
    %v3017 = vadd.f32 %v2824, %v3016
    %v3018 = vpop.f32.mrb[0].mxu0
    %v3019 = vadd.f32 %v2826, %v3018
    %v3020 = vpop.f32.mrb[0].mxu0
    %v3021 = vadd.f32 %v2828, %v3020
    %v3022 = vpop.f32.mrb[0].mxu0
    %v3023 = vadd.f32 %v2830, %v3022
    %3024 = vmatprep.mubr.bf16.mxu0 %v744
    %3025 = vmatmul.mubr.bf16.gmra.mrb[0].mxu0 %v743
    %v3026 = vpop.f32.mrb[0].mxu0
    %v3027 = vadd.f32 %v2834, %v3026
    %v3028 = vpop.f32.mrb[0].mxu0
    %v3029 = vadd.f32 %v2836, %v3028
    %v3030 = vpop.f32.mrb[0].mxu0
    %v3031 = vadd.f32 %v2838, %v3030
    %v3032 = vpop.f32.mrb[0].mxu0
    %v3033 = vadd.f32 %v2840, %v3032
    %3034 = vmatprep.mubr.bf16.mxu0 %v748
    %3035 = vmatmul.mubr.bf16.gmra.mrb[0].mxu0 %v747
    %v3036 = vpop.f32.mrb[0].mxu0
    %v3037 = vadd.f32 %v2844, %v3036
    %v3038 = vpop.f32.mrb[0].mxu0
    %v3039 = vadd.f32 %v2846, %v3038
    %v3040 = vpop.f32.mrb[0].mxu0
    %v3041 = vadd.f32 %v2848, %v3040
    %v3042 = vpop.f32.mrb[0].mxu0
    %v3043 = vadd.f32 %v2850, %v3042
    %3044 = vmatprep.mubr.bf16.mxu0 %v752
    %3045 = vmatmul.mubr.bf16.gmra.mrb[0].mxu0 %v751
    %v3046 = vpop.f32.mrb[0].mxu0
    %v3047 = vadd.f32 %v2854, %v3046
    %v3048 = vpop.f32.mrb[0].mxu0
    %v3049 = vadd.f32 %v2856, %v3048
    %v3050 = vpop.f32.mrb[0].mxu0
    %v3051 = vadd.f32 %v2858, %v3050
    %v3052 = vpop.f32.mrb[0].mxu0
    %v3053 = vadd.f32 %v2860, %v3052
    %3054 = vmatprep.mubr.bf16.mxu0 %v756
    %3055 = vmatmul.mubr.bf16.gmra.mrb[0].mxu0 %v755
    %v3056 = vpop.f32.mrb[0].mxu0
    %v3057 = vadd.f32 %v2864, %v3056
    %v3058 = vpop.f32.mrb[0].mxu0
    %v3059 = vadd.f32 %v2866, %v3058
    %v3060 = vpop.f32.mrb[0].mxu0
    %v3061 = vadd.f32 %v2868, %v3060
    %v3062 = vpop.f32.mrb[0].mxu0
    %v3063 = vadd.f32 %v2870, %v3062
    %3064 = vmatprep.mubr.bf16.mxu0 %v760
    %3065 = vmatmul.mubr.bf16.gmra.mrb[0].mxu0 %v759
    %v3066 = vpop.f32.mrb[0].mxu0
    %v3067 = vadd.f32 %v2874, %v3066
    %v3068 = vpop.f32.mrb[0].mxu0
    %v3069 = vadd.f32 %v2876, %v3068
    %v3070 = vpop.f32.mrb[0].mxu0
    %v3071 = vadd.f32 %v2878, %v3070
    %v3072 = vpop.f32.mrb[0].mxu0
    %v3073 = vadd.f32 %v2880, %v3072
    %3074 = vmatprep.mubr.bf16.mxu0 %v764
    %3075 = vmatmul.mubr.bf16.gmra.mrb[0].mxu0 %v763
    %v3076 = vpop.f32.mrb[0].mxu0
    %v3077 = vadd.f32 %v2884, %v3076
    %v3078 = vpop.f32.mrb[0].mxu0
    %v3079 = vadd.f32 %v2886, %v3078
    %v3080 = vpop.f32.mrb[0].mxu0
    %v3081 = vadd.f32 %v2888, %v3080
    %v3082 = vpop.f32.mrb[0].mxu0
    %v3083 = vadd.f32 %v2890, %v3082
    %3084 = vmatprep.mubr.bf16.mxu0 %v768
    %3085 = vmatmul.mubr.bf16.gmra.mrb[0].mxu0 %v767
    %v3086 = vpop.f32.mrb[0].mxu0
    %v3087 = vadd.f32 %v2894, %v3086
    %v3088 = vpop.f32.mrb[0].mxu0
    %v3089 = vadd.f32 %v2896, %v3088
    %v3090 = vpop.f32.mrb[0].mxu0
    %v3091 = vadd.f32 %v2898, %v3090
    %v3092 = vpop.f32.mrb[0].mxu0
    %v3093 = vadd.f32 %v2900, %v3092
    %3094 = vmatprep.mubr.bf16.mxu0 %v772
    %3095 = vmatmul.mubr.bf16.gmra.mrb[0].mxu0 %v771
    %v3096 = vpop.f32.mrb[0].mxu0
    %v3097 = vadd.f32 %v2904, %v3096
    %v3098 = vpop.f32.mrb[0].mxu0
    %v3099 = vadd.f32 %v2906, %v3098
    %v3100 = vpop.f32.mrb[0].mxu0
    %v3101 = vadd.f32 %v2908, %v3100
    %v3102 = vpop.f32.mrb[0].mxu0
    %v3103 = vadd.f32 %v2910, %v3102
    %3104 = vmatprep.mubr.bf16.mxu0 %v776
    %3105 = vmatmul.mubr.bf16.gmra.mrb[0].mxu0 %v775
    %v3106 = vpop.f32.mrb[0].mxu0
    %v3107 = vadd.f32 %v2914, %v3106
    %v3108 = vpop.f32.mrb[0].mxu0
    %v3109 = vadd.f32 %v2916, %v3108
    %v3110 = vpop.f32.mrb[0].mxu0
    %v3111 = vadd.f32 %v2918, %v3110
    %v3112 = vpop.f32.mrb[0].mxu0
    %v3113 = vadd.f32 %v2920, %v3112
    %3114 = vmatprep.mubr.bf16.mxu0 %v780
    %3115 = vmatmul.mubr.bf16.gmra.mrb[0].mxu0 %v779
    %v3116 = vpop.f32.mrb[0].mxu0
    %v3117 = vadd.f32 %v2924, %v3116
    %v3118 = vpop.f32.mrb[0].mxu0
    %v3119 = vadd.f32 %v2926, %v3118
    %v3120 = vpop.f32.mrb[0].mxu0
    %v3121 = vadd.f32 %v2928, %v3120
    %v3122 = vpop.f32.mrb[0].mxu0
    %v3123 = vadd.f32 %v2930, %v3122
    %3124 = vmatprep.mubr.bf16.mxu0 %v784
    %3125 = vmatmul.mubr.bf16.gmra.mrb[0].mxu0 %v783
    %v3126 = vpop.f32.mrb[0].mxu0
    %v3127 = vadd.f32 %v2934, %v3126
    %v3128 = vpop.f32.mrb[0].mxu0
    %v3129 = vadd.f32 %v2936, %v3128
    %v3130 = vpop.f32.mrb[0].mxu0
    %v3131 = vadd.f32 %v2938, %v3130
    %v3132 = vpop.f32.mrb[0].mxu0
    %v3133 = vadd.f32 %v2940, %v3132
    %3134 = vdwg.mxu0
    %3135 = vmatprep.subr.bf16.mxu0 %v1856
    %3136 = vmatpush1.bf16.msra.mxu0 %v1855
    %3137 = vmatprep.subr.bf16.mxu0 %v1864
    %3138 = vmatpush1.bf16.msra.mxu0 %v1863
    %3139 = vmatprep.subr.bf16.mxu0 %v1872
    %3140 = vmatpush1.bf16.msra.mxu0 %v1871
    %3141 = vmatprep.subr.bf16.mxu0 %v1880
    %3142 = vmatpush1.bf16.msra.mxu0 %v1879
    %3143 = vmatprep.subr.bf16.mxu0 %v1888
    %3144 = vmatpush1.bf16.msra.mxu0 %v1887
    %3145 = vmatprep.subr.bf16.mxu0 %v1896
    %3146 = vmatpush1.bf16.msra.mxu0 %v1895
    %3147 = vmatprep.subr.bf16.mxu0 %v1904
    %3148 = vmatpush1.bf16.msra.mxu0 %v1903
    %3149 = vmatprep.subr.bf16.mxu0 %v1912
    %3150 = vmatpush1.bf16.msra.mxu0 %v1911
    %3151 = vmatprep.subr.bf16.mxu0 %v1920
    %3152 = vmatpush1.bf16.msra.mxu0 %v1919
    %3153 = vmatprep.subr.bf16.mxu0 %v1928
    %3154 = vmatpush1.bf16.msra.mxu0 %v1927
    %3155 = vmatprep.subr.bf16.mxu0 %v1936
    %3156 = vmatpush1.bf16.msra.mxu0 %v1935
    %3157 = vmatprep.subr.bf16.mxu0 %v1944
    %3158 = vmatpush1.bf16.msra.mxu0 %v1943
    %3159 = vmatprep.subr.bf16.mxu0 %v1952
    %3160 = vmatpush1.bf16.msra.mxu0 %v1951
    %3161 = vmatprep.subr.bf16.mxu0 %v1960
    %3162 = vmatpush1.bf16.msra.mxu0 %v1959
    %3163 = vmatprep.subr.bf16.mxu0 %v1968
    %3164 = vmatpush1.bf16.msra.mxu0 %v1967
    %3165 = vmatprep.subr.bf16.mxu0 %v1976
    %3166 = vmatpush1.bf16.msra.mxu0 %v1975
    %3167 = vmatprep.mubr.bf16.mxu0 %v722
    %3168 = vmatmul.mubr.bf16.gmra.mrb[0].mxu0 %v721
    %v3169 = vpop.f32.mrb[0].mxu0
    %v3170 = vadd.f32 %v1062, %v3169
    %v3171 = vpop.f32.mrb[0].mxu0
    %v3172 = vadd.f32 %v1066, %v3171
    %v3173 = vpop.f32.mrb[0].mxu0
    %v3174 = vadd.f32 %v1062, %v3173
    %v3175 = vpop.f32.mrb[0].mxu0
    %v3176 = vadd.f32 %v1066, %v3175
    %3177 = vmatprep.mubr.bf16.mxu0 %v726
    %3178 = vmatmul.mubr.bf16.gmra.mrb[0].mxu0 %v725
    %v3179 = vpop.f32.mrb[0].mxu0
    %v3180 = vadd.f32 %v1062, %v3179
    %v3181 = vpop.f32.mrb[0].mxu0
    %v3182 = vadd.f32 %v1066, %v3181
    %v3183 = vpop.f32.mrb[0].mxu0
    %v3184 = vadd.f32 %v1062, %v3183
    %v3185 = vpop.f32.mrb[0].mxu0
    %v3186 = vadd.f32 %v1066, %v3185
    %3187 = vmatprep.mubr.bf16.mxu0 %v730
    %3188 = vmatmul.mubr.bf16.gmra.mrb[0].mxu0 %v729
    %v3189 = vpop.f32.mrb[0].mxu0
    %v3190 = vadd.f32 %v1062, %v3189
    %v3191 = vpop.f32.mrb[0].mxu0
    %v3192 = vadd.f32 %v1066, %v3191
    %v3193 = vpop.f32.mrb[0].mxu0
    %v3194 = vadd.f32 %v1062, %v3193
    %v3195 = vpop.f32.mrb[0].mxu0
    %v3196 = vadd.f32 %v1066, %v3195
    %3197 = vmatprep.mubr.bf16.mxu0 %v734
    %3198 = vmatmul.mubr.bf16.gmra.mrb[0].mxu0 %v733
    %v3199 = vpop.f32.mrb[0].mxu0
    %v3200 = vadd.f32 %v1062, %v3199
    %v3201 = vpop.f32.mrb[0].mxu0
    %v3202 = vadd.f32 %v1066, %v3201
    %v3203 = vpop.f32.mrb[0].mxu0
    %v3204 = vadd.f32 %v1062, %v3203
    %v3205 = vpop.f32.mrb[0].mxu0
    %v3206 = vadd.f32 %v1066, %v3205
    %3207 = vmatprep.mubr.bf16.mxu0 %v738
    %3208 = vmatmul.mubr.bf16.gmra.mrb[0].mxu0 %v737
    %v3209 = vpop.f32.mrb[0].mxu0
    %v3210 = vadd.f32 %v1062, %v3209
    %v3211 = vpop.f32.mrb[0].mxu0
    %v3212 = vadd.f32 %v1066, %v3211
    %v3213 = vpop.f32.mrb[0].mxu0
    %v3214 = vadd.f32 %v1062, %v3213
    %v3215 = vpop.f32.mrb[0].mxu0
    %v3216 = vadd.f32 %v1066, %v3215
    %3217 = vmatprep.mubr.bf16.mxu0 %v742
    %3218 = vmatmul.mubr.bf16.gmra.mrb[0].mxu0 %v741
    %v3219 = vpop.f32.mrb[0].mxu0
    %v3220 = vadd.f32 %v1062, %v3219
    %v3221 = vpop.f32.mrb[0].mxu0
    %v3222 = vadd.f32 %v1066, %v3221
    %v3223 = vpop.f32.mrb[0].mxu0
    %v3224 = vadd.f32 %v1062, %v3223
    %v3225 = vpop.f32.mrb[0].mxu0
    %v3226 = vadd.f32 %v1066, %v3225
    %3227 = vmatprep.mubr.bf16.mxu0 %v746
    %3228 = vmatmul.mubr.bf16.gmra.mrb[0].mxu0 %v745
    %v3229 = vpop.f32.mrb[0].mxu0
    %v3230 = vadd.f32 %v1062, %v3229
    %v3231 = vpop.f32.mrb[0].mxu0
    %v3232 = vadd.f32 %v1066, %v3231
    %v3233 = vpop.f32.mrb[0].mxu0
    %v3234 = vadd.f32 %v1062, %v3233
    %v3235 = vpop.f32.mrb[0].mxu0
    %v3236 = vadd.f32 %v1066, %v3235
    %3237 = vmatprep.mubr.bf16.mxu0 %v750
    %3238 = vmatmul.mubr.bf16.gmra.mrb[0].mxu0 %v749
    %v3239 = vpop.f32.mrb[0].mxu0
    %v3240 = vadd.f32 %v1062, %v3239
    %v3241 = vpop.f32.mrb[0].mxu0
    %v3242 = vadd.f32 %v1066, %v3241
    %v3243 = vpop.f32.mrb[0].mxu0
    %v3244 = vadd.f32 %v1062, %v3243
    %v3245 = vpop.f32.mrb[0].mxu0
    %v3246 = vadd.f32 %v1066, %v3245
    %3247 = vmatprep.mubr.bf16.mxu0 %v754
    %3248 = vmatmul.mubr.bf16.gmra.mrb[0].mxu0 %v753
    %v3249 = vpop.f32.mrb[0].mxu0
    %v3250 = vadd.f32 %v1062, %v3249
    %v3251 = vpop.f32.mrb[0].mxu0
    %v3252 = vadd.f32 %v1066, %v3251
    %v3253 = vpop.f32.mrb[0].mxu0
    %v3254 = vadd.f32 %v1062, %v3253
    %v3255 = vpop.f32.mrb[0].mxu0
    %v3256 = vadd.f32 %v1066, %v3255
    %3257 = vmatprep.mubr.bf16.mxu0 %v758
    %3258 = vmatmul.mubr.bf16.gmra.mrb[0].mxu0 %v757
    %v3259 = vpop.f32.mrb[0].mxu0
    %v3260 = vadd.f32 %v1062, %v3259
    %v3261 = vpop.f32.mrb[0].mxu0
    %v3262 = vadd.f32 %v1066, %v3261
    %v3263 = vpop.f32.mrb[0].mxu0
    %v3264 = vadd.f32 %v1062, %v3263
    %v3265 = vpop.f32.mrb[0].mxu0
    %v3266 = vadd.f32 %v1066, %v3265
    %3267 = vmatprep.mubr.bf16.mxu0 %v762
    %3268 = vmatmul.mubr.bf16.gmra.mrb[0].mxu0 %v761
    %v3269 = vpop.f32.mrb[0].mxu0
    %v3270 = vadd.f32 %v1062, %v3269
    %v3271 = vpop.f32.mrb[0].mxu0
    %v3272 = vadd.f32 %v1066, %v3271
    %v3273 = vpop.f32.mrb[0].mxu0
    %v3274 = vadd.f32 %v1062, %v3273
    %v3275 = vpop.f32.mrb[0].mxu0
    %v3276 = vadd.f32 %v1066, %v3275
    %3277 = vmatprep.mubr.bf16.mxu0 %v766
    %3278 = vmatmul.mubr.bf16.gmra.mrb[0].mxu0 %v765
    %v3279 = vpop.f32.mrb[0].mxu0
    %v3280 = vadd.f32 %v1062, %v3279
    %v3281 = vpop.f32.mrb[0].mxu0
    %v3282 = vadd.f32 %v1066, %v3281
    %v3283 = vpop.f32.mrb[0].mxu0
    %v3284 = vadd.f32 %v1062, %v3283
    %v3285 = vpop.f32.mrb[0].mxu0
    %v3286 = vadd.f32 %v1066, %v3285
    %3287 = vmatprep.mubr.bf16.mxu0 %v770
    %3288 = vmatmul.mubr.bf16.gmra.mrb[0].mxu0 %v769
    %v3289 = vpop.f32.mrb[0].mxu0
    %v3290 = vadd.f32 %v1062, %v3289
    %v3291 = vpop.f32.mrb[0].mxu0
    %v3292 = vadd.f32 %v1066, %v3291
    %v3293 = vpop.f32.mrb[0].mxu0
    %v3294 = vadd.f32 %v1062, %v3293
    %v3295 = vpop.f32.mrb[0].mxu0
    %v3296 = vadd.f32 %v1066, %v3295
    %3297 = vmatprep.mubr.bf16.mxu0 %v774
    %3298 = vmatmul.mubr.bf16.gmra.mrb[0].mxu0 %v773
    %v3299 = vpop.f32.mrb[0].mxu0
    %v3300 = vadd.f32 %v1062, %v3299
    %v3301 = vpop.f32.mrb[0].mxu0
    %v3302 = vadd.f32 %v1066, %v3301
    %v3303 = vpop.f32.mrb[0].mxu0
    %v3304 = vadd.f32 %v1062, %v3303
    %v3305 = vpop.f32.mrb[0].mxu0
    %v3306 = vadd.f32 %v1066, %v3305
    %3307 = vmatprep.mubr.bf16.mxu0 %v778
    %3308 = vmatmul.mubr.bf16.gmra.mrb[0].mxu0 %v777
    %v3309 = vpop.f32.mrb[0].mxu0
    %v3310 = vadd.f32 %v1062, %v3309
    %v3311 = vpop.f32.mrb[0].mxu0
    %v3312 = vadd.f32 %v1066, %v3311
    %v3313 = vpop.f32.mrb[0].mxu0
    %v3314 = vadd.f32 %v1062, %v3313
    %v3315 = vpop.f32.mrb[0].mxu0
    %v3316 = vadd.f32 %v1066, %v3315
    %3317 = vmatprep.mubr.bf16.mxu0 %v782
    %3318 = vmatmul.mubr.bf16.gmra.mrb[0].mxu0 %v781
    %v3319 = vpop.f32.mrb[0].mxu0
    %v3320 = vadd.f32 %v1062, %v3319
    %v3321 = vpop.f32.mrb[0].mxu0
    %v3322 = vadd.f32 %v1066, %v3321
    %v3323 = vpop.f32.mrb[0].mxu0
    %v3324 = vadd.f32 %v1062, %v3323
    %v3325 = vpop.f32.mrb[0].mxu0
    %v3326 = vadd.f32 %v1066, %v3325
    %3327 = vdwg.mxu0
    %3328 = vmatprep.subr.bf16.mxu0 %v1984
    %3329 = vmatpush1.bf16.msra.mxu0 %v1983
    %3330 = vmatprep.subr.bf16.mxu0 %v1992
    %3331 = vmatpush1.bf16.msra.mxu0 %v1991
    %3332 = vmatprep.subr.bf16.mxu0 %v2000
    %3333 = vmatpush1.bf16.msra.mxu0 %v1999
    %3334 = vmatprep.subr.bf16.mxu0 %v2008
    %3335 = vmatpush1.bf16.msra.mxu0 %v2007
    %3336 = vmatprep.subr.bf16.mxu0 %v2016
    %3337 = vmatpush1.bf16.msra.mxu0 %v2015
    %3338 = vmatprep.subr.bf16.mxu0 %v2024
    %3339 = vmatpush1.bf16.msra.mxu0 %v2023
    %3340 = vmatprep.subr.bf16.mxu0 %v2032
    %3341 = vmatpush1.bf16.msra.mxu0 %v2031
    %3342 = vmatprep.subr.bf16.mxu0 %v2040
    %3343 = vmatpush1.bf16.msra.mxu0 %v2039
    %3344 = vmatprep.subr.bf16.mxu0 %v2048
    %3345 = vmatpush1.bf16.msra.mxu0 %v2047
    %3346 = vmatprep.subr.bf16.mxu0 %v2056
    %3347 = vmatpush1.bf16.msra.mxu0 %v2055
    %3348 = vmatprep.subr.bf16.mxu0 %v2064
    %3349 = vmatpush1.bf16.msra.mxu0 %v2063
    %3350 = vmatprep.subr.bf16.mxu0 %v2072
    %3351 = vmatpush1.bf16.msra.mxu0 %v2071
    %3352 = vmatprep.subr.bf16.mxu0 %v2080
    %3353 = vmatpush1.bf16.msra.mxu0 %v2079
    %3354 = vmatprep.subr.bf16.mxu0 %v2088
    %3355 = vmatpush1.bf16.msra.mxu0 %v2087
    %3356 = vmatprep.subr.bf16.mxu0 %v2096
    %3357 = vmatpush1.bf16.msra.mxu0 %v2095
    %3358 = vmatprep.subr.bf16.mxu0 %v2104
    %3359 = vmatpush1.bf16.msra.mxu0 %v2103
    %3360 = vmatprep.mubr.bf16.mxu0 %v724
    %3361 = vmatmul.mubr.bf16.gmra.mrb[0].mxu0 %v723
    %v3362 = vpop.f32.mrb[0].mxu0
    %v3363 = vadd.f32 %v3170, %v3362
    %v3364 = vpop.f32.mrb[0].mxu0
    %v3365 = vadd.f32 %v3172, %v3364
    %v3366 = vpop.f32.mrb[0].mxu0
    %v3367 = vadd.f32 %v3174, %v3366
    %v3368 = vpop.f32.mrb[0].mxu0
    %v3369 = vadd.f32 %v3176, %v3368
    %3370 = vmatprep.mubr.bf16.mxu0 %v728
    %3371 = vmatmul.mubr.bf16.gmra.mrb[0].mxu0 %v727
    %v3372 = vpop.f32.mrb[0].mxu0
    %v3373 = vadd.f32 %v3180, %v3372
    %v3374 = vpop.f32.mrb[0].mxu0
    %v3375 = vadd.f32 %v3182, %v3374
    %v3376 = vpop.f32.mrb[0].mxu0
    %v3377 = vadd.f32 %v3184, %v3376
    %v3378 = vpop.f32.mrb[0].mxu0
    %v3379 = vadd.f32 %v3186, %v3378
    %3380 = vmatprep.mubr.bf16.mxu0 %v732
    %3381 = vmatmul.mubr.bf16.gmra.mrb[0].mxu0 %v731
    %v3382 = vpop.f32.mrb[0].mxu0
    %v3383 = vadd.f32 %v3190, %v3382
    %v3384 = vpop.f32.mrb[0].mxu0
    %v3385 = vadd.f32 %v3192, %v3384
    %v3386 = vpop.f32.mrb[0].mxu0
    %v3387 = vadd.f32 %v3194, %v3386
    %v3388 = vpop.f32.mrb[0].mxu0
    %v3389 = vadd.f32 %v3196, %v3388
    %3390 = vmatprep.mubr.bf16.mxu0 %v736
    %3391 = vmatmul.mubr.bf16.gmra.mrb[0].mxu0 %v735
    %v3392 = vpop.f32.mrb[0].mxu0
    %v3393 = vadd.f32 %v3200, %v3392
    %v3394 = vpop.f32.mrb[0].mxu0
    %v3395 = vadd.f32 %v3202, %v3394
    %v3396 = vpop.f32.mrb[0].mxu0
    %v3397 = vadd.f32 %v3204, %v3396
    %v3398 = vpop.f32.mrb[0].mxu0
    %v3399 = vadd.f32 %v3206, %v3398
    %3400 = vmatprep.mubr.bf16.mxu0 %v740
    %3401 = vmatmul.mubr.bf16.gmra.mrb[0].mxu0 %v739
    %v3402 = vpop.f32.mrb[0].mxu0
    %v3403 = vadd.f32 %v3210, %v3402
    %v3404 = vpop.f32.mrb[0].mxu0
    %v3405 = vadd.f32 %v3212, %v3404
    %v3406 = vpop.f32.mrb[0].mxu0
    %v3407 = vadd.f32 %v3214, %v3406
    %v3408 = vpop.f32.mrb[0].mxu0
    %v3409 = vadd.f32 %v3216, %v3408
    %3410 = vmatprep.mubr.bf16.mxu0 %v744
    %3411 = vmatmul.mubr.bf16.gmra.mrb[0].mxu0 %v743
    %v3412 = vpop.f32.mrb[0].mxu0
    %v3413 = vadd.f32 %v3220, %v3412
    %v3414 = vpop.f32.mrb[0].mxu0
    %v3415 = vadd.f32 %v3222, %v3414
    %v3416 = vpop.f32.mrb[0].mxu0
    %v3417 = vadd.f32 %v3224, %v3416
    %v3418 = vpop.f32.mrb[0].mxu0
    %v3419 = vadd.f32 %v3226, %v3418
    %3420 = vmatprep.mubr.bf16.mxu0 %v748
    %3421 = vmatmul.mubr.bf16.gmra.mrb[0].mxu0 %v747
    %v3422 = vpop.f32.mrb[0].mxu0
    %v3423 = vadd.f32 %v3230, %v3422
    %v3424 = vpop.f32.mrb[0].mxu0
    %v3425 = vadd.f32 %v3232, %v3424
    %v3426 = vpop.f32.mrb[0].mxu0
    %v3427 = vadd.f32 %v3234, %v3426
    %v3428 = vpop.f32.mrb[0].mxu0
    %v3429 = vadd.f32 %v3236, %v3428
    %3430 = vmatprep.mubr.bf16.mxu0 %v752
    %3431 = vmatmul.mubr.bf16.gmra.mrb[0].mxu0 %v751
    %v3432 = vpop.f32.mrb[0].mxu0
    %v3433 = vadd.f32 %v3240, %v3432
    %v3434 = vpop.f32.mrb[0].mxu0
    %v3435 = vadd.f32 %v3242, %v3434
    %v3436 = vpop.f32.mrb[0].mxu0
    %v3437 = vadd.f32 %v3244, %v3436
    %v3438 = vpop.f32.mrb[0].mxu0
    %v3439 = vadd.f32 %v3246, %v3438
    %3440 = vmatprep.mubr.bf16.mxu0 %v756
    %3441 = vmatmul.mubr.bf16.gmra.mrb[0].mxu0 %v755
    %v3442 = vpop.f32.mrb[0].mxu0
    %v3443 = vadd.f32 %v3250, %v3442
    %v3444 = vpop.f32.mrb[0].mxu0
    %v3445 = vadd.f32 %v3252, %v3444
    %v3446 = vpop.f32.mrb[0].mxu0
    %v3447 = vadd.f32 %v3254, %v3446
    %v3448 = vpop.f32.mrb[0].mxu0
    %v3449 = vadd.f32 %v3256, %v3448
    %3450 = vmatprep.mubr.bf16.mxu0 %v760
    %3451 = vmatmul.mubr.bf16.gmra.mrb[0].mxu0 %v759
    %v3452 = vpop.f32.mrb[0].mxu0
    %v3453 = vadd.f32 %v3260, %v3452
    %v3454 = vpop.f32.mrb[0].mxu0
    %v3455 = vadd.f32 %v3262, %v3454
    %v3456 = vpop.f32.mrb[0].mxu0
    %v3457 = vadd.f32 %v3264, %v3456
    %v3458 = vpop.f32.mrb[0].mxu0
    %v3459 = vadd.f32 %v3266, %v3458
    %3460 = vmatprep.mubr.bf16.mxu0 %v764
    %3461 = vmatmul.mubr.bf16.gmra.mrb[0].mxu0 %v763
    %v3462 = vpop.f32.mrb[0].mxu0
    %v3463 = vadd.f32 %v3270, %v3462
    %v3464 = vpop.f32.mrb[0].mxu0
    %v3465 = vadd.f32 %v3272, %v3464
    %v3466 = vpop.f32.mrb[0].mxu0
    %v3467 = vadd.f32 %v3274, %v3466
    %v3468 = vpop.f32.mrb[0].mxu0
    %v3469 = vadd.f32 %v3276, %v3468
    %3470 = vmatprep.mubr.bf16.mxu0 %v768
    %3471 = vmatmul.mubr.bf16.gmra.mrb[0].mxu0 %v767
    %v3472 = vpop.f32.mrb[0].mxu0
    %v3473 = vadd.f32 %v3280, %v3472
    %v3474 = vpop.f32.mrb[0].mxu0
    %v3475 = vadd.f32 %v3282, %v3474
    %v3476 = vpop.f32.mrb[0].mxu0
    %v3477 = vadd.f32 %v3284, %v3476
    %v3478 = vpop.f32.mrb[0].mxu0
    %v3479 = vadd.f32 %v3286, %v3478
    %3480 = vmatprep.mubr.bf16.mxu0 %v772
    %3481 = vmatmul.mubr.bf16.gmra.mrb[0].mxu0 %v771
    %v3482 = vpop.f32.mrb[0].mxu0
    %v3483 = vadd.f32 %v3290, %v3482
    %v3484 = vpop.f32.mrb[0].mxu0
    %v3485 = vadd.f32 %v3292, %v3484
    %v3486 = vpop.f32.mrb[0].mxu0
    %v3487 = vadd.f32 %v3294, %v3486
    %v3488 = vpop.f32.mrb[0].mxu0
    %v3489 = vadd.f32 %v3296, %v3488
    %3490 = vmatprep.mubr.bf16.mxu0 %v776
    %3491 = vmatmul.mubr.bf16.gmra.mrb[0].mxu0 %v775
    %v3492 = vpop.f32.mrb[0].mxu0
    %v3493 = vadd.f32 %v3300, %v3492
    %v3494 = vpop.f32.mrb[0].mxu0
    %v3495 = vadd.f32 %v3302, %v3494
    %v3496 = vpop.f32.mrb[0].mxu0
    %v3497 = vadd.f32 %v3304, %v3496
    %v3498 = vpop.f32.mrb[0].mxu0
    %v3499 = vadd.f32 %v3306, %v3498
    %3500 = vmatprep.mubr.bf16.mxu0 %v780
    %3501 = vmatmul.mubr.bf16.gmra.mrb[0].mxu0 %v779
    %v3502 = vpop.f32.mrb[0].mxu0
    %v3503 = vadd.f32 %v3310, %v3502
    %v3504 = vpop.f32.mrb[0].mxu0
    %v3505 = vadd.f32 %v3312, %v3504
    %v3506 = vpop.f32.mrb[0].mxu0
    %v3507 = vadd.f32 %v3314, %v3506
    %v3508 = vpop.f32.mrb[0].mxu0
    %v3509 = vadd.f32 %v3316, %v3508
    %3510 = vmatprep.mubr.bf16.mxu0 %v784
    %3511 = vmatmul.mubr.bf16.gmra.mrb[0].mxu0 %v783
    %v3512 = vpop.f32.mrb[0].mxu0
    %v3513 = vadd.f32 %v3320, %v3512
    %v3514 = vpop.f32.mrb[0].mxu0
    %v3515 = vadd.f32 %v3322, %v3514
    %v3516 = vpop.f32.mrb[0].mxu0
    %v3517 = vadd.f32 %v3324, %v3516
    %v3518 = vpop.f32.mrb[0].mxu0
    %v3519 = vadd.f32 %v3326, %v3518
    %3520 = vdwg.mxu0
    %3521 = vmatprep.subr.bf16.mxu0 %v1858
    %3522 = vmatpush1.bf16.msra.mxu0 %v1857
    %3523 = vmatprep.subr.bf16.mxu0 %v1866
    %3524 = vmatpush1.bf16.msra.mxu0 %v1865
    %3525 = vmatprep.subr.bf16.mxu0 %v1874
    %3526 = vmatpush1.bf16.msra.mxu0 %v1873
    %3527 = vmatprep.subr.bf16.mxu0 %v1882
    %3528 = vmatpush1.bf16.msra.mxu0 %v1881
    %3529 = vmatprep.subr.bf16.mxu0 %v1890
    %3530 = vmatpush1.bf16.msra.mxu0 %v1889
    %3531 = vmatprep.subr.bf16.mxu0 %v1898
    %3532 = vmatpush1.bf16.msra.mxu0 %v1897
    %3533 = vmatprep.subr.bf16.mxu0 %v1906
    %3534 = vmatpush1.bf16.msra.mxu0 %v1905
    %3535 = vmatprep.subr.bf16.mxu0 %v1914
    %3536 = vmatpush1.bf16.msra.mxu0 %v1913
    %3537 = vmatprep.subr.bf16.mxu0 %v1922
    %3538 = vmatpush1.bf16.msra.mxu0 %v1921
    %3539 = vmatprep.subr.bf16.mxu0 %v1930
    %3540 = vmatpush1.bf16.msra.mxu0 %v1929
    %3541 = vmatprep.subr.bf16.mxu0 %v1938
    %3542 = vmatpush1.bf16.msra.mxu0 %v1937
    %3543 = vmatprep.subr.bf16.mxu0 %v1946
    %3544 = vmatpush1.bf16.msra.mxu0 %v1945
    %3545 = vmatprep.subr.bf16.mxu0 %v1954
    %3546 = vmatpush1.bf16.msra.mxu0 %v1953
    %3547 = vmatprep.subr.bf16.mxu0 %v1962
    %3548 = vmatpush1.bf16.msra.mxu0 %v1961
    %3549 = vmatprep.subr.bf16.mxu0 %v1970
    %3550 = vmatpush1.bf16.msra.mxu0 %v1969
    %3551 = vmatprep.subr.bf16.mxu0 %v1978
    %3552 = vmatpush1.bf16.msra.mxu0 %v1977
    %3553 = vmatprep.mubr.bf16.mxu0 %v722
    %3554 = vmatmul.mubr.bf16.gmra.mrb[0].mxu0 %v721
    %v3555 = vpop.f32.mrb[0].mxu0
    %v3556 = vadd.f32 %v1070, %v3555
    %v3557 = vpop.f32.mrb[0].mxu0
    %v3558 = vadd.f32 %v1074, %v3557
    %v3559 = vpop.f32.mrb[0].mxu0
    %v3560 = vadd.f32 %v1070, %v3559
    %v3561 = vpop.f32.mrb[0].mxu0
    %v3562 = vadd.f32 %v1074, %v3561
    %3563 = vmatprep.mubr.bf16.mxu0 %v726
    %3564 = vmatmul.mubr.bf16.gmra.mrb[0].mxu0 %v725
    %v3565 = vpop.f32.mrb[0].mxu0
    %v3566 = vadd.f32 %v1070, %v3565
    %v3567 = vpop.f32.mrb[0].mxu0
    %v3568 = vadd.f32 %v1074, %v3567
    %v3569 = vpop.f32.mrb[0].mxu0
    %v3570 = vadd.f32 %v1070, %v3569
    %v3571 = vpop.f32.mrb[0].mxu0
    %v3572 = vadd.f32 %v1074, %v3571
    %3573 = vmatprep.mubr.bf16.mxu0 %v730
    %3574 = vmatmul.mubr.bf16.gmra.mrb[0].mxu0 %v729
    %v3575 = vpop.f32.mrb[0].mxu0
    %v3576 = vadd.f32 %v1070, %v3575
    %v3577 = vpop.f32.mrb[0].mxu0
    %v3578 = vadd.f32 %v1074, %v3577
    %v3579 = vpop.f32.mrb[0].mxu0
    %v3580 = vadd.f32 %v1070, %v3579
    %v3581 = vpop.f32.mrb[0].mxu0
    %v3582 = vadd.f32 %v1074, %v3581
    %3583 = vmatprep.mubr.bf16.mxu0 %v734
    %3584 = vmatmul.mubr.bf16.gmra.mrb[0].mxu0 %v733
    %v3585 = vpop.f32.mrb[0].mxu0
    %v3586 = vadd.f32 %v1070, %v3585
    %v3587 = vpop.f32.mrb[0].mxu0
    %v3588 = vadd.f32 %v1074, %v3587
    %v3589 = vpop.f32.mrb[0].mxu0
    %v3590 = vadd.f32 %v1070, %v3589
    %v3591 = vpop.f32.mrb[0].mxu0
    %v3592 = vadd.f32 %v1074, %v3591
    %3593 = vmatprep.mubr.bf16.mxu0 %v738
    %3594 = vmatmul.mubr.bf16.gmra.mrb[0].mxu0 %v737
    %v3595 = vpop.f32.mrb[0].mxu0
    %v3596 = vadd.f32 %v1070, %v3595
    %v3597 = vpop.f32.mrb[0].mxu0
    %v3598 = vadd.f32 %v1074, %v3597
    %v3599 = vpop.f32.mrb[0].mxu0
    %v3600 = vadd.f32 %v1070, %v3599
    %v3601 = vpop.f32.mrb[0].mxu0
    %v3602 = vadd.f32 %v1074, %v3601
    %3603 = vmatprep.mubr.bf16.mxu0 %v742
    %3604 = vmatmul.mubr.bf16.gmra.mrb[0].mxu0 %v741
    %v3605 = vpop.f32.mrb[0].mxu0
    %v3606 = vadd.f32 %v1070, %v3605
    %v3607 = vpop.f32.mrb[0].mxu0
    %v3608 = vadd.f32 %v1074, %v3607
    %v3609 = vpop.f32.mrb[0].mxu0
    %v3610 = vadd.f32 %v1070, %v3609
    %v3611 = vpop.f32.mrb[0].mxu0
    %v3612 = vadd.f32 %v1074, %v3611
    %3613 = vmatprep.mubr.bf16.mxu0 %v746
    %3614 = vmatmul.mubr.bf16.gmra.mrb[0].mxu0 %v745
    %v3615 = vpop.f32.mrb[0].mxu0
    %v3616 = vadd.f32 %v1070, %v3615
    %v3617 = vpop.f32.mrb[0].mxu0
    %v3618 = vadd.f32 %v1074, %v3617
    %v3619 = vpop.f32.mrb[0].mxu0
    %v3620 = vadd.f32 %v1070, %v3619
    %v3621 = vpop.f32.mrb[0].mxu0
    %v3622 = vadd.f32 %v1074, %v3621
    %3623 = vmatprep.mubr.bf16.mxu0 %v750
    %3624 = vmatmul.mubr.bf16.gmra.mrb[0].mxu0 %v749
    %v3625 = vpop.f32.mrb[0].mxu0
    %v3626 = vadd.f32 %v1070, %v3625
    %v3627 = vpop.f32.mrb[0].mxu0
    %v3628 = vadd.f32 %v1074, %v3627
    %v3629 = vpop.f32.mrb[0].mxu0
    %v3630 = vadd.f32 %v1070, %v3629
    %v3631 = vpop.f32.mrb[0].mxu0
    %v3632 = vadd.f32 %v1074, %v3631
    %3633 = vmatprep.mubr.bf16.mxu0 %v754
    %3634 = vmatmul.mubr.bf16.gmra.mrb[0].mxu0 %v753
    %v3635 = vpop.f32.mrb[0].mxu0
    %v3636 = vadd.f32 %v1070, %v3635
    %v3637 = vpop.f32.mrb[0].mxu0
    %v3638 = vadd.f32 %v1074, %v3637
    %v3639 = vpop.f32.mrb[0].mxu0
    %v3640 = vadd.f32 %v1070, %v3639
    %v3641 = vpop.f32.mrb[0].mxu0
    %v3642 = vadd.f32 %v1074, %v3641
    %3643 = vmatprep.mubr.bf16.mxu0 %v758
    %3644 = vmatmul.mubr.bf16.gmra.mrb[0].mxu0 %v757
    %v3645 = vpop.f32.mrb[0].mxu0
    %v3646 = vadd.f32 %v1070, %v3645
    %v3647 = vpop.f32.mrb[0].mxu0
    %v3648 = vadd.f32 %v1074, %v3647
    %v3649 = vpop.f32.mrb[0].mxu0
    %v3650 = vadd.f32 %v1070, %v3649
    %v3651 = vpop.f32.mrb[0].mxu0
    %v3652 = vadd.f32 %v1074, %v3651
    %3653 = vmatprep.mubr.bf16.mxu0 %v762
    %3654 = vmatmul.mubr.bf16.gmra.mrb[0].mxu0 %v761
    %v3655 = vpop.f32.mrb[0].mxu0
    %v3656 = vadd.f32 %v1070, %v3655
    %v3657 = vpop.f32.mrb[0].mxu0
    %v3658 = vadd.f32 %v1074, %v3657
    %v3659 = vpop.f32.mrb[0].mxu0
    %v3660 = vadd.f32 %v1070, %v3659
    %v3661 = vpop.f32.mrb[0].mxu0
    %v3662 = vadd.f32 %v1074, %v3661
    %3663 = vmatprep.mubr.bf16.mxu0 %v766
    %3664 = vmatmul.mubr.bf16.gmra.mrb[0].mxu0 %v765
    %v3665 = vpop.f32.mrb[0].mxu0
    %v3666 = vadd.f32 %v1070, %v3665
    %v3667 = vpop.f32.mrb[0].mxu0
    %v3668 = vadd.f32 %v1074, %v3667
    %v3669 = vpop.f32.mrb[0].mxu0
    %v3670 = vadd.f32 %v1070, %v3669
    %v3671 = vpop.f32.mrb[0].mxu0
    %v3672 = vadd.f32 %v1074, %v3671
    %3673 = vmatprep.mubr.bf16.mxu0 %v770
    %3674 = vmatmul.mubr.bf16.gmra.mrb[0].mxu0 %v769
    %v3675 = vpop.f32.mrb[0].mxu0
    %v3676 = vadd.f32 %v1070, %v3675
    %v3677 = vpop.f32.mrb[0].mxu0
    %v3678 = vadd.f32 %v1074, %v3677
    %v3679 = vpop.f32.mrb[0].mxu0
    %v3680 = vadd.f32 %v1070, %v3679
    %v3681 = vpop.f32.mrb[0].mxu0
    %v3682 = vadd.f32 %v1074, %v3681
    %3683 = vmatprep.mubr.bf16.mxu0 %v774
    %3684 = vmatmul.mubr.bf16.gmra.mrb[0].mxu0 %v773
    %v3685 = vpop.f32.mrb[0].mxu0
    %v3686 = vadd.f32 %v1070, %v3685
    %v3687 = vpop.f32.mrb[0].mxu0
    %v3688 = vadd.f32 %v1074, %v3687
    %v3689 = vpop.f32.mrb[0].mxu0
    %v3690 = vadd.f32 %v1070, %v3689
    %v3691 = vpop.f32.mrb[0].mxu0
    %v3692 = vadd.f32 %v1074, %v3691
    %3693 = vmatprep.mubr.bf16.mxu0 %v778
    %3694 = vmatmul.mubr.bf16.gmra.mrb[0].mxu0 %v777
    %v3695 = vpop.f32.mrb[0].mxu0
    %v3696 = vadd.f32 %v1070, %v3695
    %v3697 = vpop.f32.mrb[0].mxu0
    %v3698 = vadd.f32 %v1074, %v3697
    %v3699 = vpop.f32.mrb[0].mxu0
    %v3700 = vadd.f32 %v1070, %v3699
    %v3701 = vpop.f32.mrb[0].mxu0
    %v3702 = vadd.f32 %v1074, %v3701
    %3703 = vmatprep.mubr.bf16.mxu0 %v782
    %3704 = vmatmul.mubr.bf16.gmra.mrb[0].mxu0 %v781
    %v3705 = vpop.f32.mrb[0].mxu0
    %v3706 = vadd.f32 %v1070, %v3705
    %v3707 = vpop.f32.mrb[0].mxu0
    %v3708 = vadd.f32 %v1074, %v3707
    %v3709 = vpop.f32.mrb[0].mxu0
    %v3710 = vadd.f32 %v1070, %v3709
    %v3711 = vpop.f32.mrb[0].mxu0
    %v3712 = vadd.f32 %v1074, %v3711
    %3713 = vdwg.mxu0
    %3714 = vmatprep.subr.bf16.mxu0 %v1986
    %3715 = vmatpush1.bf16.msra.mxu0 %v1985
    %3716 = vmatprep.subr.bf16.mxu0 %v1994
    %3717 = vmatpush1.bf16.msra.mxu0 %v1993
    %3718 = vmatprep.subr.bf16.mxu0 %v2002
    %3719 = vmatpush1.bf16.msra.mxu0 %v2001
    %3720 = vmatprep.subr.bf16.mxu0 %v2010
    %3721 = vmatpush1.bf16.msra.mxu0 %v2009
    %3722 = vmatprep.subr.bf16.mxu0 %v2018
    %3723 = vmatpush1.bf16.msra.mxu0 %v2017
    %3724 = vmatprep.subr.bf16.mxu0 %v2026
    %3725 = vmatpush1.bf16.msra.mxu0 %v2025
    %3726 = vmatprep.subr.bf16.mxu0 %v2034
    %3727 = vmatpush1.bf16.msra.mxu0 %v2033
    %3728 = vmatprep.subr.bf16.mxu0 %v2042
    %3729 = vmatpush1.bf16.msra.mxu0 %v2041
    %3730 = vmatprep.subr.bf16.mxu0 %v2050
    %3731 = vmatpush1.bf16.msra.mxu0 %v2049
    %3732 = vmatprep.subr.bf16.mxu0 %v2058
    %3733 = vmatpush1.bf16.msra.mxu0 %v2057
    %3734 = vmatprep.subr.bf16.mxu0 %v2066
    %3735 = vmatpush1.bf16.msra.mxu0 %v2065
    %3736 = vmatprep.subr.bf16.mxu0 %v2074
    %3737 = vmatpush1.bf16.msra.mxu0 %v2073
    %3738 = vmatprep.subr.bf16.mxu0 %v2082
    %3739 = vmatpush1.bf16.msra.mxu0 %v2081
    %3740 = vmatprep.subr.bf16.mxu0 %v2090
    %3741 = vmatpush1.bf16.msra.mxu0 %v2089
    %3742 = vmatprep.subr.bf16.mxu0 %v2098
    %3743 = vmatpush1.bf16.msra.mxu0 %v2097
    %3744 = vmatprep.subr.bf16.mxu0 %v2106
    %3745 = vmatpush1.bf16.msra.mxu0 %v2105
    %3746 = vmatprep.mubr.bf16.mxu0 %v724
    %3747 = vmatmul.mubr.bf16.gmra.mrb[0].mxu0 %v723
    %v3748 = vpop.f32.mrb[0].mxu0
    %v3749 = vadd.f32 %v3556, %v3748
    %v3750 = vpop.f32.mrb[0].mxu0
    %v3751 = vadd.f32 %v3558, %v3750
    %v3752 = vpop.f32.mrb[0].mxu0
    %v3753 = vadd.f32 %v3560, %v3752
    %v3754 = vpop.f32.mrb[0].mxu0
    %v3755 = vadd.f32 %v3562, %v3754
    %3756 = vmatprep.mubr.bf16.mxu0 %v728
    %3757 = vmatmul.mubr.bf16.gmra.mrb[0].mxu0 %v727
    %v3758 = vpop.f32.mrb[0].mxu0
    %v3759 = vadd.f32 %v3566, %v3758
    %v3760 = vpop.f32.mrb[0].mxu0
    %v3761 = vadd.f32 %v3568, %v3760
    %v3762 = vpop.f32.mrb[0].mxu0
    %v3763 = vadd.f32 %v3570, %v3762
    %v3764 = vpop.f32.mrb[0].mxu0
    %v3765 = vadd.f32 %v3572, %v3764
    %3766 = vmatprep.mubr.bf16.mxu0 %v732
    %3767 = vmatmul.mubr.bf16.gmra.mrb[0].mxu0 %v731
    %v3768 = vpop.f32.mrb[0].mxu0
    %v3769 = vadd.f32 %v3576, %v3768
    %v3770 = vpop.f32.mrb[0].mxu0
    %v3771 = vadd.f32 %v3578, %v3770
    %v3772 = vpop.f32.mrb[0].mxu0
    %v3773 = vadd.f32 %v3580, %v3772
    %v3774 = vpop.f32.mrb[0].mxu0
    %v3775 = vadd.f32 %v3582, %v3774
    %3776 = vmatprep.mubr.bf16.mxu0 %v736
    %3777 = vmatmul.mubr.bf16.gmra.mrb[0].mxu0 %v735
    %v3778 = vpop.f32.mrb[0].mxu0
    %v3779 = vadd.f32 %v3586, %v3778
    %v3780 = vpop.f32.mrb[0].mxu0
    %v3781 = vadd.f32 %v3588, %v3780
    %v3782 = vpop.f32.mrb[0].mxu0
    %v3783 = vadd.f32 %v3590, %v3782
    %v3784 = vpop.f32.mrb[0].mxu0
    %v3785 = vadd.f32 %v3592, %v3784
    %3786 = vmatprep.mubr.bf16.mxu0 %v740
    %3787 = vmatmul.mubr.bf16.gmra.mrb[0].mxu0 %v739
    %v3788 = vpop.f32.mrb[0].mxu0
    %v3789 = vadd.f32 %v3596, %v3788
    %v3790 = vpop.f32.mrb[0].mxu0
    %v3791 = vadd.f32 %v3598, %v3790
    %v3792 = vpop.f32.mrb[0].mxu0
    %v3793 = vadd.f32 %v3600, %v3792
    %v3794 = vpop.f32.mrb[0].mxu0
    %v3795 = vadd.f32 %v3602, %v3794
    %3796 = vmatprep.mubr.bf16.mxu0 %v744
    %3797 = vmatmul.mubr.bf16.gmra.mrb[0].mxu0 %v743
    %v3798 = vpop.f32.mrb[0].mxu0
    %v3799 = vadd.f32 %v3606, %v3798
    %v3800 = vpop.f32.mrb[0].mxu0
    %v3801 = vadd.f32 %v3608, %v3800
    %v3802 = vpop.f32.mrb[0].mxu0
    %v3803 = vadd.f32 %v3610, %v3802
    %v3804 = vpop.f32.mrb[0].mxu0
    %v3805 = vadd.f32 %v3612, %v3804
    %3806 = vmatprep.mubr.bf16.mxu0 %v748
    %3807 = vmatmul.mubr.bf16.gmra.mrb[0].mxu0 %v747
    %v3808 = vpop.f32.mrb[0].mxu0
    %v3809 = vadd.f32 %v3616, %v3808
    %v3810 = vpop.f32.mrb[0].mxu0
    %v3811 = vadd.f32 %v3618, %v3810
    %v3812 = vpop.f32.mrb[0].mxu0
    %v3813 = vadd.f32 %v3620, %v3812
    %v3814 = vpop.f32.mrb[0].mxu0
    %v3815 = vadd.f32 %v3622, %v3814
    %3816 = vmatprep.mubr.bf16.mxu0 %v752
    %3817 = vmatmul.mubr.bf16.gmra.mrb[0].mxu0 %v751
    %v3818 = vpop.f32.mrb[0].mxu0
    %v3819 = vadd.f32 %v3626, %v3818
    %v3820 = vpop.f32.mrb[0].mxu0
    %v3821 = vadd.f32 %v3628, %v3820
    %v3822 = vpop.f32.mrb[0].mxu0
    %v3823 = vadd.f32 %v3630, %v3822
    %v3824 = vpop.f32.mrb[0].mxu0
    %v3825 = vadd.f32 %v3632, %v3824
    %3826 = vmatprep.mubr.bf16.mxu0 %v756
    %3827 = vmatmul.mubr.bf16.gmra.mrb[0].mxu0 %v755
    %v3828 = vpop.f32.mrb[0].mxu0
    %v3829 = vadd.f32 %v3636, %v3828
    %v3830 = vpop.f32.mrb[0].mxu0
    %v3831 = vadd.f32 %v3638, %v3830
    %v3832 = vpop.f32.mrb[0].mxu0
    %v3833 = vadd.f32 %v3640, %v3832
    %v3834 = vpop.f32.mrb[0].mxu0
    %v3835 = vadd.f32 %v3642, %v3834
    %3836 = vmatprep.mubr.bf16.mxu0 %v760
    %3837 = vmatmul.mubr.bf16.gmra.mrb[0].mxu0 %v759
    %v3838 = vpop.f32.mrb[0].mxu0
    %v3839 = vadd.f32 %v3646, %v3838
    %v3840 = vpop.f32.mrb[0].mxu0
    %v3841 = vadd.f32 %v3648, %v3840
    %v3842 = vpop.f32.mrb[0].mxu0
    %v3843 = vadd.f32 %v3650, %v3842
    %v3844 = vpop.f32.mrb[0].mxu0
    %v3845 = vadd.f32 %v3652, %v3844
    %3846 = vmatprep.mubr.bf16.mxu0 %v764
    %3847 = vmatmul.mubr.bf16.gmra.mrb[0].mxu0 %v763
    %v3848 = vpop.f32.mrb[0].mxu0
    %v3849 = vadd.f32 %v3656, %v3848
    %v3850 = vpop.f32.mrb[0].mxu0
    %v3851 = vadd.f32 %v3658, %v3850
    %v3852 = vpop.f32.mrb[0].mxu0
    %v3853 = vadd.f32 %v3660, %v3852
    %v3854 = vpop.f32.mrb[0].mxu0
    %v3855 = vadd.f32 %v3662, %v3854
    %3856 = vmatprep.mubr.bf16.mxu0 %v768
    %3857 = vmatmul.mubr.bf16.gmra.mrb[0].mxu0 %v767
    %v3858 = vpop.f32.mrb[0].mxu0
    %v3859 = vadd.f32 %v3666, %v3858
    %v3860 = vpop.f32.mrb[0].mxu0
    %v3861 = vadd.f32 %v3668, %v3860
    %v3862 = vpop.f32.mrb[0].mxu0
    %v3863 = vadd.f32 %v3670, %v3862
    %v3864 = vpop.f32.mrb[0].mxu0
    %v3865 = vadd.f32 %v3672, %v3864
    %3866 = vmatprep.mubr.bf16.mxu0 %v772
    %3867 = vmatmul.mubr.bf16.gmra.mrb[0].mxu0 %v771
    %v3868 = vpop.f32.mrb[0].mxu0
    %v3869 = vadd.f32 %v3676, %v3868
    %v3870 = vpop.f32.mrb[0].mxu0
    %v3871 = vadd.f32 %v3678, %v3870
    %v3872 = vpop.f32.mrb[0].mxu0
    %v3873 = vadd.f32 %v3680, %v3872
    %v3874 = vpop.f32.mrb[0].mxu0
    %v3875 = vadd.f32 %v3682, %v3874
    %3876 = vmatprep.mubr.bf16.mxu0 %v776
    %3877 = vmatmul.mubr.bf16.gmra.mrb[0].mxu0 %v775
    %v3878 = vpop.f32.mrb[0].mxu0
    %v3879 = vadd.f32 %v3686, %v3878
    %v3880 = vpop.f32.mrb[0].mxu0
    %v3881 = vadd.f32 %v3688, %v3880
    %v3882 = vpop.f32.mrb[0].mxu0
    %v3883 = vadd.f32 %v3690, %v3882
    %v3884 = vpop.f32.mrb[0].mxu0
    %v3885 = vadd.f32 %v3692, %v3884
    %3886 = vmatprep.mubr.bf16.mxu0 %v780
    %3887 = vmatmul.mubr.bf16.gmra.mrb[0].mxu0 %v779
    %v3888 = vpop.f32.mrb[0].mxu0
    %v3889 = vadd.f32 %v3696, %v3888
    %v3890 = vpop.f32.mrb[0].mxu0
    %v3891 = vadd.f32 %v3698, %v3890
    %v3892 = vpop.f32.mrb[0].mxu0
    %v3893 = vadd.f32 %v3700, %v3892
    %v3894 = vpop.f32.mrb[0].mxu0
    %v3895 = vadd.f32 %v3702, %v3894
    %3896 = vmatprep.mubr.bf16.mxu0 %v784
    %3897 = vmatmul.mubr.bf16.gmra.mrb[0].mxu0 %v783
    %v3898 = vpop.f32.mrb[0].mxu0
    %v3899 = vadd.f32 %v3706, %v3898
    %v3900 = vpop.f32.mrb[0].mxu0
    %v3901 = vadd.f32 %v3708, %v3900
    %v3902 = vpop.f32.mrb[0].mxu0
    %v3903 = vadd.f32 %v3710, %v3902
    %v3904 = vpop.f32.mrb[0].mxu0
    %v3905 = vadd.f32 %v3712, %v3904
    %3906 = vdwg.mxu0
    %v3907 = vmax.f32 %v2591, 0.0
    %v3908 = vmax.f32 %v2593, 0.0
    %v3909 = vmax.f32 %v2977, 0.0
    %v3910 = vmax.f32 %v2979, 0.0
    %v3911 = vmax.f32 %v3363, 0.0
    %v3912 = vmax.f32 %v3365, 0.0
    %v3913 = vmax.f32 %v3749, 0.0
    %v3914 = vmax.f32 %v3751, 0.0
    %v3915 = vmax.f32 %v2595, 0.0
    %v3916 = vmax.f32 %v2597, 0.0
    %v3917 = vmax.f32 %v2981, 0.0
    %v3918 = vmax.f32 %v2983, 0.0
    %v3919 = vmax.f32 %v3367, 0.0
    %v3920 = vmax.f32 %v3369, 0.0
    %v3921 = vmax.f32 %v3753, 0.0
    %v3922 = vmax.f32 %v3755, 0.0
    %v3923 = vmax.f32 %v2601, 0.0
    %v3924 = vmax.f32 %v2603, 0.0
    %v3925 = vmax.f32 %v2987, 0.0
    %v3926 = vmax.f32 %v2989, 0.0
    %v3927 = vmax.f32 %v3373, 0.0
    %v3928 = vmax.f32 %v3375, 0.0
    %v3929 = vmax.f32 %v3759, 0.0
    %v3930 = vmax.f32 %v3761, 0.0
    %v3931 = vmax.f32 %v2605, 0.0
    %v3932 = vmax.f32 %v2607, 0.0
    %v3933 = vmax.f32 %v2991, 0.0
    %v3934 = vmax.f32 %v2993, 0.0
    %v3935 = vmax.f32 %v3377, 0.0
    %v3936 = vmax.f32 %v3379, 0.0
    %v3937 = vmax.f32 %v3763, 0.0
    %v3938 = vmax.f32 %v3765, 0.0
    %v3939 = vmax.f32 %v2611, 0.0
    %v3940 = vmax.f32 %v2613, 0.0
    %v3941 = vmax.f32 %v2997, 0.0
    %v3942 = vmax.f32 %v2999, 0.0
    %v3943 = vmax.f32 %v3383, 0.0
    %v3944 = vmax.f32 %v3385, 0.0
    %v3945 = vmax.f32 %v3769, 0.0
    %v3946 = vmax.f32 %v3771, 0.0
    %v3947 = vmax.f32 %v2615, 0.0
    %v3948 = vmax.f32 %v2617, 0.0
    %v3949 = vmax.f32 %v3001, 0.0
    %v3950 = vmax.f32 %v3003, 0.0
    %v3951 = vmax.f32 %v3387, 0.0
    %v3952 = vmax.f32 %v3389, 0.0
    %v3953 = vmax.f32 %v3773, 0.0
    %v3954 = vmax.f32 %v3775, 0.0
    %v3955 = vmax.f32 %v2621, 0.0
    %v3956 = vmax.f32 %v2623, 0.0
    %v3957 = vmax.f32 %v3007, 0.0
    %v3958 = vmax.f32 %v3009, 0.0
    %v3959 = vmax.f32 %v3393, 0.0
    %v3960 = vmax.f32 %v3395, 0.0
    %v3961 = vmax.f32 %v3779, 0.0
    %v3962 = vmax.f32 %v3781, 0.0
    %v3963 = vmax.f32 %v2625, 0.0
    %v3964 = vmax.f32 %v2627, 0.0
    %v3965 = vmax.f32 %v3011, 0.0
    %v3966 = vmax.f32 %v3013, 0.0
    %v3967 = vmax.f32 %v3397, 0.0
    %v3968 = vmax.f32 %v3399, 0.0
    %v3969 = vmax.f32 %v3783, 0.0
    %v3970 = vmax.f32 %v3785, 0.0
    %v3971 = vmax.f32 %v2631, 0.0
    %v3972 = vmax.f32 %v2633, 0.0
    %v3973 = vmax.f32 %v3017, 0.0
    %v3974 = vmax.f32 %v3019, 0.0
    %v3975 = vmax.f32 %v3403, 0.0
    %v3976 = vmax.f32 %v3405, 0.0
    %v3977 = vmax.f32 %v3789, 0.0
    %v3978 = vmax.f32 %v3791, 0.0
    %v3979 = vmax.f32 %v2635, 0.0
    %v3980 = vmax.f32 %v2637, 0.0
    %v3981 = vmax.f32 %v3021, 0.0
    %v3982 = vmax.f32 %v3023, 0.0
    %v3983 = vmax.f32 %v3407, 0.0
    %v3984 = vmax.f32 %v3409, 0.0
    %v3985 = vmax.f32 %v3793, 0.0
    %v3986 = vmax.f32 %v3795, 0.0
    %v3987 = vmax.f32 %v2641, 0.0
    %v3988 = vmax.f32 %v2643, 0.0
    %v3989 = vmax.f32 %v3027, 0.0
    %v3990 = vmax.f32 %v3029, 0.0
    %v3991 = vmax.f32 %v3413, 0.0
    %v3992 = vmax.f32 %v3415, 0.0
    %v3993 = vmax.f32 %v3799, 0.0
    %v3994 = vmax.f32 %v3801, 0.0
    %v3995 = vmax.f32 %v2645, 0.0
    %v3996 = vmax.f32 %v2647, 0.0
    %v3997 = vmax.f32 %v3031, 0.0
    %v3998 = vmax.f32 %v3033, 0.0
    %v3999 = vmax.f32 %v3417, 0.0
    %v4000 = vmax.f32 %v3419, 0.0
    %v4001 = vmax.f32 %v3803, 0.0
    %v4002 = vmax.f32 %v3805, 0.0
    %v4003 = vmax.f32 %v2651, 0.0
    %v4004 = vmax.f32 %v2653, 0.0
    %v4005 = vmax.f32 %v3037, 0.0
    %v4006 = vmax.f32 %v3039, 0.0
    %v4007 = vmax.f32 %v3423, 0.0
    %v4008 = vmax.f32 %v3425, 0.0
    %v4009 = vmax.f32 %v3809, 0.0
    %v4010 = vmax.f32 %v3811, 0.0
    %v4011 = vmax.f32 %v2655, 0.0
    %v4012 = vmax.f32 %v2657, 0.0
    %v4013 = vmax.f32 %v3041, 0.0
    %v4014 = vmax.f32 %v3043, 0.0
    %v4015 = vmax.f32 %v3427, 0.0
    %v4016 = vmax.f32 %v3429, 0.0
    %v4017 = vmax.f32 %v3813, 0.0
    %v4018 = vmax.f32 %v3815, 0.0
    %v4019 = vmax.f32 %v2661, 0.0
    %v4020 = vmax.f32 %v2663, 0.0
    %v4021 = vmax.f32 %v3047, 0.0
    %v4022 = vmax.f32 %v3049, 0.0
    %v4023 = vmax.f32 %v3433, 0.0
    %v4024 = vmax.f32 %v3435, 0.0
    %v4025 = vmax.f32 %v3819, 0.0
    %v4026 = vmax.f32 %v3821, 0.0
    %v4027 = vmax.f32 %v2665, 0.0
    %v4028 = vmax.f32 %v2667, 0.0
    %v4029 = vmax.f32 %v3051, 0.0
    %v4030 = vmax.f32 %v3053, 0.0
    %v4031 = vmax.f32 %v3437, 0.0
    %v4032 = vmax.f32 %v3439, 0.0
    %v4033 = vmax.f32 %v3823, 0.0
    %v4034 = vmax.f32 %v3825, 0.0
    %v4035 = vmax.f32 %v2671, 0.0
    %v4036 = vmax.f32 %v2673, 0.0
    %v4037 = vmax.f32 %v3057, 0.0
    %v4038 = vmax.f32 %v3059, 0.0
    %v4039 = vmax.f32 %v3443, 0.0
    %v4040 = vmax.f32 %v3445, 0.0
    %v4041 = vmax.f32 %v3829, 0.0
    %v4042 = vmax.f32 %v3831, 0.0
    %v4043 = vmax.f32 %v2675, 0.0
    %v4044 = vmax.f32 %v2677, 0.0
    %v4045 = vmax.f32 %v3061, 0.0
    %v4046 = vmax.f32 %v3063, 0.0
    %v4047 = vmax.f32 %v3447, 0.0
    %v4048 = vmax.f32 %v3449, 0.0
    %v4049 = vmax.f32 %v3833, 0.0
    %v4050 = vmax.f32 %v3835, 0.0
    %v4051 = vmax.f32 %v2681, 0.0
    %v4052 = vmax.f32 %v2683, 0.0
    %v4053 = vmax.f32 %v3067, 0.0
    %v4054 = vmax.f32 %v3069, 0.0
    %v4055 = vmax.f32 %v3453, 0.0
    %v4056 = vmax.f32 %v3455, 0.0
    %v4057 = vmax.f32 %v3839, 0.0
    %v4058 = vmax.f32 %v3841, 0.0
    %v4059 = vmax.f32 %v2685, 0.0
    %v4060 = vmax.f32 %v2687, 0.0
    %v4061 = vmax.f32 %v3071, 0.0
    %v4062 = vmax.f32 %v3073, 0.0
    %v4063 = vmax.f32 %v3457, 0.0
    %v4064 = vmax.f32 %v3459, 0.0
    %v4065 = vmax.f32 %v3843, 0.0
    %v4066 = vmax.f32 %v3845, 0.0
    %v4067 = vmax.f32 %v2691, 0.0
    %v4068 = vmax.f32 %v2693, 0.0
    %v4069 = vmax.f32 %v3077, 0.0
    %v4070 = vmax.f32 %v3079, 0.0
    %v4071 = vmax.f32 %v3463, 0.0
    %v4072 = vmax.f32 %v3465, 0.0
    %v4073 = vmax.f32 %v3849, 0.0
    %v4074 = vmax.f32 %v3851, 0.0
    %v4075 = vmax.f32 %v2695, 0.0
    %v4076 = vmax.f32 %v2697, 0.0
    %v4077 = vmax.f32 %v3081, 0.0
    %v4078 = vmax.f32 %v3083, 0.0
    %v4079 = vmax.f32 %v3467, 0.0
    %v4080 = vmax.f32 %v3469, 0.0
    %v4081 = vmax.f32 %v3853, 0.0
    %v4082 = vmax.f32 %v3855, 0.0
    %v4083 = vmax.f32 %v2701, 0.0
    %v4084 = vmax.f32 %v2703, 0.0
    %v4085 = vmax.f32 %v3087, 0.0
    %v4086 = vmax.f32 %v3089, 0.0
    %v4087 = vmax.f32 %v3473, 0.0
    %v4088 = vmax.f32 %v3475, 0.0
    %v4089 = vmax.f32 %v3859, 0.0
    %v4090 = vmax.f32 %v3861, 0.0
    %v4091 = vmax.f32 %v2705, 0.0
    %v4092 = vmax.f32 %v2707, 0.0
    %v4093 = vmax.f32 %v3091, 0.0
    %v4094 = vmax.f32 %v3093, 0.0
    %v4095 = vmax.f32 %v3477, 0.0
    %v4096 = vmax.f32 %v3479, 0.0
    %v4097 = vmax.f32 %v3863, 0.0
    %v4098 = vmax.f32 %v3865, 0.0
    %v4099 = vmax.f32 %v2711, 0.0
    %v4100 = vmax.f32 %v2713, 0.0
    %v4101 = vmax.f32 %v3097, 0.0
    %v4102 = vmax.f32 %v3099, 0.0
    %v4103 = vmax.f32 %v3483, 0.0
    %v4104 = vmax.f32 %v3485, 0.0
    %v4105 = vmax.f32 %v3869, 0.0
    %v4106 = vmax.f32 %v3871, 0.0
    %v4107 = vmax.f32 %v2715, 0.0
    %v4108 = vmax.f32 %v2717, 0.0
    %v4109 = vmax.f32 %v3101, 0.0
    %v4110 = vmax.f32 %v3103, 0.0
    %v4111 = vmax.f32 %v3487, 0.0
    %v4112 = vmax.f32 %v3489, 0.0
    %v4113 = vmax.f32 %v3873, 0.0
    %v4114 = vmax.f32 %v3875, 0.0
    %v4115 = vmax.f32 %v2721, 0.0
    %v4116 = vmax.f32 %v2723, 0.0
    %v4117 = vmax.f32 %v3107, 0.0
    %v4118 = vmax.f32 %v3109, 0.0
    %v4119 = vmax.f32 %v3493, 0.0
    %v4120 = vmax.f32 %v3495, 0.0
    %v4121 = vmax.f32 %v3879, 0.0
    %v4122 = vmax.f32 %v3881, 0.0
    %v4123 = vmax.f32 %v2725, 0.0
    %v4124 = vmax.f32 %v2727, 0.0
    %v4125 = vmax.f32 %v3111, 0.0
    %v4126 = vmax.f32 %v3113, 0.0
    %v4127 = vmax.f32 %v3497, 0.0
    %v4128 = vmax.f32 %v3499, 0.0
    %v4129 = vmax.f32 %v3883, 0.0
    %v4130 = vmax.f32 %v3885, 0.0
    %v4131 = vmax.f32 %v2731, 0.0
    %v4132 = vmax.f32 %v2733, 0.0
    %v4133 = vmax.f32 %v3117, 0.0
    %v4134 = vmax.f32 %v3119, 0.0
    %v4135 = vmax.f32 %v3503, 0.0
    %v4136 = vmax.f32 %v3505, 0.0
    %v4137 = vmax.f32 %v3889, 0.0
    %v4138 = vmax.f32 %v3891, 0.0
    %v4139 = vmax.f32 %v2735, 0.0
    %v4140 = vmax.f32 %v2737, 0.0
    %v4141 = vmax.f32 %v3121, 0.0
    %v4142 = vmax.f32 %v3123, 0.0
    %v4143 = vmax.f32 %v3507, 0.0
    %v4144 = vmax.f32 %v3509, 0.0
    %v4145 = vmax.f32 %v3893, 0.0
    %v4146 = vmax.f32 %v3895, 0.0
    %v4147 = vmax.f32 %v2741, 0.0
    %v4148 = vmax.f32 %v2743, 0.0
    %v4149 = vmax.f32 %v3127, 0.0
    %v4150 = vmax.f32 %v3129, 0.0
    %v4151 = vmax.f32 %v3513, 0.0
    %v4152 = vmax.f32 %v3515, 0.0
    %v4153 = vmax.f32 %v3899, 0.0
    %v4154 = vmax.f32 %v3901, 0.0
    %v4155 = vmax.f32 %v2745, 0.0
    %v4156 = vmax.f32 %v2747, 0.0
    %v4157 = vmax.f32 %v3131, 0.0
    %v4158 = vmax.f32 %v3133, 0.0
    %v4159 = vmax.f32 %v3517, 0.0
    %v4160 = vmax.f32 %v3519, 0.0
    %v4161 = vmax.f32 %v3903, 0.0
    %v4162 = vmax.f32 %v3905, 0.0
    %v4163 = vpack.c.bf16 %v3915, %v3907
    %v4164 = vpack.c.bf16 %v3916, %v3908
    %v4165 = vpack.c.bf16 %v3917, %v3909
    %v4166 = vpack.c.bf16 %v3918, %v3910
    %v4167 = vpack.c.bf16 %v3919, %v3911
    %v4168 = vpack.c.bf16 %v3920, %v3912
    %v4169 = vpack.c.bf16 %v3921, %v3913
    %v4170 = vpack.c.bf16 %v3922, %v3914
    %v4171 = vpack.c.bf16 %v3931, %v3923
    %v4172 = vpack.c.bf16 %v3932, %v3924
    %v4173 = vpack.c.bf16 %v3933, %v3925
    %v4174 = vpack.c.bf16 %v3934, %v3926
    %v4175 = vpack.c.bf16 %v3935, %v3927
    %v4176 = vpack.c.bf16 %v3936, %v3928
    %v4177 = vpack.c.bf16 %v3937, %v3929
    %v4178 = vpack.c.bf16 %v3938, %v3930
    %v4179 = vpack.c.bf16 %v3947, %v3939
    %v4180 = vpack.c.bf16 %v3948, %v3940
    %v4181 = vpack.c.bf16 %v3949, %v3941
    %v4182 = vpack.c.bf16 %v3950, %v3942
    %v4183 = vpack.c.bf16 %v3951, %v3943
    %v4184 = vpack.c.bf16 %v3952, %v3944
    %v4185 = vpack.c.bf16 %v3953, %v3945
    %v4186 = vpack.c.bf16 %v3954, %v3946
    %v4187 = vpack.c.bf16 %v3963, %v3955
    %v4188 = vpack.c.bf16 %v3964, %v3956
    %v4189 = vpack.c.bf16 %v3965, %v3957
    %v4190 = vpack.c.bf16 %v3966, %v3958
    %v4191 = vpack.c.bf16 %v3967, %v3959
    %v4192 = vpack.c.bf16 %v3968, %v3960
    %v4193 = vpack.c.bf16 %v3969, %v3961
    %v4194 = vpack.c.bf16 %v3970, %v3962
    %v4195 = vpack.c.bf16 %v3979, %v3971
    %v4196 = vpack.c.bf16 %v3980, %v3972
    %v4197 = vpack.c.bf16 %v3981, %v3973
    %v4198 = vpack.c.bf16 %v3982, %v3974
    %v4199 = vpack.c.bf16 %v3983, %v3975
    %v4200 = vpack.c.bf16 %v3984, %v3976
    %v4201 = vpack.c.bf16 %v3985, %v3977
    %v4202 = vpack.c.bf16 %v3986, %v3978
    %v4203 = vpack.c.bf16 %v3995, %v3987
    %v4204 = vpack.c.bf16 %v3996, %v3988
    %v4205 = vpack.c.bf16 %v3997, %v3989
    %v4206 = vpack.c.bf16 %v3998, %v3990
    %v4207 = vpack.c.bf16 %v3999, %v3991
    %v4208 = vpack.c.bf16 %v4000, %v3992
    %v4209 = vpack.c.bf16 %v4001, %v3993
    %v4210 = vpack.c.bf16 %v4002, %v3994
    %v4211 = vpack.c.bf16 %v4011, %v4003
    %v4212 = vpack.c.bf16 %v4012, %v4004
    %v4213 = vpack.c.bf16 %v4013, %v4005
    %v4214 = vpack.c.bf16 %v4014, %v4006
    %v4215 = vpack.c.bf16 %v4015, %v4007
    %v4216 = vpack.c.bf16 %v4016, %v4008
    %v4217 = vpack.c.bf16 %v4017, %v4009
    %v4218 = vpack.c.bf16 %v4018, %v4010
    %v4219 = vpack.c.bf16 %v4027, %v4019
    %v4220 = vpack.c.bf16 %v4028, %v4020
    %v4221 = vpack.c.bf16 %v4029, %v4021
    %v4222 = vpack.c.bf16 %v4030, %v4022
    %v4223 = vpack.c.bf16 %v4031, %v4023
    %v4224 = vpack.c.bf16 %v4032, %v4024
    %v4225 = vpack.c.bf16 %v4033, %v4025
    %v4226 = vpack.c.bf16 %v4034, %v4026
    %v4227 = vpack.c.bf16 %v4043, %v4035
    %v4228 = vpack.c.bf16 %v4044, %v4036
    %v4229 = vpack.c.bf16 %v4045, %v4037
    %v4230 = vpack.c.bf16 %v4046, %v4038
    %v4231 = vpack.c.bf16 %v4047, %v4039
    %v4232 = vpack.c.bf16 %v4048, %v4040
    %v4233 = vpack.c.bf16 %v4049, %v4041
    %v4234 = vpack.c.bf16 %v4050, %v4042
    %v4235 = vpack.c.bf16 %v4059, %v4051
    %v4236 = vpack.c.bf16 %v4060, %v4052
    %v4237 = vpack.c.bf16 %v4061, %v4053
    %v4238 = vpack.c.bf16 %v4062, %v4054
    %v4239 = vpack.c.bf16 %v4063, %v4055
    %v4240 = vpack.c.bf16 %v4064, %v4056
    %v4241 = vpack.c.bf16 %v4065, %v4057
    %v4242 = vpack.c.bf16 %v4066, %v4058
    %v4243 = vpack.c.bf16 %v4075, %v4067
    %v4244 = vpack.c.bf16 %v4076, %v4068
    %v4245 = vpack.c.bf16 %v4077, %v4069
    %v4246 = vpack.c.bf16 %v4078, %v4070
    %v4247 = vpack.c.bf16 %v4079, %v4071
    %v4248 = vpack.c.bf16 %v4080, %v4072
    %v4249 = vpack.c.bf16 %v4081, %v4073
    %v4250 = vpack.c.bf16 %v4082, %v4074
    %v4251 = vpack.c.bf16 %v4091, %v4083
    %v4252 = vpack.c.bf16 %v4092, %v4084
    %v4253 = vpack.c.bf16 %v4093, %v4085
    %v4254 = vpack.c.bf16 %v4094, %v4086
    %v4255 = vpack.c.bf16 %v4095, %v4087
    %v4256 = vpack.c.bf16 %v4096, %v4088
    %v4257 = vpack.c.bf16 %v4097, %v4089
    %v4258 = vpack.c.bf16 %v4098, %v4090
    %v4259 = vpack.c.bf16 %v4107, %v4099
    %v4260 = vpack.c.bf16 %v4108, %v4100
    %v4261 = vpack.c.bf16 %v4109, %v4101
    %v4262 = vpack.c.bf16 %v4110, %v4102
    %v4263 = vpack.c.bf16 %v4111, %v4103
    %v4264 = vpack.c.bf16 %v4112, %v4104
    %v4265 = vpack.c.bf16 %v4113, %v4105
    %v4266 = vpack.c.bf16 %v4114, %v4106
    %v4267 = vpack.c.bf16 %v4123, %v4115
    %v4268 = vpack.c.bf16 %v4124, %v4116
    %v4269 = vpack.c.bf16 %v4125, %v4117
    %v4270 = vpack.c.bf16 %v4126, %v4118
    %v4271 = vpack.c.bf16 %v4127, %v4119
    %v4272 = vpack.c.bf16 %v4128, %v4120
    %v4273 = vpack.c.bf16 %v4129, %v4121
    %v4274 = vpack.c.bf16 %v4130, %v4122
    %v4275 = vpack.c.bf16 %v4139, %v4131
    %v4276 = vpack.c.bf16 %v4140, %v4132
    %v4277 = vpack.c.bf16 %v4141, %v4133
    %v4278 = vpack.c.bf16 %v4142, %v4134
    %v4279 = vpack.c.bf16 %v4143, %v4135
    %v4280 = vpack.c.bf16 %v4144, %v4136
    %v4281 = vpack.c.bf16 %v4145, %v4137
    %v4282 = vpack.c.bf16 %v4146, %v4138
    %v4283 = vpack.c.bf16 %v4155, %v4147
    %v4284 = vpack.c.bf16 %v4156, %v4148
    %v4285 = vpack.c.bf16 %v4157, %v4149
    %v4286 = vpack.c.bf16 %v4158, %v4150
    %v4287 = vpack.c.bf16 %v4159, %v4151
    %v4288 = vpack.c.bf16 %v4160, %v4152
    %v4289 = vpack.c.bf16 %v4161, %v4153
    %v4290 = vpack.c.bf16 %v4162, %v4154
    %v4291 = vld [vmem:[#allocation4] sm:$0xf]
    %v4292 = vld [vmem:[#allocation4 + $0x4] sm:$0xf]
    %v4293 = vld [vmem:[#allocation4 + $0x8] sm:$0xf]
    %v4294 = vld [vmem:[#allocation4 + $0xc] sm:$0xf]
    %v4295 = vld [vmem:[#allocation4 + $0x10] sm:$0xf]
    %v4296 = vld [vmem:[#allocation4 + $0x14] sm:$0xf]
    %v4297 = vld [vmem:[#allocation4 + $0x18] sm:$0xf]
    %v4298 = vld [vmem:[#allocation4 + $0x1c] sm:$0xf]
    %v4299 = vld [vmem:[#allocation4 + $0x20] sm:$0xf]
    %v4300 = vld [vmem:[#allocation4 + $0x24] sm:$0xf]
    %v4301 = vld [vmem:[#allocation4 + $0x28] sm:$0xf]
    %v4302 = vld [vmem:[#allocation4 + $0x2c] sm:$0xf]
    %v4303 = vld [vmem:[#allocation4 + $0x30] sm:$0xf]
    %v4304 = vld [vmem:[#allocation4 + $0x34] sm:$0xf]
    %v4305 = vld [vmem:[#allocation4 + $0x38] sm:$0xf]
    %v4306 = vld [vmem:[#allocation4 + $0x3c] sm:$0xf]
    %v4307 = vld [vmem:[#allocation4 + $0x40] sm:$0xf]
    %v4308 = vld [vmem:[#allocation4 + $0x44] sm:$0xf]
    %v4309 = vld [vmem:[#allocation4 + $0x48] sm:$0xf]
    %v4310 = vld [vmem:[#allocation4 + $0x4c] sm:$0xf]
    %v4311 = vld [vmem:[#allocation4 + $0x50] sm:$0xf]
    %v4312 = vld [vmem:[#allocation4 + $0x54] sm:$0xf]
    %v4313 = vld [vmem:[#allocation4 + $0x58] sm:$0xf]
    %v4314 = vld [vmem:[#allocation4 + $0x5c] sm:$0xf]
    %v4315 = vld [vmem:[#allocation4 + $0x60] sm:$0xf]
    %v4316 = vld [vmem:[#allocation4 + $0x64] sm:$0xf]
    %v4317 = vld [vmem:[#allocation4 + $0x68] sm:$0xf]
    %v4318 = vld [vmem:[#allocation4 + $0x6c] sm:$0xf]
    %v4319 = vld [vmem:[#allocation4 + $0x70] sm:$0xf]
    %v4320 = vld [vmem:[#allocation4 + $0x74] sm:$0xf]
    %v4321 = vld [vmem:[#allocation4 + $0x78] sm:$0xf]
    %v4322 = vld [vmem:[#allocation4 + $0x7c] sm:$0xf]
    %v4323 = vld [vmem:[#allocation4 + $0x80] sm:$0xf]
    %v4324 = vld [vmem:[#allocation4 + $0x84] sm:$0xf]
    %v4325 = vld [vmem:[#allocation4 + $0x88] sm:$0xf]
    %v4326 = vld [vmem:[#allocation4 + $0x8c] sm:$0xf]
    %v4327 = vld [vmem:[#allocation4 + $0x90] sm:$0xf]
    %v4328 = vld [vmem:[#allocation4 + $0x94] sm:$0xf]
    %v4329 = vld [vmem:[#allocation4 + $0x98] sm:$0xf]
    %v4330 = vld [vmem:[#allocation4 + $0x9c] sm:$0xf]
    %v4331 = vld [vmem:[#allocation4 + $0xa0] sm:$0xf]
    %v4332 = vld [vmem:[#allocation4 + $0xa4] sm:$0xf]
    %v4333 = vld [vmem:[#allocation4 + $0xa8] sm:$0xf]
    %v4334 = vld [vmem:[#allocation4 + $0xac] sm:$0xf]
    %v4335 = vld [vmem:[#allocation4 + $0xb0] sm:$0xf]
    %v4336 = vld [vmem:[#allocation4 + $0xb4] sm:$0xf]
    %v4337 = vld [vmem:[#allocation4 + $0xb8] sm:$0xf]
    %v4338 = vld [vmem:[#allocation4 + $0xbc] sm:$0xf]
    %v4339 = vld [vmem:[#allocation4 + $0xc0] sm:$0xf]
    %v4340 = vld [vmem:[#allocation4 + $0xc4] sm:$0xf]
    %v4341 = vld [vmem:[#allocation4 + $0xc8] sm:$0xf]
    %v4342 = vld [vmem:[#allocation4 + $0xcc] sm:$0xf]
    %v4343 = vld [vmem:[#allocation4 + $0xd0] sm:$0xf]
    %v4344 = vld [vmem:[#allocation4 + $0xd4] sm:$0xf]
    %v4345 = vld [vmem:[#allocation4 + $0xd8] sm:$0xf]
    %v4346 = vld [vmem:[#allocation4 + $0xdc] sm:$0xf]
    %v4347 = vld [vmem:[#allocation4 + $0xe0] sm:$0xf]
    %v4348 = vld [vmem:[#allocation4 + $0xe4] sm:$0xf]
    %v4349 = vld [vmem:[#allocation4 + $0xe8] sm:$0xf]
    %v4350 = vld [vmem:[#allocation4 + $0xec] sm:$0xf]
    %v4351 = vld [vmem:[#allocation4 + $0xf0] sm:$0xf]
    %v4352 = vld [vmem:[#allocation4 + $0xf4] sm:$0xf]
    %v4353 = vld [vmem:[#allocation4 + $0xf8] sm:$0xf]
    %v4354 = vld [vmem:[#allocation4 + $0xfc] sm:$0xf]
    %v4355 = vld [vmem:[#allocation4 + $0x100] sm:$0xf]
    %v4356 = vld [vmem:[#allocation4 + $0x104] sm:$0xf]
    %v4357 = vld [vmem:[#allocation4 + $0x108] sm:$0xf]
    %v4358 = vld [vmem:[#allocation4 + $0x10c] sm:$0xf]
    %v4359 = vld [vmem:[#allocation4 + $0x110] sm:$0xf]
    %v4360 = vld [vmem:[#allocation4 + $0x114] sm:$0xf]
    %v4361 = vld [vmem:[#allocation4 + $0x118] sm:$0xf]
    %v4362 = vld [vmem:[#allocation4 + $0x11c] sm:$0xf]
    %v4363 = vld [vmem:[#allocation4 + $0x120] sm:$0xf]
    %v4364 = vld [vmem:[#allocation4 + $0x124] sm:$0xf]
    %v4365 = vld [vmem:[#allocation4 + $0x128] sm:$0xf]
    %v4366 = vld [vmem:[#allocation4 + $0x12c] sm:$0xf]
    %v4367 = vld [vmem:[#allocation4 + $0x130] sm:$0xf]
    %v4368 = vld [vmem:[#allocation4 + $0x134] sm:$0xf]
    %v4369 = vld [vmem:[#allocation4 + $0x138] sm:$0xf]
    %v4370 = vld [vmem:[#allocation4 + $0x13c] sm:$0xf]
    %v4371 = vld [vmem:[#allocation4 + $0x140] sm:$0xf]
    %v4372 = vld [vmem:[#allocation4 + $0x144] sm:$0xf]
    %v4373 = vld [vmem:[#allocation4 + $0x148] sm:$0xf]
    %v4374 = vld [vmem:[#allocation4 + $0x14c] sm:$0xf]
    %v4375 = vld [vmem:[#allocation4 + $0x150] sm:$0xf]
    %v4376 = vld [vmem:[#allocation4 + $0x154] sm:$0xf]
    %v4377 = vld [vmem:[#allocation4 + $0x158] sm:$0xf]
    %v4378 = vld [vmem:[#allocation4 + $0x15c] sm:$0xf]
    %v4379 = vld [vmem:[#allocation4 + $0x160] sm:$0xf]
    %v4380 = vld [vmem:[#allocation4 + $0x164] sm:$0xf]
    %v4381 = vld [vmem:[#allocation4 + $0x168] sm:$0xf]
    %v4382 = vld [vmem:[#allocation4 + $0x16c] sm:$0xf]
    %v4383 = vld [vmem:[#allocation4 + $0x170] sm:$0xf]
    %v4384 = vld [vmem:[#allocation4 + $0x174] sm:$0xf]
    %v4385 = vld [vmem:[#allocation4 + $0x178] sm:$0xf]
    %v4386 = vld [vmem:[#allocation4 + $0x17c] sm:$0xf]
    %v4387 = vld [vmem:[#allocation4 + $0x180] sm:$0xf]
    %v4388 = vld [vmem:[#allocation4 + $0x184] sm:$0xf]
    %v4389 = vld [vmem:[#allocation4 + $0x188] sm:$0xf]
    %v4390 = vld [vmem:[#allocation4 + $0x18c] sm:$0xf]
    %v4391 = vld [vmem:[#allocation4 + $0x190] sm:$0xf]
    %v4392 = vld [vmem:[#allocation4 + $0x194] sm:$0xf]
    %v4393 = vld [vmem:[#allocation4 + $0x198] sm:$0xf]
    %v4394 = vld [vmem:[#allocation4 + $0x19c] sm:$0xf]
    %v4395 = vld [vmem:[#allocation4 + $0x1a0] sm:$0xf]
    %v4396 = vld [vmem:[#allocation4 + $0x1a4] sm:$0xf]
    %v4397 = vld [vmem:[#allocation4 + $0x1a8] sm:$0xf]
    %v4398 = vld [vmem:[#allocation4 + $0x1ac] sm:$0xf]
    %v4399 = vld [vmem:[#allocation4 + $0x1b0] sm:$0xf]
    %v4400 = vld [vmem:[#allocation4 + $0x1b4] sm:$0xf]
    %v4401 = vld [vmem:[#allocation4 + $0x1b8] sm:$0xf]
    %v4402 = vld [vmem:[#allocation4 + $0x1bc] sm:$0xf]
    %v4403 = vld [vmem:[#allocation4 + $0x1c0] sm:$0xf]
    %v4404 = vld [vmem:[#allocation4 + $0x1c4] sm:$0xf]
    %v4405 = vld [vmem:[#allocation4 + $0x1c8] sm:$0xf]
    %v4406 = vld [vmem:[#allocation4 + $0x1cc] sm:$0xf]
    %v4407 = vld [vmem:[#allocation4 + $0x1d0] sm:$0xf]
    %v4408 = vld [vmem:[#allocation4 + $0x1d4] sm:$0xf]
    %v4409 = vld [vmem:[#allocation4 + $0x1d8] sm:$0xf]
    %v4410 = vld [vmem:[#allocation4 + $0x1dc] sm:$0xf]
    %v4411 = vld [vmem:[#allocation4 + $0x1e0] sm:$0xf]
    %v4412 = vld [vmem:[#allocation4 + $0x1e4] sm:$0xf]
    %v4413 = vld [vmem:[#allocation4 + $0x1e8] sm:$0xf]
    %v4414 = vld [vmem:[#allocation4 + $0x1ec] sm:$0xf]
    %v4415 = vld [vmem:[#allocation4 + $0x1f0] sm:$0xf]
    %v4416 = vld [vmem:[#allocation4 + $0x1f4] sm:$0xf]
    %v4417 = vld [vmem:[#allocation4 + $0x1f8] sm:$0xf]
    %v4418 = vld [vmem:[#allocation4 + $0x1fc] sm:$0xf]
    %v4419 = vld [vmem:[%s6] sm:$0x1]
    %v4421 = vlaneseq
    %v4422 = vshrl.u32 %v4421, 7
    %v4423 = vsub.s32 0, %v4422
    %v4424 = vrot.slane %v4419, %v4423
    %v4554 = vunpack.c.l.b16 %v4291
    %v4555 = vunpack.c.l.b16 %v4292
    %v4556 = vunpack.c.l.b16 %v4293
    %v4557 = vunpack.c.l.b16 %v4294
    %v4558 = vunpack.c.l.b16 %v4295
    %v4559 = vunpack.c.l.b16 %v4296
    %v4560 = vunpack.c.l.b16 %v4297
    %v4561 = vunpack.c.l.b16 %v4298
    %v4562 = vunpack.c.l.b16 %v4299
    %v4563 = vunpack.c.l.b16 %v4300
    %v4564 = vunpack.c.l.b16 %v4301
    %v4565 = vunpack.c.l.b16 %v4302
    %v4566 = vunpack.c.l.b16 %v4303
    %v4567 = vunpack.c.l.b16 %v4304
    %v4568 = vunpack.c.l.b16 %v4305
    %v4569 = vunpack.c.l.b16 %v4306
    %v4570 = vunpack.c.l.b16 %v4307
    %v4571 = vunpack.c.l.b16 %v4308
    %v4572 = vunpack.c.l.b16 %v4309
    %v4573 = vunpack.c.l.b16 %v4310
    %v4574 = vunpack.c.l.b16 %v4311
    %v4575 = vunpack.c.l.b16 %v4312
    %v4576 = vunpack.c.l.b16 %v4313
    %v4577 = vunpack.c.l.b16 %v4314
    %v4578 = vunpack.c.l.b16 %v4315
    %v4579 = vunpack.c.l.b16 %v4316
    %v4580 = vunpack.c.l.b16 %v4317
    %v4581 = vunpack.c.l.b16 %v4318
    %v4582 = vunpack.c.l.b16 %v4319
    %v4583 = vunpack.c.l.b16 %v4320
    %v4584 = vunpack.c.l.b16 %v4321
    %v4585 = vunpack.c.l.b16 %v4322
    %v4586 = vunpack.c.l.b16 %v4323
    %v4587 = vunpack.c.l.b16 %v4324
    %v4588 = vunpack.c.l.b16 %v4325
    %v4589 = vunpack.c.l.b16 %v4326
    %v4590 = vunpack.c.l.b16 %v4327
    %v4591 = vunpack.c.l.b16 %v4328
    %v4592 = vunpack.c.l.b16 %v4329
    %v4593 = vunpack.c.l.b16 %v4330
    %v4594 = vunpack.c.l.b16 %v4331
    %v4595 = vunpack.c.l.b16 %v4332
    %v4596 = vunpack.c.l.b16 %v4333
    %v4597 = vunpack.c.l.b16 %v4334
    %v4598 = vunpack.c.l.b16 %v4335
    %v4599 = vunpack.c.l.b16 %v4336
    %v4600 = vunpack.c.l.b16 %v4337
    %v4601 = vunpack.c.l.b16 %v4338
    %v4602 = vunpack.c.l.b16 %v4339
    %v4603 = vunpack.c.l.b16 %v4340
    %v4604 = vunpack.c.l.b16 %v4341
    %v4605 = vunpack.c.l.b16 %v4342
    %v4606 = vunpack.c.l.b16 %v4343
    %v4607 = vunpack.c.l.b16 %v4344
    %v4608 = vunpack.c.l.b16 %v4345
    %v4609 = vunpack.c.l.b16 %v4346
    %v4610 = vunpack.c.l.b16 %v4347
    %v4611 = vunpack.c.l.b16 %v4348
    %v4612 = vunpack.c.l.b16 %v4349
    %v4613 = vunpack.c.l.b16 %v4350
    %v4614 = vunpack.c.l.b16 %v4351
    %v4615 = vunpack.c.l.b16 %v4352
    %v4616 = vunpack.c.l.b16 %v4353
    %v4617 = vunpack.c.l.b16 %v4354
    %v4618 = vunpack.c.l.b16 %v4355
    %v4619 = vunpack.c.l.b16 %v4356
    %v4620 = vunpack.c.l.b16 %v4357
    %v4621 = vunpack.c.l.b16 %v4358
    %v4622 = vunpack.c.l.b16 %v4359
    %v4623 = vunpack.c.l.b16 %v4360
    %v4624 = vunpack.c.l.b16 %v4361
    %v4625 = vunpack.c.l.b16 %v4362
    %v4626 = vunpack.c.l.b16 %v4363
    %v4627 = vunpack.c.l.b16 %v4364
    %v4628 = vunpack.c.l.b16 %v4365
    %v4629 = vunpack.c.l.b16 %v4366
    %v4630 = vunpack.c.l.b16 %v4367
    %v4631 = vunpack.c.l.b16 %v4368
    %v4632 = vunpack.c.l.b16 %v4369
    %v4633 = vunpack.c.l.b16 %v4370
    %v4634 = vunpack.c.l.b16 %v4371
    %v4635 = vunpack.c.l.b16 %v4372
    %v4636 = vunpack.c.l.b16 %v4373
    %v4637 = vunpack.c.l.b16 %v4374
    %v4638 = vunpack.c.l.b16 %v4375
    %v4639 = vunpack.c.l.b16 %v4376
    %v4640 = vunpack.c.l.b16 %v4377
    %v4641 = vunpack.c.l.b16 %v4378
    %v4642 = vunpack.c.l.b16 %v4379
    %v4643 = vunpack.c.l.b16 %v4380
    %v4644 = vunpack.c.l.b16 %v4381
    %v4645 = vunpack.c.l.b16 %v4382
    %v4646 = vunpack.c.l.b16 %v4383
    %v4647 = vunpack.c.l.b16 %v4384
    %v4648 = vunpack.c.l.b16 %v4385
    %v4649 = vunpack.c.l.b16 %v4386
    %v4650 = vunpack.c.l.b16 %v4387
    %v4651 = vunpack.c.l.b16 %v4388
    %v4652 = vunpack.c.l.b16 %v4389
    %v4653 = vunpack.c.l.b16 %v4390
    %v4654 = vunpack.c.l.b16 %v4391
    %v4655 = vunpack.c.l.b16 %v4392
    %v4656 = vunpack.c.l.b16 %v4393
    %v4657 = vunpack.c.l.b16 %v4394
    %v4658 = vunpack.c.l.b16 %v4395
    %v4659 = vunpack.c.l.b16 %v4396
    %v4660 = vunpack.c.l.b16 %v4397
    %v4661 = vunpack.c.l.b16 %v4398
    %v4662 = vunpack.c.l.b16 %v4399
    %v4663 = vunpack.c.l.b16 %v4400
    %v4664 = vunpack.c.l.b16 %v4401
    %v4665 = vunpack.c.l.b16 %v4402
    %v4666 = vunpack.c.l.b16 %v4403
    %v4667 = vunpack.c.l.b16 %v4404
    %v4668 = vunpack.c.l.b16 %v4405
    %v4669 = vunpack.c.l.b16 %v4406
    %v4670 = vunpack.c.l.b16 %v4407
    %v4671 = vunpack.c.l.b16 %v4408
    %v4672 = vunpack.c.l.b16 %v4409
    %v4673 = vunpack.c.l.b16 %v4410
    %v4674 = vunpack.c.l.b16 %v4411
    %v4675 = vunpack.c.l.b16 %v4412
    %v4676 = vunpack.c.l.b16 %v4413
    %v4677 = vunpack.c.l.b16 %v4414
    %v4678 = vunpack.c.l.b16 %v4415
    %v4679 = vunpack.c.l.b16 %v4416
    %v4680 = vunpack.c.l.b16 %v4417
    %v4681 = vunpack.c.l.b16 %v4418
    %v4682 = vpack.c.b16 %v4555, %v4554
    %v4683 = vpack.c.b16 %v4557, %v4556
    %v4684 = vpack.c.b16 %v4559, %v4558
    %v4685 = vpack.c.b16 %v4561, %v4560
    %v4686 = vpack.c.b16 %v4563, %v4562
    %v4687 = vpack.c.b16 %v4565, %v4564
    %v4688 = vpack.c.b16 %v4567, %v4566
    %v4689 = vpack.c.b16 %v4569, %v4568
    %v4690 = vpack.c.b16 %v4571, %v4570
    %v4691 = vpack.c.b16 %v4573, %v4572
    %v4692 = vpack.c.b16 %v4575, %v4574
    %v4693 = vpack.c.b16 %v4577, %v4576
    %v4694 = vpack.c.b16 %v4579, %v4578
    %v4695 = vpack.c.b16 %v4581, %v4580
    %v4696 = vpack.c.b16 %v4583, %v4582
    %v4697 = vpack.c.b16 %v4585, %v4584
    %v4698 = vpack.c.b16 %v4587, %v4586
    %v4699 = vpack.c.b16 %v4589, %v4588
    %v4700 = vpack.c.b16 %v4591, %v4590
    %v4701 = vpack.c.b16 %v4593, %v4592
    %v4702 = vpack.c.b16 %v4595, %v4594
    %v4703 = vpack.c.b16 %v4597, %v4596
    %v4704 = vpack.c.b16 %v4599, %v4598
    %v4705 = vpack.c.b16 %v4601, %v4600
    %v4706 = vpack.c.b16 %v4603, %v4602
    %v4707 = vpack.c.b16 %v4605, %v4604
    %v4708 = vpack.c.b16 %v4607, %v4606
    %v4709 = vpack.c.b16 %v4609, %v4608
    %v4710 = vpack.c.b16 %v4611, %v4610
    %v4711 = vpack.c.b16 %v4613, %v4612
    %v4712 = vpack.c.b16 %v4615, %v4614
    %v4713 = vpack.c.b16 %v4617, %v4616
    %v4714 = vpack.c.b16 %v4619, %v4618
    %v4715 = vpack.c.b16 %v4621, %v4620
    %v4716 = vpack.c.b16 %v4623, %v4622
    %v4717 = vpack.c.b16 %v4625, %v4624
    %v4718 = vpack.c.b16 %v4627, %v4626
    %v4719 = vpack.c.b16 %v4629, %v4628
    %v4720 = vpack.c.b16 %v4631, %v4630
    %v4721 = vpack.c.b16 %v4633, %v4632
    %v4722 = vpack.c.b16 %v4635, %v4634
    %v4723 = vpack.c.b16 %v4637, %v4636
    %v4724 = vpack.c.b16 %v4639, %v4638
    %v4725 = vpack.c.b16 %v4641, %v4640
    %v4726 = vpack.c.b16 %v4643, %v4642
    %v4727 = vpack.c.b16 %v4645, %v4644
    %v4728 = vpack.c.b16 %v4647, %v4646
    %v4729 = vpack.c.b16 %v4649, %v4648
    %v4730 = vpack.c.b16 %v4651, %v4650
    %v4731 = vpack.c.b16 %v4653, %v4652
    %v4732 = vpack.c.b16 %v4655, %v4654
    %v4733 = vpack.c.b16 %v4657, %v4656
    %v4734 = vpack.c.b16 %v4659, %v4658
    %v4735 = vpack.c.b16 %v4661, %v4660
    %v4736 = vpack.c.b16 %v4663, %v4662
    %v4737 = vpack.c.b16 %v4665, %v4664
    %v4738 = vpack.c.b16 %v4667, %v4666
    %v4739 = vpack.c.b16 %v4669, %v4668
    %v4740 = vpack.c.b16 %v4671, %v4670
    %v4741 = vpack.c.b16 %v4673, %v4672
    %v4742 = vpack.c.b16 %v4675, %v4674
    %v4743 = vpack.c.b16 %v4677, %v4676
    %v4744 = vpack.c.b16 %v4679, %v4678
    %v4745 = vpack.c.b16 %v4681, %v4680
    %4810 = vmatprep.subr.bf16.mxu0 0
    %4811 = vmatpush1.bf16.msra.mxu0 %v4682
    %4812 = vmatprep.subr.bf16.mxu0 0
    %4813 = vmatpush1.bf16.msra.mxu0 %v4683
    %4814 = vmatprep.subr.bf16.mxu0 0
    %4815 = vmatpush1.bf16.msra.mxu0 %v4684
    %4816 = vmatprep.subr.bf16.mxu0 0
    %4817 = vmatpush1.bf16.msra.mxu0 %v4685
    %4818 = vmatprep.subr.bf16.mxu0 0
    %4819 = vmatpush1.bf16.msra.mxu0 %v4686
    %4820 = vmatprep.subr.bf16.mxu0 0
    %4821 = vmatpush1.bf16.msra.mxu0 %v4687
    %4822 = vmatprep.subr.bf16.mxu0 0
    %4823 = vmatpush1.bf16.msra.mxu0 %v4688
    %4824 = vmatprep.subr.bf16.mxu0 0
    %4825 = vmatpush1.bf16.msra.mxu0 %v4689
    %4826 = vmatprep.subr.bf16.mxu0 0
    %4827 = vmatpush1.bf16.msra.mxu0 %v4690
    %4828 = vmatprep.subr.bf16.mxu0 0
    %4829 = vmatpush1.bf16.msra.mxu0 %v4691
    %4830 = vmatprep.subr.bf16.mxu0 0
    %4831 = vmatpush1.bf16.msra.mxu0 %v4692
    %4832 = vmatprep.subr.bf16.mxu0 0
    %4833 = vmatpush1.bf16.msra.mxu0 %v4693
    %4834 = vmatprep.subr.bf16.mxu0 0
    %4835 = vmatpush1.bf16.msra.mxu0 %v4694
    %4836 = vmatprep.subr.bf16.mxu0 0
    %4837 = vmatpush1.bf16.msra.mxu0 %v4695
    %4838 = vmatprep.subr.bf16.mxu0 0
    %4839 = vmatpush1.bf16.msra.mxu0 %v4696
    %4840 = vmatprep.subr.bf16.mxu0 0
    %4841 = vmatpush1.bf16.msra.mxu0 %v4697
    %4842 = vmatprep.mubr.bf16.mxu0 %v4164
    %4843 = vmatmul.mubr.bf16.gmra.mrb[0].mxu0 %v4163
    %v4844 = vpop.f32.mrb[0].mxu0
    %v4845 = vadd.f32 %v4424, %v4844
    %v4846 = vpop.f32.mrb[0].mxu0
    %v4847 = vpop.f32.mrb[0].mxu0
    %v4848 = vadd.f32 %v4424, %v4847
    %v4849 = vpop.f32.mrb[0].mxu0
    %4850 = vmatprep.mubr.bf16.mxu0 %v4172
    %4851 = vmatmul.mubr.bf16.gmra.mrb[0].mxu0 %v4171
    %v4852 = vpop.f32.mrb[0].mxu0
    %v4853 = vadd.f32 %v4424, %v4852
    %v4854 = vpop.f32.mrb[0].mxu0
    %v4855 = vpop.f32.mrb[0].mxu0
    %v4856 = vadd.f32 %v4424, %v4855
    %v4857 = vpop.f32.mrb[0].mxu0
    %4858 = vmatprep.mubr.bf16.mxu0 %v4180
    %4859 = vmatmul.mubr.bf16.gmra.mrb[0].mxu0 %v4179
    %v4860 = vpop.f32.mrb[0].mxu0
    %v4861 = vadd.f32 %v4424, %v4860
    %v4862 = vpop.f32.mrb[0].mxu0
    %v4863 = vpop.f32.mrb[0].mxu0
    %v4864 = vadd.f32 %v4424, %v4863
    %v4865 = vpop.f32.mrb[0].mxu0
    %4866 = vmatprep.mubr.bf16.mxu0 %v4188
    %4867 = vmatmul.mubr.bf16.gmra.mrb[0].mxu0 %v4187
    %v4868 = vpop.f32.mrb[0].mxu0
    %v4869 = vadd.f32 %v4424, %v4868
    %v4870 = vpop.f32.mrb[0].mxu0
    %v4871 = vpop.f32.mrb[0].mxu0
    %v4872 = vadd.f32 %v4424, %v4871
    %v4873 = vpop.f32.mrb[0].mxu0
    %4874 = vmatprep.mubr.bf16.mxu0 %v4196
    %4875 = vmatmul.mubr.bf16.gmra.mrb[0].mxu0 %v4195
    %v4876 = vpop.f32.mrb[0].mxu0
    %v4877 = vadd.f32 %v4424, %v4876
    %v4878 = vpop.f32.mrb[0].mxu0
    %v4879 = vpop.f32.mrb[0].mxu0
    %v4880 = vadd.f32 %v4424, %v4879
    %v4881 = vpop.f32.mrb[0].mxu0
    %4882 = vmatprep.mubr.bf16.mxu0 %v4204
    %4883 = vmatmul.mubr.bf16.gmra.mrb[0].mxu0 %v4203
    %v4884 = vpop.f32.mrb[0].mxu0
    %v4885 = vadd.f32 %v4424, %v4884
    %v4886 = vpop.f32.mrb[0].mxu0
    %v4887 = vpop.f32.mrb[0].mxu0
    %v4888 = vadd.f32 %v4424, %v4887
    %v4889 = vpop.f32.mrb[0].mxu0
    %4890 = vmatprep.mubr.bf16.mxu0 %v4212
    %4891 = vmatmul.mubr.bf16.gmra.mrb[0].mxu0 %v4211
    %v4892 = vpop.f32.mrb[0].mxu0
    %v4893 = vadd.f32 %v4424, %v4892
    %v4894 = vpop.f32.mrb[0].mxu0
    %v4895 = vpop.f32.mrb[0].mxu0
    %v4896 = vadd.f32 %v4424, %v4895
    %v4897 = vpop.f32.mrb[0].mxu0
    %4898 = vmatprep.mubr.bf16.mxu0 %v4220
    %4899 = vmatmul.mubr.bf16.gmra.mrb[0].mxu0 %v4219
    %v4900 = vpop.f32.mrb[0].mxu0
    %v4901 = vadd.f32 %v4424, %v4900
    %v4902 = vpop.f32.mrb[0].mxu0
    %v4903 = vpop.f32.mrb[0].mxu0
    %v4904 = vadd.f32 %v4424, %v4903
    %v4905 = vpop.f32.mrb[0].mxu0
    %4906 = vmatprep.mubr.bf16.mxu0 %v4228
    %4907 = vmatmul.mubr.bf16.gmra.mrb[0].mxu0 %v4227
    %v4908 = vpop.f32.mrb[0].mxu0
    %v4909 = vadd.f32 %v4424, %v4908
    %v4910 = vpop.f32.mrb[0].mxu0
    %v4911 = vpop.f32.mrb[0].mxu0
    %v4912 = vadd.f32 %v4424, %v4911
    %v4913 = vpop.f32.mrb[0].mxu0
    %4914 = vmatprep.mubr.bf16.mxu0 %v4236
    %4915 = vmatmul.mubr.bf16.gmra.mrb[0].mxu0 %v4235
    %v4916 = vpop.f32.mrb[0].mxu0
    %v4917 = vadd.f32 %v4424, %v4916
    %v4918 = vpop.f32.mrb[0].mxu0
    %v4919 = vpop.f32.mrb[0].mxu0
    %v4920 = vadd.f32 %v4424, %v4919
    %v4921 = vpop.f32.mrb[0].mxu0
    %4922 = vmatprep.mubr.bf16.mxu0 %v4244
    %4923 = vmatmul.mubr.bf16.gmra.mrb[0].mxu0 %v4243
    %v4924 = vpop.f32.mrb[0].mxu0
    %v4925 = vadd.f32 %v4424, %v4924
    %v4926 = vpop.f32.mrb[0].mxu0
    %v4927 = vpop.f32.mrb[0].mxu0
    %v4928 = vadd.f32 %v4424, %v4927
    %v4929 = vpop.f32.mrb[0].mxu0
    %4930 = vmatprep.mubr.bf16.mxu0 %v4252
    %4931 = vmatmul.mubr.bf16.gmra.mrb[0].mxu0 %v4251
    %v4932 = vpop.f32.mrb[0].mxu0
    %v4933 = vadd.f32 %v4424, %v4932
    %v4934 = vpop.f32.mrb[0].mxu0
    %v4935 = vpop.f32.mrb[0].mxu0
    %v4936 = vadd.f32 %v4424, %v4935
    %v4937 = vpop.f32.mrb[0].mxu0
    %4938 = vmatprep.mubr.bf16.mxu0 %v4260
    %4939 = vmatmul.mubr.bf16.gmra.mrb[0].mxu0 %v4259
    %v4940 = vpop.f32.mrb[0].mxu0
    %v4941 = vadd.f32 %v4424, %v4940
    %v4942 = vpop.f32.mrb[0].mxu0
    %v4943 = vpop.f32.mrb[0].mxu0
    %v4944 = vadd.f32 %v4424, %v4943
    %v4945 = vpop.f32.mrb[0].mxu0
    %4946 = vmatprep.mubr.bf16.mxu0 %v4268
    %4947 = vmatmul.mubr.bf16.gmra.mrb[0].mxu0 %v4267
    %v4948 = vpop.f32.mrb[0].mxu0
    %v4949 = vadd.f32 %v4424, %v4948
    %v4950 = vpop.f32.mrb[0].mxu0
    %v4951 = vpop.f32.mrb[0].mxu0
    %v4952 = vadd.f32 %v4424, %v4951
    %v4953 = vpop.f32.mrb[0].mxu0
    %4954 = vmatprep.mubr.bf16.mxu0 %v4276
    %4955 = vmatmul.mubr.bf16.gmra.mrb[0].mxu0 %v4275
    %v4956 = vpop.f32.mrb[0].mxu0
    %v4957 = vadd.f32 %v4424, %v4956
    %v4958 = vpop.f32.mrb[0].mxu0
    %v4959 = vpop.f32.mrb[0].mxu0
    %v4960 = vadd.f32 %v4424, %v4959
    %v4961 = vpop.f32.mrb[0].mxu0
    %4962 = vmatprep.mubr.bf16.mxu0 %v4284
    %4963 = vmatmul.mubr.bf16.gmra.mrb[0].mxu0 %v4283
    %v4964 = vpop.f32.mrb[0].mxu0
    %v4965 = vadd.f32 %v4424, %v4964
    %v4966 = vpop.f32.mrb[0].mxu0
    %v4967 = vpop.f32.mrb[0].mxu0
    %v4968 = vadd.f32 %v4424, %v4967
    %v4969 = vpop.f32.mrb[0].mxu0
    %4970 = vdwg.mxu0
    %4971 = vmatprep.subr.bf16.mxu0 0
    %4972 = vmatpush1.bf16.msra.mxu0 %v4698
    %4973 = vmatprep.subr.bf16.mxu0 0
    %4974 = vmatpush1.bf16.msra.mxu0 %v4699
    %4975 = vmatprep.subr.bf16.mxu0 0
    %4976 = vmatpush1.bf16.msra.mxu0 %v4700
    %4977 = vmatprep.subr.bf16.mxu0 0
    %4978 = vmatpush1.bf16.msra.mxu0 %v4701
    %4979 = vmatprep.subr.bf16.mxu0 0
    %4980 = vmatpush1.bf16.msra.mxu0 %v4702
    %4981 = vmatprep.subr.bf16.mxu0 0
    %4982 = vmatpush1.bf16.msra.mxu0 %v4703
    %4983 = vmatprep.subr.bf16.mxu0 0
    %4984 = vmatpush1.bf16.msra.mxu0 %v4704
    %4985 = vmatprep.subr.bf16.mxu0 0
    %4986 = vmatpush1.bf16.msra.mxu0 %v4705
    %4987 = vmatprep.subr.bf16.mxu0 0
    %4988 = vmatpush1.bf16.msra.mxu0 %v4706
    %4989 = vmatprep.subr.bf16.mxu0 0
    %4990 = vmatpush1.bf16.msra.mxu0 %v4707
    %4991 = vmatprep.subr.bf16.mxu0 0
    %4992 = vmatpush1.bf16.msra.mxu0 %v4708
    %4993 = vmatprep.subr.bf16.mxu0 0
    %4994 = vmatpush1.bf16.msra.mxu0 %v4709
    %4995 = vmatprep.subr.bf16.mxu0 0
    %4996 = vmatpush1.bf16.msra.mxu0 %v4710
    %4997 = vmatprep.subr.bf16.mxu0 0
    %4998 = vmatpush1.bf16.msra.mxu0 %v4711
    %4999 = vmatprep.subr.bf16.mxu0 0
    %5000 = vmatpush1.bf16.msra.mxu0 %v4712
    %5001 = vmatprep.subr.bf16.mxu0 0
    %5002 = vmatpush1.bf16.msra.mxu0 %v4713
    %5003 = vmatprep.mubr.bf16.mxu0 %v4166
    %5004 = vmatmul.mubr.bf16.gmra.mrb[0].mxu0 %v4165
    %v5005 = vpop.f32.mrb[0].mxu0
    %v5006 = vadd.f32 %v4845, %v5005
    %v5007 = vpop.f32.mrb[0].mxu0
    %v5008 = vpop.f32.mrb[0].mxu0
    %v5009 = vadd.f32 %v4848, %v5008
    %v5010 = vpop.f32.mrb[0].mxu0
    %5011 = vmatprep.mubr.bf16.mxu0 %v4174
    %5012 = vmatmul.mubr.bf16.gmra.mrb[0].mxu0 %v4173
    %v5013 = vpop.f32.mrb[0].mxu0
    %v5014 = vadd.f32 %v4853, %v5013
    %v5015 = vpop.f32.mrb[0].mxu0
    %v5016 = vpop.f32.mrb[0].mxu0
    %v5017 = vadd.f32 %v4856, %v5016
    %v5018 = vpop.f32.mrb[0].mxu0
    %5019 = vmatprep.mubr.bf16.mxu0 %v4182
    %5020 = vmatmul.mubr.bf16.gmra.mrb[0].mxu0 %v4181
    %v5021 = vpop.f32.mrb[0].mxu0
    %v5022 = vadd.f32 %v4861, %v5021
    %v5023 = vpop.f32.mrb[0].mxu0
    %v5024 = vpop.f32.mrb[0].mxu0
    %v5025 = vadd.f32 %v4864, %v5024
    %v5026 = vpop.f32.mrb[0].mxu0
    %5027 = vmatprep.mubr.bf16.mxu0 %v4190
    %5028 = vmatmul.mubr.bf16.gmra.mrb[0].mxu0 %v4189
    %v5029 = vpop.f32.mrb[0].mxu0
    %v5030 = vadd.f32 %v4869, %v5029
    %v5031 = vpop.f32.mrb[0].mxu0
    %v5032 = vpop.f32.mrb[0].mxu0
    %v5033 = vadd.f32 %v4872, %v5032
    %v5034 = vpop.f32.mrb[0].mxu0
    %5035 = vmatprep.mubr.bf16.mxu0 %v4198
    %5036 = vmatmul.mubr.bf16.gmra.mrb[0].mxu0 %v4197
    %v5037 = vpop.f32.mrb[0].mxu0
    %v5038 = vadd.f32 %v4877, %v5037
    %v5039 = vpop.f32.mrb[0].mxu0
    %v5040 = vpop.f32.mrb[0].mxu0
    %v5041 = vadd.f32 %v4880, %v5040
    %v5042 = vpop.f32.mrb[0].mxu0
    %5043 = vmatprep.mubr.bf16.mxu0 %v4206
    %5044 = vmatmul.mubr.bf16.gmra.mrb[0].mxu0 %v4205
    %v5045 = vpop.f32.mrb[0].mxu0
    %v5046 = vadd.f32 %v4885, %v5045
    %v5047 = vpop.f32.mrb[0].mxu0
    %v5048 = vpop.f32.mrb[0].mxu0
    %v5049 = vadd.f32 %v4888, %v5048
    %v5050 = vpop.f32.mrb[0].mxu0
    %5051 = vmatprep.mubr.bf16.mxu0 %v4214
    %5052 = vmatmul.mubr.bf16.gmra.mrb[0].mxu0 %v4213
    %v5053 = vpop.f32.mrb[0].mxu0
    %v5054 = vadd.f32 %v4893, %v5053
    %v5055 = vpop.f32.mrb[0].mxu0
    %v5056 = vpop.f32.mrb[0].mxu0
    %v5057 = vadd.f32 %v4896, %v5056
    %v5058 = vpop.f32.mrb[0].mxu0
    %5059 = vmatprep.mubr.bf16.mxu0 %v4222
    %5060 = vmatmul.mubr.bf16.gmra.mrb[0].mxu0 %v4221
    %v5061 = vpop.f32.mrb[0].mxu0
    %v5062 = vadd.f32 %v4901, %v5061
    %v5063 = vpop.f32.mrb[0].mxu0
    %v5064 = vpop.f32.mrb[0].mxu0
    %v5065 = vadd.f32 %v4904, %v5064
    %v5066 = vpop.f32.mrb[0].mxu0
    %5067 = vmatprep.mubr.bf16.mxu0 %v4230
    %5068 = vmatmul.mubr.bf16.gmra.mrb[0].mxu0 %v4229
    %v5069 = vpop.f32.mrb[0].mxu0
    %v5070 = vadd.f32 %v4909, %v5069
    %v5071 = vpop.f32.mrb[0].mxu0
    %v5072 = vpop.f32.mrb[0].mxu0
    %v5073 = vadd.f32 %v4912, %v5072
    %v5074 = vpop.f32.mrb[0].mxu0
    %5075 = vmatprep.mubr.bf16.mxu0 %v4238
    %5076 = vmatmul.mubr.bf16.gmra.mrb[0].mxu0 %v4237
    %v5077 = vpop.f32.mrb[0].mxu0
    %v5078 = vadd.f32 %v4917, %v5077
    %v5079 = vpop.f32.mrb[0].mxu0
    %v5080 = vpop.f32.mrb[0].mxu0
    %v5081 = vadd.f32 %v4920, %v5080
    %v5082 = vpop.f32.mrb[0].mxu0
    %5083 = vmatprep.mubr.bf16.mxu0 %v4246
    %5084 = vmatmul.mubr.bf16.gmra.mrb[0].mxu0 %v4245
    %v5085 = vpop.f32.mrb[0].mxu0
    %v5086 = vadd.f32 %v4925, %v5085
    %v5087 = vpop.f32.mrb[0].mxu0
    %v5088 = vpop.f32.mrb[0].mxu0
    %v5089 = vadd.f32 %v4928, %v5088
    %v5090 = vpop.f32.mrb[0].mxu0
    %5091 = vmatprep.mubr.bf16.mxu0 %v4254
    %5092 = vmatmul.mubr.bf16.gmra.mrb[0].mxu0 %v4253
    %v5093 = vpop.f32.mrb[0].mxu0
    %v5094 = vadd.f32 %v4933, %v5093
    %v5095 = vpop.f32.mrb[0].mxu0
    %v5096 = vpop.f32.mrb[0].mxu0
    %v5097 = vadd.f32 %v4936, %v5096
    %v5098 = vpop.f32.mrb[0].mxu0
    %5099 = vmatprep.mubr.bf16.mxu0 %v4262
    %5100 = vmatmul.mubr.bf16.gmra.mrb[0].mxu0 %v4261
    %v5101 = vpop.f32.mrb[0].mxu0
    %v5102 = vadd.f32 %v4941, %v5101
    %v5103 = vpop.f32.mrb[0].mxu0
    %v5104 = vpop.f32.mrb[0].mxu0
    %v5105 = vadd.f32 %v4944, %v5104
    %v5106 = vpop.f32.mrb[0].mxu0
    %5107 = vmatprep.mubr.bf16.mxu0 %v4270
    %5108 = vmatmul.mubr.bf16.gmra.mrb[0].mxu0 %v4269
    %v5109 = vpop.f32.mrb[0].mxu0
    %v5110 = vadd.f32 %v4949, %v5109
    %v5111 = vpop.f32.mrb[0].mxu0
    %v5112 = vpop.f32.mrb[0].mxu0
    %v5113 = vadd.f32 %v4952, %v5112
    %v5114 = vpop.f32.mrb[0].mxu0
    %5115 = vmatprep.mubr.bf16.mxu0 %v4278
    %5116 = vmatmul.mubr.bf16.gmra.mrb[0].mxu0 %v4277
    %v5117 = vpop.f32.mrb[0].mxu0
    %v5118 = vadd.f32 %v4957, %v5117
    %v5119 = vpop.f32.mrb[0].mxu0
    %v5120 = vpop.f32.mrb[0].mxu0
    %v5121 = vadd.f32 %v4960, %v5120
    %v5122 = vpop.f32.mrb[0].mxu0
    %5123 = vmatprep.mubr.bf16.mxu0 %v4286
    %5124 = vmatmul.mubr.bf16.gmra.mrb[0].mxu0 %v4285
    %v5125 = vpop.f32.mrb[0].mxu0
    %v5126 = vadd.f32 %v4965, %v5125
    %v5127 = vpop.f32.mrb[0].mxu0
    %v5128 = vpop.f32.mrb[0].mxu0
    %v5129 = vadd.f32 %v4968, %v5128
    %v5130 = vpop.f32.mrb[0].mxu0
    %5131 = vdwg.mxu0
    %5132 = vmatprep.subr.bf16.mxu0 0
    %5133 = vmatpush1.bf16.msra.mxu0 %v4714
    %5134 = vmatprep.subr.bf16.mxu0 0
    %5135 = vmatpush1.bf16.msra.mxu0 %v4715
    %5136 = vmatprep.subr.bf16.mxu0 0
    %5137 = vmatpush1.bf16.msra.mxu0 %v4716
    %5138 = vmatprep.subr.bf16.mxu0 0
    %5139 = vmatpush1.bf16.msra.mxu0 %v4717
    %5140 = vmatprep.subr.bf16.mxu0 0
    %5141 = vmatpush1.bf16.msra.mxu0 %v4718
    %5142 = vmatprep.subr.bf16.mxu0 0
    %5143 = vmatpush1.bf16.msra.mxu0 %v4719
    %5144 = vmatprep.subr.bf16.mxu0 0
    %5145 = vmatpush1.bf16.msra.mxu0 %v4720
    %5146 = vmatprep.subr.bf16.mxu0 0
    %5147 = vmatpush1.bf16.msra.mxu0 %v4721
    %5148 = vmatprep.subr.bf16.mxu0 0
    %5149 = vmatpush1.bf16.msra.mxu0 %v4722
    %5150 = vmatprep.subr.bf16.mxu0 0
    %5151 = vmatpush1.bf16.msra.mxu0 %v4723
    %5152 = vmatprep.subr.bf16.mxu0 0
    %5153 = vmatpush1.bf16.msra.mxu0 %v4724
    %5154 = vmatprep.subr.bf16.mxu0 0
    %5155 = vmatpush1.bf16.msra.mxu0 %v4725
    %5156 = vmatprep.subr.bf16.mxu0 0
    %5157 = vmatpush1.bf16.msra.mxu0 %v4726
    %5158 = vmatprep.subr.bf16.mxu0 0
    %5159 = vmatpush1.bf16.msra.mxu0 %v4727
    %5160 = vmatprep.subr.bf16.mxu0 0
    %5161 = vmatpush1.bf16.msra.mxu0 %v4728
    %5162 = vmatprep.subr.bf16.mxu0 0
    %5163 = vmatpush1.bf16.msra.mxu0 %v4729
    %5164 = vmatprep.mubr.bf16.mxu0 %v4168
    %5165 = vmatmul.mubr.bf16.gmra.mrb[0].mxu0 %v4167
    %v5166 = vpop.f32.mrb[0].mxu0
    %v5167 = vadd.f32 %v5006, %v5166
    %v5168 = vpop.f32.mrb[0].mxu0
    %v5169 = vpop.f32.mrb[0].mxu0
    %v5170 = vadd.f32 %v5009, %v5169
    %v5171 = vpop.f32.mrb[0].mxu0
    %5172 = vmatprep.mubr.bf16.mxu0 %v4176
    %5173 = vmatmul.mubr.bf16.gmra.mrb[0].mxu0 %v4175
    %v5174 = vpop.f32.mrb[0].mxu0
    %v5175 = vadd.f32 %v5014, %v5174
    %v5176 = vpop.f32.mrb[0].mxu0
    %v5177 = vpop.f32.mrb[0].mxu0
    %v5178 = vadd.f32 %v5017, %v5177
    %v5179 = vpop.f32.mrb[0].mxu0
    %5180 = vmatprep.mubr.bf16.mxu0 %v4184
    %5181 = vmatmul.mubr.bf16.gmra.mrb[0].mxu0 %v4183
    %v5182 = vpop.f32.mrb[0].mxu0
    %v5183 = vadd.f32 %v5022, %v5182
    %v5184 = vpop.f32.mrb[0].mxu0
    %v5185 = vpop.f32.mrb[0].mxu0
    %v5186 = vadd.f32 %v5025, %v5185
    %v5187 = vpop.f32.mrb[0].mxu0
    %5188 = vmatprep.mubr.bf16.mxu0 %v4192
    %5189 = vmatmul.mubr.bf16.gmra.mrb[0].mxu0 %v4191
    %v5190 = vpop.f32.mrb[0].mxu0
    %v5191 = vadd.f32 %v5030, %v5190
    %v5192 = vpop.f32.mrb[0].mxu0
    %v5193 = vpop.f32.mrb[0].mxu0
    %v5194 = vadd.f32 %v5033, %v5193
    %v5195 = vpop.f32.mrb[0].mxu0
    %5196 = vmatprep.mubr.bf16.mxu0 %v4200
    %5197 = vmatmul.mubr.bf16.gmra.mrb[0].mxu0 %v4199
    %v5198 = vpop.f32.mrb[0].mxu0
    %v5199 = vadd.f32 %v5038, %v5198
    %v5200 = vpop.f32.mrb[0].mxu0
    %v5201 = vpop.f32.mrb[0].mxu0
    %v5202 = vadd.f32 %v5041, %v5201
    %v5203 = vpop.f32.mrb[0].mxu0
    %5204 = vmatprep.mubr.bf16.mxu0 %v4208
    %5205 = vmatmul.mubr.bf16.gmra.mrb[0].mxu0 %v4207
    %v5206 = vpop.f32.mrb[0].mxu0
    %v5207 = vadd.f32 %v5046, %v5206
    %v5208 = vpop.f32.mrb[0].mxu0
    %v5209 = vpop.f32.mrb[0].mxu0
    %v5210 = vadd.f32 %v5049, %v5209
    %v5211 = vpop.f32.mrb[0].mxu0
    %5212 = vmatprep.mubr.bf16.mxu0 %v4216
    %5213 = vmatmul.mubr.bf16.gmra.mrb[0].mxu0 %v4215
    %v5214 = vpop.f32.mrb[0].mxu0
    %v5215 = vadd.f32 %v5054, %v5214
    %v5216 = vpop.f32.mrb[0].mxu0
    %v5217 = vpop.f32.mrb[0].mxu0
    %v5218 = vadd.f32 %v5057, %v5217
    %v5219 = vpop.f32.mrb[0].mxu0
    %5220 = vmatprep.mubr.bf16.mxu0 %v4224
    %5221 = vmatmul.mubr.bf16.gmra.mrb[0].mxu0 %v4223
    %v5222 = vpop.f32.mrb[0].mxu0
    %v5223 = vadd.f32 %v5062, %v5222
    %v5224 = vpop.f32.mrb[0].mxu0
    %v5225 = vpop.f32.mrb[0].mxu0
    %v5226 = vadd.f32 %v5065, %v5225
    %v5227 = vpop.f32.mrb[0].mxu0
    %5228 = vmatprep.mubr.bf16.mxu0 %v4232
    %5229 = vmatmul.mubr.bf16.gmra.mrb[0].mxu0 %v4231
    %v5230 = vpop.f32.mrb[0].mxu0
    %v5231 = vadd.f32 %v5070, %v5230
    %v5232 = vpop.f32.mrb[0].mxu0
    %v5233 = vpop.f32.mrb[0].mxu0
    %v5234 = vadd.f32 %v5073, %v5233
    %v5235 = vpop.f32.mrb[0].mxu0
    %5236 = vmatprep.mubr.bf16.mxu0 %v4240
    %5237 = vmatmul.mubr.bf16.gmra.mrb[0].mxu0 %v4239
    %v5238 = vpop.f32.mrb[0].mxu0
    %v5239 = vadd.f32 %v5078, %v5238
    %v5240 = vpop.f32.mrb[0].mxu0
    %v5241 = vpop.f32.mrb[0].mxu0
    %v5242 = vadd.f32 %v5081, %v5241
    %v5243 = vpop.f32.mrb[0].mxu0
    %5244 = vmatprep.mubr.bf16.mxu0 %v4248
    %5245 = vmatmul.mubr.bf16.gmra.mrb[0].mxu0 %v4247
    %v5246 = vpop.f32.mrb[0].mxu0
    %v5247 = vadd.f32 %v5086, %v5246
    %v5248 = vpop.f32.mrb[0].mxu0
    %v5249 = vpop.f32.mrb[0].mxu0
    %v5250 = vadd.f32 %v5089, %v5249
    %v5251 = vpop.f32.mrb[0].mxu0
    %5252 = vmatprep.mubr.bf16.mxu0 %v4256
    %5253 = vmatmul.mubr.bf16.gmra.mrb[0].mxu0 %v4255
    %v5254 = vpop.f32.mrb[0].mxu0
    %v5255 = vadd.f32 %v5094, %v5254
    %v5256 = vpop.f32.mrb[0].mxu0
    %v5257 = vpop.f32.mrb[0].mxu0
    %v5258 = vadd.f32 %v5097, %v5257
    %v5259 = vpop.f32.mrb[0].mxu0
    %5260 = vmatprep.mubr.bf16.mxu0 %v4264
    %5261 = vmatmul.mubr.bf16.gmra.mrb[0].mxu0 %v4263
    %v5262 = vpop.f32.mrb[0].mxu0
    %v5263 = vadd.f32 %v5102, %v5262
    %v5264 = vpop.f32.mrb[0].mxu0
    %v5265 = vpop.f32.mrb[0].mxu0
    %v5266 = vadd.f32 %v5105, %v5265
    %v5267 = vpop.f32.mrb[0].mxu0
    %5268 = vmatprep.mubr.bf16.mxu0 %v4272
    %5269 = vmatmul.mubr.bf16.gmra.mrb[0].mxu0 %v4271
    %v5270 = vpop.f32.mrb[0].mxu0
    %v5271 = vadd.f32 %v5110, %v5270
    %v5272 = vpop.f32.mrb[0].mxu0
    %v5273 = vpop.f32.mrb[0].mxu0
    %v5274 = vadd.f32 %v5113, %v5273
    %v5275 = vpop.f32.mrb[0].mxu0
    %5276 = vmatprep.mubr.bf16.mxu0 %v4280
    %5277 = vmatmul.mubr.bf16.gmra.mrb[0].mxu0 %v4279
    %v5278 = vpop.f32.mrb[0].mxu0
    %v5279 = vadd.f32 %v5118, %v5278
    %v5280 = vpop.f32.mrb[0].mxu0
    %v5281 = vpop.f32.mrb[0].mxu0
    %v5282 = vadd.f32 %v5121, %v5281
    %v5283 = vpop.f32.mrb[0].mxu0
    %5284 = vmatprep.mubr.bf16.mxu0 %v4288
    %5285 = vmatmul.mubr.bf16.gmra.mrb[0].mxu0 %v4287
    %v5286 = vpop.f32.mrb[0].mxu0
    %v5287 = vadd.f32 %v5126, %v5286
    %v5288 = vpop.f32.mrb[0].mxu0
    %v5289 = vpop.f32.mrb[0].mxu0
    %v5290 = vadd.f32 %v5129, %v5289
    %v5291 = vpop.f32.mrb[0].mxu0
    %5292 = vdwg.mxu0
    %5293 = vmatprep.subr.bf16.mxu0 0
    %5294 = vmatpush1.bf16.msra.mxu0 %v4730
    %5295 = vmatprep.subr.bf16.mxu0 0
    %5296 = vmatpush1.bf16.msra.mxu0 %v4731
    %5297 = vmatprep.subr.bf16.mxu0 0
    %5298 = vmatpush1.bf16.msra.mxu0 %v4732
    %5299 = vmatprep.subr.bf16.mxu0 0
    %5300 = vmatpush1.bf16.msra.mxu0 %v4733
    %5301 = vmatprep.subr.bf16.mxu0 0
    %5302 = vmatpush1.bf16.msra.mxu0 %v4734
    %5303 = vmatprep.subr.bf16.mxu0 0
    %5304 = vmatpush1.bf16.msra.mxu0 %v4735
    %5305 = vmatprep.subr.bf16.mxu0 0
    %5306 = vmatpush1.bf16.msra.mxu0 %v4736
    %5307 = vmatprep.subr.bf16.mxu0 0
    %5308 = vmatpush1.bf16.msra.mxu0 %v4737
    %5309 = vmatprep.subr.bf16.mxu0 0
    %5310 = vmatpush1.bf16.msra.mxu0 %v4738
    %5311 = vmatprep.subr.bf16.mxu0 0
    %5312 = vmatpush1.bf16.msra.mxu0 %v4739
    %5313 = vmatprep.subr.bf16.mxu0 0
    %5314 = vmatpush1.bf16.msra.mxu0 %v4740
    %5315 = vmatprep.subr.bf16.mxu0 0
    %5316 = vmatpush1.bf16.msra.mxu0 %v4741
    %5317 = vmatprep.subr.bf16.mxu0 0
    %5318 = vmatpush1.bf16.msra.mxu0 %v4742
    %5319 = vmatprep.subr.bf16.mxu0 0
    %5320 = vmatpush1.bf16.msra.mxu0 %v4743
    %5321 = vmatprep.subr.bf16.mxu0 0
    %5322 = vmatpush1.bf16.msra.mxu0 %v4744
    %5323 = vmatprep.subr.bf16.mxu0 0
    %5324 = vmatpush1.bf16.msra.mxu0 %v4745
    %5325 = vmatprep.mubr.bf16.mxu0 %v4170
    %5326 = vmatmul.mubr.bf16.gmra.mrb[0].mxu0 %v4169
    %v5327 = vpop.f32.mrb[0].mxu0
    %v5328 = vadd.f32 %v5167, %v5327
    %v5329 = vpop.f32.mrb[0].mxu0
    %v5330 = vpop.f32.mrb[0].mxu0
    %v5331 = vadd.f32 %v5170, %v5330
    %v5332 = vpop.f32.mrb[0].mxu0
    %5333 = vmatprep.mubr.bf16.mxu0 %v4178
    %5334 = vmatmul.mubr.bf16.gmra.mrb[0].mxu0 %v4177
    %v5335 = vpop.f32.mrb[0].mxu0
    %v5336 = vadd.f32 %v5175, %v5335
    %v5337 = vpop.f32.mrb[0].mxu0
    %v5338 = vpop.f32.mrb[0].mxu0
    %v5339 = vadd.f32 %v5178, %v5338
    %v5340 = vpop.f32.mrb[0].mxu0
    %5341 = vmatprep.mubr.bf16.mxu0 %v4186
    %5342 = vmatmul.mubr.bf16.gmra.mrb[0].mxu0 %v4185
    %v5343 = vpop.f32.mrb[0].mxu0
    %v5344 = vadd.f32 %v5183, %v5343
    %v5345 = vpop.f32.mrb[0].mxu0
    %v5346 = vpop.f32.mrb[0].mxu0
    %v5347 = vadd.f32 %v5186, %v5346
    %v5348 = vpop.f32.mrb[0].mxu0
    %5349 = vmatprep.mubr.bf16.mxu0 %v4194
    %5350 = vmatmul.mubr.bf16.gmra.mrb[0].mxu0 %v4193
    %v5351 = vpop.f32.mrb[0].mxu0
    %v5352 = vadd.f32 %v5191, %v5351
    %v5353 = vpop.f32.mrb[0].mxu0
    %v5354 = vpop.f32.mrb[0].mxu0
    %v5355 = vadd.f32 %v5194, %v5354
    %v5356 = vpop.f32.mrb[0].mxu0
    %5357 = vmatprep.mubr.bf16.mxu0 %v4202
    %5358 = vmatmul.mubr.bf16.gmra.mrb[0].mxu0 %v4201
    %v5359 = vpop.f32.mrb[0].mxu0
    %v5360 = vadd.f32 %v5199, %v5359
    %v5361 = vpop.f32.mrb[0].mxu0
    %v5362 = vpop.f32.mrb[0].mxu0
    %v5363 = vadd.f32 %v5202, %v5362
    %v5364 = vpop.f32.mrb[0].mxu0
    %5365 = vmatprep.mubr.bf16.mxu0 %v4210
    %5366 = vmatmul.mubr.bf16.gmra.mrb[0].mxu0 %v4209
    %v5367 = vpop.f32.mrb[0].mxu0
    %v5368 = vadd.f32 %v5207, %v5367
    %v5369 = vpop.f32.mrb[0].mxu0
    %v5370 = vpop.f32.mrb[0].mxu0
    %v5371 = vadd.f32 %v5210, %v5370
    %v5372 = vpop.f32.mrb[0].mxu0
    %5373 = vmatprep.mubr.bf16.mxu0 %v4218
    %5374 = vmatmul.mubr.bf16.gmra.mrb[0].mxu0 %v4217
    %v5375 = vpop.f32.mrb[0].mxu0
    %v5376 = vadd.f32 %v5215, %v5375
    %v5377 = vpop.f32.mrb[0].mxu0
    %v5378 = vpop.f32.mrb[0].mxu0
    %v5379 = vadd.f32 %v5218, %v5378
    %v5380 = vpop.f32.mrb[0].mxu0
    %5381 = vmatprep.mubr.bf16.mxu0 %v4226
    %5382 = vmatmul.mubr.bf16.gmra.mrb[0].mxu0 %v4225
    %v5383 = vpop.f32.mrb[0].mxu0
    %v5384 = vadd.f32 %v5223, %v5383
    %v5385 = vpop.f32.mrb[0].mxu0
    %v5386 = vpop.f32.mrb[0].mxu0
    %v5387 = vadd.f32 %v5226, %v5386
    %v5388 = vpop.f32.mrb[0].mxu0
    %5389 = vmatprep.mubr.bf16.mxu0 %v4234
    %5390 = vmatmul.mubr.bf16.gmra.mrb[0].mxu0 %v4233
    %v5391 = vpop.f32.mrb[0].mxu0
    %v5392 = vadd.f32 %v5231, %v5391
    %v5393 = vpop.f32.mrb[0].mxu0
    %v5394 = vpop.f32.mrb[0].mxu0
    %v5395 = vadd.f32 %v5234, %v5394
    %v5396 = vpop.f32.mrb[0].mxu0
    %5397 = vmatprep.mubr.bf16.mxu0 %v4242
    %5398 = vmatmul.mubr.bf16.gmra.mrb[0].mxu0 %v4241
    %v5399 = vpop.f32.mrb[0].mxu0
    %v5400 = vadd.f32 %v5239, %v5399
    %v5401 = vpop.f32.mrb[0].mxu0
    %v5402 = vpop.f32.mrb[0].mxu0
    %v5403 = vadd.f32 %v5242, %v5402
    %v5404 = vpop.f32.mrb[0].mxu0
    %5405 = vmatprep.mubr.bf16.mxu0 %v4250
    %5406 = vmatmul.mubr.bf16.gmra.mrb[0].mxu0 %v4249
    %v5407 = vpop.f32.mrb[0].mxu0
    %v5408 = vadd.f32 %v5247, %v5407
    %v5409 = vpop.f32.mrb[0].mxu0
    %v5410 = vpop.f32.mrb[0].mxu0
    %v5411 = vadd.f32 %v5250, %v5410
    %v5412 = vpop.f32.mrb[0].mxu0
    %5413 = vmatprep.mubr.bf16.mxu0 %v4258
    %5414 = vmatmul.mubr.bf16.gmra.mrb[0].mxu0 %v4257
    %v5415 = vpop.f32.mrb[0].mxu0
    %v5416 = vadd.f32 %v5255, %v5415
    %v5417 = vpop.f32.mrb[0].mxu0
    %v5418 = vpop.f32.mrb[0].mxu0
    %v5419 = vadd.f32 %v5258, %v5418
    %v5420 = vpop.f32.mrb[0].mxu0
    %5421 = vmatprep.mubr.bf16.mxu0 %v4266
    %5422 = vmatmul.mubr.bf16.gmra.mrb[0].mxu0 %v4265
    %v5423 = vpop.f32.mrb[0].mxu0
    %v5424 = vadd.f32 %v5263, %v5423
    %v5425 = vpop.f32.mrb[0].mxu0
    %v5426 = vpop.f32.mrb[0].mxu0
    %v5427 = vadd.f32 %v5266, %v5426
    %v5428 = vpop.f32.mrb[0].mxu0
    %5429 = vmatprep.mubr.bf16.mxu0 %v4274
    %5430 = vmatmul.mubr.bf16.gmra.mrb[0].mxu0 %v4273
    %v5431 = vpop.f32.mrb[0].mxu0
    %v5432 = vadd.f32 %v5271, %v5431
    %v5433 = vpop.f32.mrb[0].mxu0
    %v5434 = vpop.f32.mrb[0].mxu0
    %v5435 = vadd.f32 %v5274, %v5434
    %v5436 = vpop.f32.mrb[0].mxu0
    %5437 = vmatprep.mubr.bf16.mxu0 %v4282
    %5438 = vmatmul.mubr.bf16.gmra.mrb[0].mxu0 %v4281
    %v5439 = vpop.f32.mrb[0].mxu0
    %v5440 = vadd.f32 %v5279, %v5439
    %v5441 = vpop.f32.mrb[0].mxu0
    %v5442 = vpop.f32.mrb[0].mxu0
    %v5443 = vadd.f32 %v5282, %v5442
    %v5444 = vpop.f32.mrb[0].mxu0
    %5445 = vmatprep.mubr.bf16.mxu0 %v4290
    %5446 = vmatmul.mubr.bf16.gmra.mrb[0].mxu0 %v4289
    %v5447 = vpop.f32.mrb[0].mxu0
    %v5448 = vadd.f32 %v5287, %v5447
    %v5449 = vpop.f32.mrb[0].mxu0
    %v5450 = vpop.f32.mrb[0].mxu0
    %v5451 = vadd.f32 %v5290, %v5450
    %v5452 = vpop.f32.mrb[0].mxu0
    %5453 = vdwg.mxu0
    %5454 = vst [vmem:[%s7] sm:$0xff] %v5328
    %5455 = vst [vmem:[%s7 + $0x8] sm:$0xff] %v5331
    %5456 = vst [vmem:[%s7 + $0x10] sm:$0xff] %v5336
    %5457 = vst [vmem:[%s7 + $0x18] sm:$0xff] %v5339
    %5458 = vst [vmem:[%s7 + $0x20] sm:$0xff] %v5344
    %5459 = vst [vmem:[%s7 + $0x28] sm:$0xff] %v5347
    %5460 = vst [vmem:[%s7 + $0x30] sm:$0xff] %v5352
    %5461 = vst [vmem:[%s7 + $0x38] sm:$0xff] %v5355
    %5462 = vst [vmem:[%s7 + $0x40] sm:$0xff] %v5360
    %5463 = vst [vmem:[%s7 + $0x48] sm:$0xff] %v5363
    %5464 = vst [vmem:[%s7 + $0x50] sm:$0xff] %v5368
    %5465 = vst [vmem:[%s7 + $0x58] sm:$0xff] %v5371
    %5466 = vst [vmem:[%s7 + $0x60] sm:$0xff] %v5376
    %5467 = vst [vmem:[%s7 + $0x68] sm:$0xff] %v5379
    %5468 = vst [vmem:[%s7 + $0x70] sm:$0xff] %v5384
    %5469 = vst [vmem:[%s7 + $0x78] sm:$0xff] %v5387
    %5470 = vst [vmem:[%s7 + $0x80] sm:$0xff] %v5392
    %5471 = vst [vmem:[%s7 + $0x88] sm:$0xff] %v5395
    %5472 = vst [vmem:[%s7 + $0x90] sm:$0xff] %v5400
    %5473 = vst [vmem:[%s7 + $0x98] sm:$0xff] %v5403
    %5474 = vst [vmem:[%s7 + $0xa0] sm:$0xff] %v5408
    %5475 = vst [vmem:[%s7 + $0xa8] sm:$0xff] %v5411
    %5476 = vst [vmem:[%s7 + $0xb0] sm:$0xff] %v5416
    %5477 = vst [vmem:[%s7 + $0xb8] sm:$0xff] %v5419
    %5478 = vst [vmem:[%s7 + $0xc0] sm:$0xff] %v5424
    %5479 = vst [vmem:[%s7 + $0xc8] sm:$0xff] %v5427
    %5480 = vst [vmem:[%s7 + $0xd0] sm:$0xff] %v5432
    %5481 = vst [vmem:[%s7 + $0xd8] sm:$0xff] %v5435
    %5482 = vst [vmem:[%s7 + $0xe0] sm:$0xff] %v5440
    %5483 = vst [vmem:[%s7 + $0xe8] sm:$0xff] %v5443
    %5484 = vst [vmem:[%s7 + $0xf0] sm:$0xff] %v5448
    %5485 = vst [vmem:[%s7 + $0xf8] sm:$0xff] %v5451
    // Predicated region
    $region38: #{mlp_forward.1} parent=1 // pred_check
      _
    $region39: #{mlp_forward.1} parent=1 // pred_check_branch
      %5487 = sbr.rel (0) target = $region41
    $region40: #{mlp_forward.1} parent=1 // pred_region
      _
    $region41: #{mlp_forward.1} parent=1 // pred_fallthru
      _
    // Predicated region
    $region42: #{mlp_forward.1} parent=1 // pred_check
      _
    $region43: #{mlp_forward.1} parent=1 // pred_check_branch
      %5489 = sbr.rel (0) target = $region45
    $region44: #{mlp_forward.1} parent=1 // pred_region
      _
    $region45: #{mlp_forward.1} parent=1 // pred_fallthru
      _
    %5490 = vsyncpa [#allocation3], 1
    %5491 = vsyncpa [#allocation5], 1

</llo_original>
